<compile_context>
chip_gen: v5e
topology: v5e:2x2
jax: 0.10.0
libtpu: 0.0.40
codegen_flags: <defaults>
</compile_context>

<pallas_src>
import functools

import jax
import jax.numpy as jnp
from jax.experimental import pallas as pl
from jax.experimental.pallas import tpu as pltpu

HIDDEN = 64
NUM_LAYERS = 4
CONTRASTIVE_DIM = 8
K_NEIGHBORS = 20
BN_EPS = 1e-5
LANE = 128          # TPU lane width; head output padded to this for lane-dense stores
MAX_TILE = 2048     # row-tile cap; per-step blocks stay small on v5e/v6e/v7x


def _elu(x):
    # ELU(alpha=1) in f32: x if x > 0 else exp(x) - 1 (clamp the dead branch).
    return jnp.where(x > 0, x, jnp.exp(jnp.minimum(x, 0.0)) - 1.0)


# ----------------------------- tiling / spec helpers -----------------------------
def _cparams():
    # Row grid axis is embarrassingly parallel -> v7x's two TensorCores split it
    # (harmless on single-core v5e/v6e).  32 MiB scoped VMEM is safe on all three
    # generations and far above our per-step block sizes.
    return pltpu.CompilerParams(
        dimension_semantics=("parallel",),
        vmem_limit_bytes=32 * 1024 * 1024,
    )


def _tiling(n):
    # >= 2 grid steps whenever possible (so both v7x TensorCores get work), tiles
    # capped at MAX_TILE rows, N padded to a tile multiple (no full-array fallback).
    steps = max(2, -(-n // MAX_TILE))
    tile = max(8, ((-(-n // steps) + 7) // 8) * 8)
    n_pad = -(-n // tile) * tile
    return tile, n_pad


def _rows(tile, feat):
    return pl.BlockSpec((tile, feat), lambda i, *_: (i, 0))


def _full2(shape):
    # Whole (small) array resident in VMEM; same block every step -> fetched once.
    return pl.BlockSpec(shape, lambda i, *_: (0, 0))


# ------------------------------ in-kernel gather+max ------------------------------
def _gather_max(idx_ref, y_ref, m_ref, *, k, tile):
    """m[r] = max_j y[idx[r, j]] for the rows of the current tile.

    idx_ref: flat (N*k,) int32 neighbor table in SMEM (scalar prefetch).
    y_ref:   full (N, HIDDEN) f32 slab resident in VMEM.
    m_ref:   (tile, HIDDEN) f32 VMEM scratch.
    Invalid top-k slots were replaced upstream by the row's own index, so no -inf
    masking is needed (self is always a genuine kNN member here).
    """
    base = pl.program_id(0) * (tile * k)

    def row(r, carry):
        off = base + r * k
        m = y_ref[pl.ds(idx_ref[off], 1), :]
        for j in range(1, k):
            m = jnp.maximum(m, y_ref[pl.ds(idx_ref[off + j], 1), :])
        m_ref[pl.ds(r, 1), :] = m
        return carry

    jax.lax.fori_loop(0, tile, row, 0)


# --------------- kernel 1: lc_encode + pre-matmul of conv layer 0 ---------------
def _encode_pre_kernel(x_ref, ew1_ref, eb1_ref, ew2_ref, eb2_ref, wcat_ref, bcat_ref,
                       feats_ref, a_ref, y_ref):
    x = x_ref[...].astype(jnp.bfloat16)
    h = _elu(jnp.dot(x, ew1_ref[...], preferred_element_type=jnp.float32) + eb1_ref[...])
    f = _elu(jnp.dot(h.astype(jnp.bfloat16), ew2_ref[...],
                     preferred_element_type=jnp.float32) + eb2_ref[...])
    fb = f.astype(jnp.bfloat16)
    feats_ref[...] = fb
    # One lane-dense (tile,64)@(64,128) MXU call; split stores:
    #   a = f @ (W1 - W2) + b     (bf16, post-kernel input)
    #   y = f @ W2                (f32, gather operand)
    ay = jnp.dot(fb, wcat_ref[...], preferred_element_type=jnp.float32) + bcat_ref[...]
    a_ref[...] = ay[:, :HIDDEN].astype(jnp.bfloat16)
    y_ref[...] = ay[:, HIDDEN:]


def encode_and_pre(xp, enc, wcat, bcat, tile):
    n_pad = xp.shape[0]
    return pl.pallas_call(
        _encode_pre_kernel,
        out_shape=(jax.ShapeDtypeStruct((n_pad, HIDDEN), jnp.bfloat16),   # feats
                   jax.ShapeDtypeStruct((n_pad, HIDDEN), jnp.bfloat16),   # a
                   jax.ShapeDtypeStruct((n_pad, HIDDEN), jnp.float32)),   # y
        grid=(n_pad // tile,),
        in_specs=[_rows(tile, xp.shape[1]),
                  _full2(enc["w1"].shape), _full2(enc["b1"].shape),
                  _full2(enc["w2"].shape), _full2(enc["b2"].shape),
                  _full2(wcat.shape), _full2(bcat.shape)],
        out_specs=(_rows(tile, HIDDEN), _rows(tile, HIDDEN), _rows(tile, HIDDEN)),
        compiler_params=_cparams(),
    )(xp, enc["w1"], enc["b1"], enc["w2"], enc["b2"], wcat, bcat)


# ------- kernel 2: in-kernel gather+max + conv epilogue + next layer's pre-matmul -------
def _gather_post_pre_kernel(idx_ref, a_ref, feats_ref, y_ref, scale_ref, shift_ref,
                            wcat_ref, bcat_ref,
                            feats_out_ref, a_out_ref, y_out_ref, m_scr, *, k, tile):
    _gather_max(idx_ref, y_ref, m_scr, k=k, tile=tile)
    # max_j BN(ELU(a_i + y_j)) == BN(ELU(a_i + max_j y_j)) because ELU and the folded
    # BN affine (scale = gamma/sqrt(var+eps) > 0 for eval-mode defaults) are monotone.
    a = a_ref[...].astype(jnp.float32)
    h = _elu(a + m_scr[...]) * scale_ref[...] + shift_ref[...]
    f = h + feats_ref[...].astype(jnp.float32)                 # residual: conv(x) + x
    fb = f.astype(jnp.bfloat16)
    feats_out_ref[...] = fb
    ay = jnp.dot(fb, wcat_ref[...], preferred_element_type=jnp.float32) + bcat_ref[...]
    a_out_ref[...] = ay[:, :HIDDEN].astype(jnp.bfloat16)
    y_out_ref[...] = ay[:, HIDDEN:]


def gather_post_pre(idx_flat, a, feats, y, scale, shift, wcat, bcat, k, tile):
    n_pad = feats.shape[0]
    kernel = functools.partial(_gather_post_pre_kernel, k=k, tile=tile)
    return pl.pallas_call(
        kernel,
        out_shape=(jax.ShapeDtypeStruct((n_pad, HIDDEN), jnp.bfloat16),
                   jax.ShapeDtypeStruct((n_pad, HIDDEN), jnp.bfloat16),
                   jax.ShapeDtypeStruct((n_pad, HIDDEN), jnp.float32)),
        grid_spec=pltpu.PrefetchScalarGridSpec(
            num_scalar_prefetch=1,
            grid=(n_pad // tile,),
            in_specs=[_rows(tile, HIDDEN),             # a
                      _rows(tile, HIDDEN),             # feats
                      _full2((n_pad, HIDDEN)),         # y slab, VMEM resident
                      _full2(scale.shape), _full2(shift.shape),
                      _full2(wcat.shape), _full2(bcat.shape)],
            out_specs=(_rows(tile, HIDDEN), _rows(tile, HIDDEN), _rows(tile, HIDDEN)),
            scratch_shapes=[pltpu.VMEM((tile, HIDDEN), jnp.float32)],
        ),
        compiler_params=_cparams(),
    )(idx_flat, a, feats, y, scale, shift, wcat, bcat)


# --------- kernel 3: in-kernel gather+max + last conv epilogue + output MLP head ---------
def _gather_post_head_kernel(idx_ref, a_ref, feats_ref, y_ref, scale_ref, shift_ref,
                             ow1_ref, ob1_ref, ow2_ref, ob2_ref, ow3_ref, ob3_ref,
                             out_ref, m_scr, *, k, tile):
    _gather_max(idx_ref, y_ref, m_scr, k=k, tile=tile)
    a = a_ref[...].astype(jnp.float32)
    h = _elu(a + m_scr[...]) * scale_ref[...] + shift_ref[...]
    f = (h + feats_ref[...].astype(jnp.float32)).astype(jnp.bfloat16)
    h1 = _elu(jnp.dot(f, ow1_ref[...], preferred_element_type=jnp.float32) + ob1_ref[...])
    h2 = _elu(jnp.dot(h1.astype(jnp.bfloat16), ow2_ref[...],
                      preferred_element_type=jnp.float32) + ob2_ref[...])
    # Final Linear(32,8) zero-padded to 128 lanes -> unmasked lane-dense stores.
    out_ref[...] = jnp.dot(h2.astype(jnp.bfloat16), ow3_ref[...],
                           preferred_element_type=jnp.float32) + ob3_ref[...]


def gather_post_head(idx_flat, a, feats, y, scale, shift, head, k, tile):
    n_pad = feats.shape[0]
    kernel = functools.partial(_gather_post_head_kernel, k=k, tile=tile)
    return pl.pallas_call(
        kernel,
        out_shape=jax.ShapeDtypeStruct((n_pad, LANE), jnp.float32),
        grid_spec=pltpu.PrefetchScalarGridSpec(
            num_scalar_prefetch=1,
            grid=(n_pad // tile,),
            in_specs=[_rows(tile, HIDDEN),             # a
                      _rows(tile, HIDDEN),             # feats
                      _full2((n_pad, HIDDEN)),         # y slab, VMEM resident
                      _full2(scale.shape), _full2(shift.shape),
                      _full2(head["w1"].shape), _full2(head["b1"].shape),
                      _full2(head["w2"].shape), _full2(head["b2"].shape),
                      _full2(head["w3"].shape), _full2(head["b3"].shape)],
            out_specs=_rows(tile, LANE),
            scratch_shapes=[pltpu.VMEM((tile, HIDDEN), jnp.float32)],
        ),
        compiler_params=_cparams(),
    )(idx_flat, a, feats, y, scale, shift,
      head["w1"], head["b1"], head["w2"], head["b2"], head["w3"], head["b3"])


# -------------------------- XLA glue: per-graph kNN indices --------------------------
def knn_safe_idx(feats, batch, k):
    # TODO(synk): the O(N^2) distance matrix + lax.top_k stay in XLA (no clean Pallas
    # TPU top-k primitive); the gather + max now run inside the Pallas kernels.
    n = feats.shape[0]
    k = min(k, n)
    xf = feats.astype(jnp.float32)
    sq = jnp.sum(xf * xf, axis=-1)
    # Single-pass bf16 MXU matmul with f32 accumulation; used for ordering only.
    g = jnp.dot(feats, feats.T, preferred_element_type=jnp.float32)
    d = sq[:, None] + sq[None, :] - 2.0 * g
    d = jnp.where(batch[:, None] != batch[None, :], jnp.inf, d)
    neg_d, idx = jax.lax.top_k(-d, k)               # self (dist ~0) included, as in torch knn
    self_idx = jax.lax.broadcasted_iota(jnp.int32, (n, k), 0)
    # Invalid slots (graphs with < k nodes, padded rows) -> point at the node itself,
    # which is already a genuine kNN member, so the in-kernel max needs no -inf mask.
    safe = jnp.where(neg_d > -jnp.inf, idx.astype(jnp.int32), self_idx)
    return safe.reshape(-1), k


# ----------------------------------- parameters -----------------------------------
def _linear(key, fan_in, fan_out):
    kw, kb = jax.random.split(key)
    bound = 1.0 / jnp.sqrt(jnp.float32(fan_in))
    w = jax.random.uniform(kw, (fan_in, fan_out), jnp.float32, -bound, bound)
    b = jax.random.uniform(kb, (1, fan_out), jnp.float32, -bound, bound)
    return w, b


def init_params(key):
    keys = jax.random.split(key, 2 + NUM_LAYERS + 3)
    w1, b1 = _linear(keys[0], 8, 32)
    w2, b2 = _linear(keys[1], 32, HIDDEN)
    encode = {"w1": w1, "b1": b1, "w2": w2, "b2": b2}

    convs = []
    for i in range(NUM_LAYERS):
        wf, b = _linear(keys[2 + i], 2 * HIDDEN, HIDDEN)               # Linear(2H, H)
        convs.append({
            "w1": wf[:HIDDEN], "w2": wf[HIDDEN:], "b": b,
            "gamma": jnp.ones((1, HIDDEN), jnp.float32),
            "beta": jnp.zeros((1, HIDDEN), jnp.float32),
            "mean": jnp.zeros((1, HIDDEN), jnp.float32),
            "var": jnp.ones((1, HIDDEN), jnp.float32),
        })

    ow1, ob1 = _linear(keys[2 + NUM_LAYERS], HIDDEN, 64)
    ow2, ob2 = _linear(keys[3 + NUM_LAYERS], 64, 32)
    ow3, ob3 = _linear(keys[4 + NUM_LAYERS], 32, CONTRASTIVE_DIM)
    output = {"w1": ow1, "b1": ob1, "w2": ow2, "b2": ob2, "w3": ow3, "b3": ob3}

    return {"encode": encode, "convs": convs, "output": output}


def _fold_conv(p):
    # Fold eval-mode BN into one scale/shift; concat [W1 - W2 | W2] and [b | 0] so the
    # per-layer pre-matmul is a single 128-lane MXU call.  NOTE: the ELU/BN max-hoist
    # requires scale > 0 per channel (true for gamma=1, var=1 running stats).
    inv_std = 1.0 / jnp.sqrt(p["var"] + BN_EPS)
    scale = p["gamma"] * inv_std
    shift = p["beta"] - p["mean"] * scale
    wcat = jnp.concatenate([p["w1"] - p["w2"], p["w2"]], axis=1).astype(jnp.bfloat16)
    bcat = jnp.concatenate([p["b"], jnp.zeros_like(p["b"])], axis=1)   # (1, 2H) f32
    return wcat, bcat, scale, shift


def _fold_head(p):
    # bf16 matmul weights, f32 biases; last Linear(32,8) zero-padded to 128 lanes.
    w3p = jnp.zeros((p["w3"].shape[0], LANE), jnp.float32).at[:, :CONTRASTIVE_DIM].set(p["w3"])
    b3p = jnp.zeros((1, LANE), jnp.float32).at[:, :CONTRASTIVE_DIM].set(p["b3"])
    return {
        "w1": p["w1"].astype(jnp.bfloat16), "b1": p["b1"],
        "w2": p["w2"].astype(jnp.bfloat16), "b2": p["b2"],
        "w3": w3p.astype(jnp.bfloat16), "b3": b3p,
    }


# ------------------------------------ forward ------------------------------------
def net_forward(params, x, batch):
    n = x.shape[0]
    tile, n_pad = _tiling(n)
    pad = n_pad - n
    xp = jnp.pad(x.astype(jnp.float32), ((0, pad), (0, 0)))
    bp = jnp.pad(batch.astype(jnp.int32), (0, pad), constant_values=-1)  # pad rows: own group

    enc = {"w1": params["encode"]["w1"].astype(jnp.bfloat16), "b1": params["encode"]["b1"],
           "w2": params["encode"]["w2"].astype(jnp.bfloat16), "b2": params["encode"]["b2"]}
    folded = [_fold_conv(p) for p in params["convs"]]
    head = _fold_head(params["output"])

    wcat0, bcat0, _, _ = folded[0]
    feats, a, y = encode_and_pre(xp, enc, wcat0, bcat0, tile)

    out_pad = None
    for i in range(NUM_LAYERS):
        k = K_NEIGHBORS if (i + 1) % 2 == 0 else K_NEIGHBORS // 4      # 5, 20, 5, 20
        idx_flat, k_eff = knn_safe_idx(feats, bp, k)
        _, _, scale, shift = folded[i]
        if i + 1 < NUM_LAYERS:
            wcat_n, bcat_n, _, _ = folded[i + 1]
            feats, a, y = gather_post_pre(idx_flat, a, feats, y, scale, shift,
                                          wcat_n, bcat_n, k_eff, tile)
        else:
            out_pad = gather_post_head(idx_flat, a, feats, y, scale, shift,
                                       head, k_eff, tile)
    return out_pad[:n, :CONTRASTIVE_DIM], batch


if __name__ == "__main__":
    N = 64  # 2 graphs x 32 nodes each (>= k=20 so every node has k in-graph neighbors)
    key = jax.random.PRNGKey(0)
    kx, kp = jax.random.split(key)
    x = jax.random.normal(kx, (N, 8), jnp.float32)
    batch = jnp.concatenate([jnp.zeros(N // 2, jnp.int32), jnp.ones(N // 2, jnp.int32)])

    params = init_params(kp)
    fwd = jax.jit(net_forward)
    out, batch_out = fwd(params, x, batch)
    jax.block_until_ready(out)

    assert out.shape == (N, CONTRASTIVE_DIM) and out.dtype == jnp.float32
    assert batch_out.shape == (N,)
    assert bool(jnp.all(jnp.isfinite(out)))
    print("KERNEL_OK")
</pallas_src>

<mosaic_0001>
module attributes {stable_mosaic.version = 11 : i64} {
  func.func @_encode_pre_kernel(%arg0: i32, %arg1: memref<32x8xf32, #tpu.memory_space<vmem>>, %arg2: memref<8x32xbf16, #tpu.memory_space<vmem>>, %arg3: memref<1x32xf32, #tpu.memory_space<vmem>>, %arg4: memref<32x64xbf16, #tpu.memory_space<vmem>>, %arg5: memref<1x64xf32, #tpu.memory_space<vmem>>, %arg6: memref<64x128xbf16, #tpu.memory_space<vmem>>, %arg7: memref<1x128xf32, #tpu.memory_space<vmem>>, %arg8: memref<32x64xbf16, #tpu.memory_space<vmem>>, %arg9: memref<32x64xbf16, #tpu.memory_space<vmem>>, %arg10: memref<32x64xf32, #tpu.memory_space<vmem>>) attributes {dimension_semantics = [#tpu.dimension_semantics<parallel>], iteration_bounds = array<i64: 2>, scalar_prefetch = 0 : i64, scratch_operands = 0 : i64, tpu.core_type = #tpu.core_type<tc>, window_params = [{transform_indices = @transform_0, window_bounds = array<i64: 32, 8>}, {pipeline_mode = #tpu.pipeline_mode<synchronous>, transform_indices = @transform_1, window_bounds = array<i64: 8, 32>}, {pipeline_mode = #tpu.pipeline_mode<synchronous>, transform_indices = @transform_2, window_bounds = array<i64: 1, 32>}, {pipeline_mode = #tpu.pipeline_mode<synchronous>, transform_indices = @transform_3, window_bounds = array<i64: 32, 64>}, {pipeline_mode = #tpu.pipeline_mode<synchronous>, transform_indices = @transform_4, window_bounds = array<i64: 1, 64>}, {pipeline_mode = #tpu.pipeline_mode<synchronous>, transform_indices = @transform_5, window_bounds = array<i64: 64, 128>}, {pipeline_mode = #tpu.pipeline_mode<synchronous>, transform_indices = @transform_6, window_bounds = array<i64: 1, 128>}, {transform_indices = @transform_7, window_bounds = array<i64: 32, 64>}, {transform_indices = @transform_8, window_bounds = array<i64: 32, 64>}, {transform_indices = @transform_9, window_bounds = array<i64: 32, 64>}]} {
    %c0 = arith.constant 0 : index
    %c0_0 = arith.constant 0 : index
    %0 = vector.load %arg1[%c0, %c0_0] : memref<32x8xf32, #tpu.memory_space<vmem>>, vector<32x8xf32>
    %1 = arith.truncf %0 : vector<32x8xf32> to vector<32x8xbf16>
    %c0_1 = arith.constant 0 : index
    %c0_2 = arith.constant 0 : index
    %2 = vector.load %arg2[%c0_1, %c0_2] : memref<8x32xbf16, #tpu.memory_space<vmem>>, vector<8x32xbf16>
    %cst = arith.constant dense<0.000000e+00> : vector<32x32xf32>
    %3 = tpu.matmul %1, %2, %cst {dimension_numbers = #tpu.dot_dimension_numbers<[1], [0], [0], [1], [0, 0, 1, 1], [], []>} : vector<32x8xbf16>, vector<8x32xbf16>, vector<32x32xf32> -> vector<32x32xf32>
    %c0_3 = arith.constant 0 : index
    %c0_4 = arith.constant 0 : index
    %4 = vector.load %arg3[%c0_3, %c0_4] : memref<1x32xf32, #tpu.memory_space<vmem>>, vector<1x32xf32>
    %5 = vector.broadcast %4 : vector<1x32xf32> to vector<32x32xf32>
    %6 = arith.addf %3, %5 : vector<32x32xf32>
    %cst_5 = arith.constant 0.000000e+00 : f32
    %7 = vector.broadcast %cst_5 : f32 to vector<32x32xf32>
    %8 = arith.cmpf ogt, %6, %7 : vector<32x32xf32>
    %cst_6 = arith.constant 0.000000e+00 : f32
    %9 = vector.broadcast %cst_6 : f32 to vector<32x32xf32>
    %10 = arith.minimumf %6, %9 : vector<32x32xf32>
    %11 = math.exp %10 : vector<32x32xf32>
    %cst_7 = arith.constant 1.000000e+00 : f32
    %12 = vector.broadcast %cst_7 : f32 to vector<32x32xf32>
    %13 = arith.subf %11, %12 : vector<32x32xf32>
    %14 = arith.select %8, %6, %13 : vector<32x32xi1>, vector<32x32xf32>
    %15 = arith.truncf %14 : vector<32x32xf32> to vector<32x32xbf16>
    %c0_8 = arith.constant 0 : index
    %c0_9 = arith.constant 0 : index
    %16 = vector.load %arg4[%c0_8, %c0_9] : memref<32x64xbf16, #tpu.memory_space<vmem>>, vector<32x64xbf16>
    %cst_10 = arith.constant dense<0.000000e+00> : vector<32x64xf32>
    %17 = tpu.matmul %15, %16, %cst_10 {dimension_numbers = #tpu.dot_dimension_numbers<[1], [0], [0], [1], [0, 0, 1, 1], [], []>} : vector<32x32xbf16>, vector<32x64xbf16>, vector<32x64xf32> -> vector<32x64xf32>
    %c0_11 = arith.constant 0 : index
    %c0_12 = arith.constant 0 : index
    %18 = vector.load %arg5[%c0_11, %c0_12] : memref<1x64xf32, #tpu.memory_space<vmem>>, vector<1x64xf32>
    %19 = vector.broadcast %18 : vector<1x64xf32> to vector<32x64xf32>
    %20 = arith.addf %17, %19 : vector<32x64xf32>
    %cst_13 = arith.constant 0.000000e+00 : f32
    %21 = vector.broadcast %cst_13 : f32 to vector<32x64xf32>
    %22 = arith.cmpf ogt, %20, %21 : vector<32x64xf32>
    %cst_14 = arith.constant 0.000000e+00 : f32
    %23 = vector.broadcast %cst_14 : f32 to vector<32x64xf32>
    %24 = arith.minimumf %20, %23 : vector<32x64xf32>
    %25 = math.exp %24 : vector<32x64xf32>
    %cst_15 = arith.constant 1.000000e+00 : f32
    %26 = vector.broadcast %cst_15 : f32 to vector<32x64xf32>
    %27 = arith.subf %25, %26 : vector<32x64xf32>
    %28 = arith.select %22, %20, %27 : vector<32x64xi1>, vector<32x64xf32>
    %29 = arith.truncf %28 : vector<32x64xf32> to vector<32x64xbf16>
    %c0_16 = arith.constant 0 : index
    %c0_17 = arith.constant 0 : index
    %30 = vector.load %arg8[%c0_16, %c0_17] : memref<32x64xbf16, #tpu.memory_space<vmem>>, vector<32x64xbf16>
    tpu.vector_store %arg8[%c0_16, %c0_17], %29 {strides = array<i32>} : memref<32x64xbf16, #tpu.memory_space<vmem>>, vector<32x64xbf16>,
    %c0_18 = arith.constant 0 : index
    %c0_19 = arith.constant 0 : index
    %31 = vector.load %arg6[%c0_18, %c0_19] : memref<64x128xbf16, #tpu.memory_space<vmem>>, vector<64x128xbf16>
    %cst_20 = arith.constant dense<0.000000e+00> : vector<32x128xf32>
    %32 = tpu.matmul %29, %31, %cst_20 {dimension_numbers = #tpu.dot_dimension_numbers<[1], [0], [0], [1], [0, 0, 1, 1], [], []>} : vector<32x64xbf16>, vector<64x128xbf16>, vector<32x128xf32> -> vector<32x128xf32>
    %c0_21 = arith.constant 0 : index
    %c0_22 = arith.constant 0 : index
    %33 = vector.load %arg7[%c0_21, %c0_22] : memref<1x128xf32, #tpu.memory_space<vmem>>, vector<1x128xf32>
    %34 = vector.broadcast %33 : vector<1x128xf32> to vector<32x128xf32>
    %35 = arith.addf %32, %34 : vector<32x128xf32>
    %36 = vector.extract_strided_slice %35 {offsets = [0, 0], sizes = [32, 64], strides = [1, 1]} : vector<32x128xf32> to vector<32x64xf32>
    %37 = arith.truncf %36 : vector<32x64xf32> to vector<32x64xbf16>
    %c0_23 = arith.constant 0 : index
    %c0_24 = arith.constant 0 : index
    %38 = vector.load %arg9[%c0_23, %c0_24] : memref<32x64xbf16, #tpu.memory_space<vmem>>, vector<32x64xbf16>
    tpu.vector_store %arg9[%c0_23, %c0_24], %37 {strides = array<i32>} : memref<32x64xbf16, #tpu.memory_space<vmem>>, vector<32x64xbf16>,
    %39 = vector.extract_strided_slice %35 {offsets = [0, 64], sizes = [32, 64], strides = [1, 1]} : vector<32x128xf32> to vector<32x64xf32>
    %c0_25 = arith.constant 0 : index
    %c0_26 = arith.constant 0 : index
    %40 = vector.load %arg10[%c0_25, %c0_26] : memref<32x64xf32, #tpu.memory_space<vmem>>, vector<32x64xf32>
    tpu.vector_store %arg10[%c0_25, %c0_26], %39 {strides = array<i32>} : memref<32x64xf32, #tpu.memory_space<vmem>>, vector<32x64xf32>,
    return
  }
  func.func @transform_0(%arg0: i32) -> (i32, i32) {
    %c0_i32 = arith.constant 0 : i32
    %c0_i32_0 = arith.constant 0 : i32
    return %arg0, %c0_i32 : i32, i32
  }
  func.func @transform_1(%arg0: i32) -> (i32, i32) {
    %c0_i32 = arith.constant 0 : i32
    %c0_i32_0 = arith.constant 0 : i32
    %c0_i32_1 = arith.constant 0 : i32
    return %c0_i32, %c0_i32_0 : i32, i32
  }
  func.func @transform_2(%arg0: i32) -> (i32, i32) {
    %c0_i32 = arith.constant 0 : i32
    %c0_i32_0 = arith.constant 0 : i32
    %c0_i32_1 = arith.constant 0 : i32
    return %c0_i32, %c0_i32_0 : i32, i32
  }
  func.func @transform_3(%arg0: i32) -> (i32, i32) {
    %c0_i32 = arith.constant 0 : i32
    %c0_i32_0 = arith.constant 0 : i32
    %c0_i32_1 = arith.constant 0 : i32
    return %c0_i32, %c0_i32_0 : i32, i32
  }
  func.func @transform_4(%arg0: i32) -> (i32, i32) {
    %c0_i32 = arith.constant 0 : i32
    %c0_i32_0 = arith.constant 0 : i32
    %c0_i32_1 = arith.constant 0 : i32
    return %c0_i32, %c0_i32_0 : i32, i32
  }
  func.func @transform_5(%arg0: i32) -> (i32, i32) {
    %c0_i32 = arith.constant 0 : i32
    %c0_i32_0 = arith.constant 0 : i32
    %c0_i32_1 = arith.constant 0 : i32
    return %c0_i32, %c0_i32_0 : i32, i32
  }
  func.func @transform_6(%arg0: i32) -> (i32, i32) {
    %c0_i32 = arith.constant 0 : i32
    %c0_i32_0 = arith.constant 0 : i32
    %c0_i32_1 = arith.constant 0 : i32
    return %c0_i32, %c0_i32_0 : i32, i32
  }
  func.func @transform_7(%arg0: i32) -> (i32, i32) {
    %c0_i32 = arith.constant 0 : i32
    %c0_i32_0 = arith.constant 0 : i32
    return %arg0, %c0_i32 : i32, i32
  }
  func.func @transform_8(%arg0: i32) -> (i32, i32) {
    %c0_i32 = arith.constant 0 : i32
    %c0_i32_0 = arith.constant 0 : i32
    return %arg0, %c0_i32 : i32, i32
  }
  func.func @transform_9(%arg0: i32) -> (i32, i32) {
    %c0_i32 = arith.constant 0 : i32
    %c0_i32_0 = arith.constant 0 : i32
    return %arg0, %c0_i32 : i32, i32
  }
}

module attributes {stable_mosaic.version = 11 : i64} {
  func.func @_gather_post_pre_kernel(%arg0: i32, %arg1: memref<320xi32, #tpu.memory_space<smem>>, %arg2: memref<32x64xbf16, #tpu.memory_space<vmem>>, %arg3: memref<32x64xbf16, #tpu.memory_space<vmem>>, %arg4: memref<64x64xf32, #tpu.memory_space<vmem>>, %arg5: memref<1x64xf32, #tpu.memory_space<vmem>>, %arg6: memref<1x64xf32, #tpu.memory_space<vmem>>, %arg7: memref<64x128xbf16, #tpu.memory_space<vmem>>, %arg8: memref<1x128xf32, #tpu.memory_space<vmem>>, %arg9: memref<32x64xbf16, #tpu.memory_space<vmem>>, %arg10: memref<32x64xbf16, #tpu.memory_space<vmem>>, %arg11: memref<32x64xf32, #tpu.memory_space<vmem>>, %arg12: memref<32x64xf32, #tpu.memory_space<vmem>>) attributes {dimension_semantics = [#tpu.dimension_semantics<parallel>], iteration_bounds = array<i64: 2>, scalar_prefetch = 1 : i64, scratch_operands = 1 : i64, tpu.core_type = #tpu.core_type<tc>, window_params = [{transform_indices = @transform_0, window_bounds = array<i64: 32, 64>}, {transform_indices = @transform_1, window_bounds = array<i64: 32, 64>}, {pipeline_mode = #tpu.pipeline_mode<synchronous>, transform_indices = @transform_2, window_bounds = array<i64: 64, 64>}, {pipeline_mode = #tpu.pipeline_mode<synchronous>, transform_indices = @transform_3, window_bounds = array<i64: 1, 64>}, {pipeline_mode = #tpu.pipeline_mode<synchronous>, transform_indices = @transform_4, window_bounds = array<i64: 1, 64>}, {pipeline_mode = #tpu.pipeline_mode<synchronous>, transform_indices = @transform_5, window_bounds = array<i64: 64, 128>}, {pipeline_mode = #tpu.pipeline_mode<synchronous>, transform_indices = @transform_6, window_bounds = array<i64: 1, 128>}, {transform_indices = @transform_7, window_bounds = array<i64: 32, 64>}, {transform_indices = @transform_8, window_bounds = array<i64: 32, 64>}, {transform_indices = @transform_9, window_bounds = array<i64: 32, 64>}]} {
    %c160_i32 = arith.constant 160 : i32
    %0 = arith.muli %arg0, %c160_i32 : i32
    %c0_i32 = arith.constant 0 : i32
    %c32_i32 = arith.constant 32 : i32
    %1 = arith.addi %c0_i32, %c32_i32 : i32
    %c1_i32 = arith.constant 1 : i32
    scf.for %arg13 = %c0_i32 to %1 step %c1_i32  : i32 {
      %c5_i32 = arith.constant 5 : i32
      %35 = arith.muli %arg13, %c5_i32 : i32
      %36 = arith.addi %0, %35 : i32
      %37 = arith.index_cast %36 : i32 to index
      %38 = memref.load %arg1[%37] : memref<320xi32, #tpu.memory_space<smem>>
      %39 = arith.index_cast %38 : i32 to index
      %c0_23 = arith.constant 0 : index
      %40 = vector.load %arg4[%39, %c0_23] : memref<64x64xf32, #tpu.memory_space<vmem>>, vector<1x64xf32>
      %c1_i32_24 = arith.constant 1 : i32
      %41 = arith.addi %36, %c1_i32_24 : i32
      %42 = arith.index_cast %41 : i32 to index
      %43 = memref.load %arg1[%42] : memref<320xi32, #tpu.memory_space<smem>>
      %44 = arith.index_cast %43 : i32 to index
      %c0_25 = arith.constant 0 : index
      %45 = vector.load %arg4[%44, %c0_25] : memref<64x64xf32, #tpu.memory_space<vmem>>, vector<1x64xf32>
      %46 = arith.maximumf %40, %45 : vector<1x64xf32>
      %c2_i32 = arith.constant 2 : i32
      %47 = arith.addi %36, %c2_i32 : i32
      %48 = arith.index_cast %47 : i32 to index
      %49 = memref.load %arg1[%48] : memref<320xi32, #tpu.memory_space<smem>>
      %50 = arith.index_cast %49 : i32 to index
      %c0_26 = arith.constant 0 : index
      %51 = vector.load %arg4[%50, %c0_26] : memref<64x64xf32, #tpu.memory_space<vmem>>, vector<1x64xf32>
      %52 = arith.maximumf %46, %51 : vector<1x64xf32>
      %c3_i32 = arith.constant 3 : i32
      %53 = arith.addi %36, %c3_i32 : i32
      %54 = arith.index_cast %53 : i32 to index
      %55 = memref.load %arg1[%54] : memref<320xi32, #tpu.memory_space<smem>>
      %56 = arith.index_cast %55 : i32 to index
      %c0_27 = arith.constant 0 : index
      %57 = vector.load %arg4[%56, %c0_27] : memref<64x64xf32, #tpu.memory_space<vmem>>, vector<1x64xf32>
      %58 = arith.maximumf %52, %57 : vector<1x64xf32>
      %c4_i32 = arith.constant 4 : i32
      %59 = arith.addi %36, %c4_i32 : i32
      %60 = arith.index_cast %59 : i32 to index
      %61 = memref.load %arg1[%60] : memref<320xi32, #tpu.memory_space<smem>>
      %62 = arith.index_cast %61 : i32 to index
      %c0_28 = arith.constant 0 : index
      %63 = vector.load %arg4[%62, %c0_28] : memref<64x64xf32, #tpu.memory_space<vmem>>, vector<1x64xf32>
      %64 = arith.maximumf %58, %63 : vector<1x64xf32>
      %65 = arith.index_cast %arg13 : i32 to index
      %c0_29 = arith.constant 0 : index
      %66 = vector.load %arg12[%65, %c0_29] : memref<32x64xf32, #tpu.memory_space<vmem>>, vector<1x64xf32>
      tpu.vector_store %arg12[%65, %c0_29], %64 {strides = array<i32>} : memref<32x64xf32, #tpu.memory_space<vmem>>, vector<1x64xf32>,
    }
    %c32_i32_0 = arith.constant 32 : i32
    %c0 = arith.constant 0 : index
    %c0_1 = arith.constant 0 : index
    %2 = vector.load %arg2[%c0, %c0_1] : memref<32x64xbf16, #tpu.memory_space<vmem>>, vector<32x64xbf16>
    %3 = arith.extf %2 : vector<32x64xbf16> to vector<32x64xf32>
    %c0_2 = arith.constant 0 : index
    %c0_3 = arith.constant 0 : index
    %4 = vector.load %arg12[%c0_2, %c0_3] : memref<32x64xf32, #tpu.memory_space<vmem>>, vector<32x64xf32>
    %5 = arith.addf %3, %4 : vector<32x64xf32>
    %cst = arith.constant 0.000000e+00 : f32
    %6 = vector.broadcast %cst : f32 to vector<32x64xf32>
    %7 = arith.cmpf ogt, %5, %6 : vector<32x64xf32>
    %cst_4 = arith.constant 0.000000e+00 : f32
    %8 = vector.broadcast %cst_4 : f32 to vector<32x64xf32>
    %9 = arith.minimumf %5, %8 : vector<32x64xf32>
    %10 = math.exp %9 : vector<32x64xf32>
    %cst_5 = arith.constant 1.000000e+00 : f32
    %11 = vector.broadcast %cst_5 : f32 to vector<32x64xf32>
    %12 = arith.subf %10, %11 : vector<32x64xf32>
    %13 = arith.select %7, %5, %12 : vector<32x64xi1>, vector<32x64xf32>
    %c0_6 = arith.constant 0 : index
    %c0_7 = arith.constant 0 : index
    %14 = vector.load %arg5[%c0_6, %c0_7] : memref<1x64xf32, #tpu.memory_space<vmem>>, vector<1x64xf32>
    %15 = vector.broadcast %14 : vector<1x64xf32> to vector<32x64xf32>
    %16 = arith.mulf %13, %15 : vector<32x64xf32>
    %c0_8 = arith.constant 0 : index
    %c0_9 = arith.constant 0 : index
    %17 = vector.load %arg6[%c0_8, %c0_9] : memref<1x64xf32, #tpu.memory_space<vmem>>, vector<1x64xf32>
    %18 = vector.broadcast %17 : vector<1x64xf32> to vector<32x64xf32>
    %19 = arith.addf %16, %18 : vector<32x64xf32>
    %c0_10 = arith.constant 0 : index
    %c0_11 = arith.constant 0 : index
    %20 = vector.load %arg3[%c0_10, %c0_11] : memref<32x64xbf16, #tpu.memory_space<vmem>>, vector<32x64xbf16>
    %21 = arith.extf %20 : vector<32x64xbf16> to vector<32x64xf32>
    %22 = arith.addf %19, %21 : vector<32x64xf32>
    %23 = arith.truncf %22 : vector<32x64xf32> to vector<32x64xbf16>
    %c0_12 = arith.constant 0 : index
    %c0_13 = arith.constant 0 : index
    %24 = vector.load %arg9[%c0_12, %c0_13] : memref<32x64xbf16, #tpu.memory_space<vmem>>, vector<32x64xbf16>
    tpu.vector_store %arg9[%c0_12, %c0_13], %23 {strides = array<i32>} : memref<32x64xbf16, #tpu.memory_space<vmem>>, vector<32x64xbf16>,
    %c0_14 = arith.constant 0 : index
    %c0_15 = arith.constant 0 : index
    %25 = vector.load %arg7[%c0_14, %c0_15] : memref<64x128xbf16, #tpu.memory_space<vmem>>, vector<64x128xbf16>
    %cst_16 = arith.constant dense<0.000000e+00> : vector<32x128xf32>
    %26 = tpu.matmul %23, %25, %cst_16 {dimension_numbers = #tpu.dot_dimension_numbers<[1], [0], [0], [1], [0, 0, 1, 1], [], []>} : vector<32x64xbf16>, vector<64x128xbf16>, vector<32x128xf32> -> vector<32x128xf32>
    %c0_17 = arith.constant 0 : index
    %c0_18 = arith.constant 0 : index
    %27 = vector.load %arg8[%c0_17, %c0_18] : memref<1x128xf32, #tpu.memory_space<vmem>>, vector<1x128xf32>
    %28 = vector.broadcast %27 : vector<1x128xf32> to vector<32x128xf32>
    %29 = arith.addf %26, %28 : vector<32x128xf32>
    %30 = vector.extract_strided_slice %29 {offsets = [0, 0], sizes = [32, 64], strides = [1, 1]} : vector<32x128xf32> to vector<32x64xf32>
    %31 = arith.truncf %30 : vector<32x64xf32> to vector<32x64xbf16>
    %c0_19 = arith.constant 0 : index
    %c0_20 = arith.constant 0 : index
    %32 = vector.load %arg10[%c0_19, %c0_20] : memref<32x64xbf16, #tpu.memory_space<vmem>>, vector<32x64xbf16>
    tpu.vector_store %arg10[%c0_19, %c0_20], %31 {strides = array<i32>} : memref<32x64xbf16, #tpu.memory_space<vmem>>, vector<32x64xbf16>,
    %33 = vector.extract_strided_slice %29 {offsets = [0, 64], sizes = [32, 64], strides = [1, 1]} : vector<32x128xf32> to vector<32x64xf32>
    %c0_21 = arith.constant 0 : index
    %c0_22 = arith.constant 0 : index
    %34 = vector.load %arg11[%c0_21, %c0_22] : memref<32x64xf32, #tpu.memory_space<vmem>>, vector<32x64xf32>
    tpu.vector_store %arg11[%c0_21, %c0_22], %33 {strides = array<i32>} : memref<32x64xf32, #tpu.memory_space<vmem>>, vector<32x64xf32>,
    return
  }
  func.func @transform_0(%arg0: i32, %arg1: memref<320xi32, #tpu.memory_space<smem>>) -> (i32, i32) {
    %c0_i32 = arith.constant 0 : i32
    %c0_i32_0 = arith.constant 0 : i32
    return %arg0, %c0_i32 : i32, i32
  }
  func.func @transform_1(%arg0: i32, %arg1: memref<320xi32, #tpu.memory_space<smem>>) -> (i32, i32) {
    %c0_i32 = arith.constant 0 : i32
    %c0_i32_0 = arith.constant 0 : i32
    return %arg0, %c0_i32 : i32, i32
  }
  func.func @transform_2(%arg0: i32, %arg1: memref<320xi32, #tpu.memory_space<smem>>) -> (i32, i32) {
    %c0_i32 = arith.constant 0 : i32
    %c0_i32_0 = arith.constant 0 : i32
    %c0_i32_1 = arith.constant 0 : i32
    return %c0_i32, %c0_i32_0 : i32, i32
  }
  func.func @transform_3(%arg0: i32, %arg1: memref<320xi32, #tpu.memory_space<smem>>) -> (i32, i32) {
    %c0_i32 = arith.constant 0 : i32
    %c0_i32_0 = arith.constant 0 : i32
    %c0_i32_1 = arith.constant 0 : i32
    return %c0_i32, %c0_i32_0 : i32, i32
  }
  func.func @transform_4(%arg0: i32, %arg1: memref<320xi32, #tpu.memory_space<smem>>) -> (i32, i32) {
    %c0_i32 = arith.constant 0 : i32
    %c0_i32_0 = arith.constant 0 : i32
    %c0_i32_1 = arith.constant 0 : i32
    return %c0_i32, %c0_i32_0 : i32, i32
  }
  func.func @transform_5(%arg0: i32, %arg1: memref<320xi32, #tpu.memory_space<smem>>) -> (i32, i32) {
    %c0_i32 = arith.constant 0 : i32
    %c0_i32_0 = arith.constant 0 : i32
    %c0_i32_1 = arith.constant 0 : i32
    return %c0_i32, %c0_i32_0 : i32, i32
  }
  func.func @transform_6(%arg0: i32, %arg1: memref<320xi32, #tpu.memory_space<smem>>) -> (i32, i32) {
    %c0_i32 = arith.constant 0 : i32
    %c0_i32_0 = arith.constant 0 : i32
    %c0_i32_1 = arith.constant 0 : i32
    return %c0_i32, %c0_i32_0 : i32, i32
  }
  func.func @transform_7(%arg0: i32, %arg1: memref<320xi32, #tpu.memory_space<smem>>) -> (i32, i32) {
    %c0_i32 = arith.constant 0 : i32
    %c0_i32_0 = arith.constant 0 : i32
    return %arg0, %c0_i32 : i32, i32
  }
  func.func @transform_8(%arg0: i32, %arg1: memref<320xi32, #tpu.memory_space<smem>>) -> (i32, i32) {
    %c0_i32 = arith.constant 0 : i32
    %c0_i32_0 = arith.constant 0 : i32
    return %arg0, %c0_i32 : i32, i32
  }
  func.func @transform_9(%arg0: i32, %arg1: memref<320xi32, #tpu.memory_space<smem>>) -> (i32, i32) {
    %c0_i32 = arith.constant 0 : i32
    %c0_i32_0 = arith.constant 0 : i32
    return %arg0, %c0_i32 : i32, i32
  }
}

module attributes {stable_mosaic.version = 11 : i64} {
  func.func @_gather_post_pre_kernel(%arg0: i32, %arg1: memref<1280xi32, #tpu.memory_space<smem>>, %arg2: memref<32x64xbf16, #tpu.memory_space<vmem>>, %arg3: memref<32x64xbf16, #tpu.memory_space<vmem>>, %arg4: memref<64x64xf32, #tpu.memory_space<vmem>>, %arg5: memref<1x64xf32, #tpu.memory_space<vmem>>, %arg6: memref<1x64xf32, #tpu.memory_space<vmem>>, %arg7: memref<64x128xbf16, #tpu.memory_space<vmem>>, %arg8: memref<1x128xf32, #tpu.memory_space<vmem>>, %arg9: memref<32x64xbf16, #tpu.memory_space<vmem>>, %arg10: memref<32x64xbf16, #tpu.memory_space<vmem>>, %arg11: memref<32x64xf32, #tpu.memory_space<vmem>>, %arg12: memref<32x64xf32, #tpu.memory_space<vmem>>) attributes {dimension_semantics = [#tpu.dimension_semantics<parallel>], iteration_bounds = array<i64: 2>, scalar_prefetch = 1 : i64, scratch_operands = 1 : i64, tpu.core_type = #tpu.core_type<tc>, window_params = [{transform_indices = @transform_0, window_bounds = array<i64: 32, 64>}, {transform_indices = @transform_1, window_bounds = array<i64: 32, 64>}, {pipeline_mode = #tpu.pipeline_mode<synchronous>, transform_indices = @transform_2, window_bounds = array<i64: 64, 64>}, {pipeline_mode = #tpu.pipeline_mode<synchronous>, transform_indices = @transform_3, window_bounds = array<i64: 1, 64>}, {pipeline_mode = #tpu.pipeline_mode<synchronous>, transform_indices = @transform_4, window_bounds = array<i64: 1, 64>}, {pipeline_mode = #tpu.pipeline_mode<synchronous>, transform_indices = @transform_5, window_bounds = array<i64: 64, 128>}, {pipeline_mode = #tpu.pipeline_mode<synchronous>, transform_indices = @transform_6, window_bounds = array<i64: 1, 128>}, {transform_indices = @transform_7, window_bounds = array<i64: 32, 64>}, {transform_indices = @transform_8, window_bounds = array<i64: 32, 64>}, {transform_indices = @transform_9, window_bounds = array<i64: 32, 64>}]} {
    %c640_i32 = arith.constant 640 : i32
    %0 = arith.muli %arg0, %c640_i32 : i32
    %c0_i32 = arith.constant 0 : i32
    %c32_i32 = arith.constant 32 : i32
    %1 = arith.addi %c0_i32, %c32_i32 : i32
    %c1_i32 = arith.constant 1 : i32
    scf.for %arg13 = %c0_i32 to %1 step %c1_i32  : i32 {
      %c20_i32 = arith.constant 20 : i32
      %35 = arith.muli %arg13, %c20_i32 : i32
      %36 = arith.addi %0, %35 : i32
      %37 = arith.index_cast %36 : i32 to index
      %38 = memref.load %arg1[%37] : memref<1280xi32, #tpu.memory_space<smem>>
      %39 = arith.index_cast %38 : i32 to index
      %c0_23 = arith.constant 0 : index
      %40 = vector.load %arg4[%39, %c0_23] : memref<64x64xf32, #tpu.memory_space<vmem>>, vector<1x64xf32>
      %c1_i32_24 = arith.constant 1 : i32
      %41 = arith.addi %36, %c1_i32_24 : i32
      %42 = arith.index_cast %41 : i32 to index
      %43 = memref.load %arg1[%42] : memref<1280xi32, #tpu.memory_space<smem>>
      %44 = arith.index_cast %43 : i32 to index
      %c0_25 = arith.constant 0 : index
      %45 = vector.load %arg4[%44, %c0_25] : memref<64x64xf32, #tpu.memory_space<vmem>>, vector<1x64xf32>
      %46 = arith.maximumf %40, %45 : vector<1x64xf32>
      %c2_i32 = arith.constant 2 : i32
      %47 = arith.addi %36, %c2_i32 : i32
      %48 = arith.index_cast %47 : i32 to index
      %49 = memref.load %arg1[%48] : memref<1280xi32, #tpu.memory_space<smem>>
      %50 = arith.index_cast %49 : i32 to index
      %c0_26 = arith.constant 0 : index
      %51 = vector.load %arg4[%50, %c0_26] : memref<64x64xf32, #tpu.memory_space<vmem>>, vector<1x64xf32>
      %52 = arith.maximumf %46, %51 : vector<1x64xf32>
      %c3_i32 = arith.constant 3 : i32
      %53 = arith.addi %36, %c3_i32 : i32
      %54 = arith.index_cast %53 : i32 to index
      %55 = memref.load %arg1[%54] : memref<1280xi32, #tpu.memory_space<smem>>
      %56 = arith.index_cast %55 : i32 to index
      %c0_27 = arith.constant 0 : index
      %57 = vector.load %arg4[%56, %c0_27] : memref<64x64xf32, #tpu.memory_space<vmem>>, vector<1x64xf32>
      %58 = arith.maximumf %52, %57 : vector<1x64xf32>
      %c4_i32 = arith.constant 4 : i32
      %59 = arith.addi %36, %c4_i32 : i32
      %60 = arith.index_cast %59 : i32 to index
      %61 = memref.load %arg1[%60] : memref<1280xi32, #tpu.memory_space<smem>>
      %62 = arith.index_cast %61 : i32 to index
      %c0_28 = arith.constant 0 : index
      %63 = vector.load %arg4[%62, %c0_28] : memref<64x64xf32, #tpu.memory_space<vmem>>, vector<1x64xf32>
      %64 = arith.maximumf %58, %63 : vector<1x64xf32>
      %c5_i32 = arith.constant 5 : i32
      %65 = arith.addi %36, %c5_i32 : i32
      %66 = arith.index_cast %65 : i32 to index
      %67 = memref.load %arg1[%66] : memref<1280xi32, #tpu.memory_space<smem>>
      %68 = arith.index_cast %67 : i32 to index
      %c0_29 = arith.constant 0 : index
      %69 = vector.load %arg4[%68, %c0_29] : memref<64x64xf32, #tpu.memory_space<vmem>>, vector<1x64xf32>
      %70 = arith.maximumf %64, %69 : vector<1x64xf32>
      %c6_i32 = arith.constant 6 : i32
      %71 = arith.addi %36, %c6_i32 : i32
      %72 = arith.index_cast %71 : i32 to index
      %73 = memref.load %arg1[%72] : memref<1280xi32, #tpu.memory_space<smem>>
      %74 = arith.index_cast %73 : i32 to index
      %c0_30 = arith.constant 0 : index
      %75 = vector.load %arg4[%74, %c0_30] : memref<64x64xf32, #tpu.memory_space<vmem>>, vector<1x64xf32>
      %76 = arith.maximumf %70, %75 : vector<1x64xf32>
      %c7_i32 = arith.constant 7 : i32
      %77 = arith.addi %36, %c7_i32 : i32
      %78 = arith.index_cast %77 : i32 to index
      %79 = memref.load %arg1[%78] : memref<1280xi32, #tpu.memory_space<smem>>
      %80 = arith.index_cast %79 : i32 to index
      %c0_31 = arith.constant 0 : index
      %81 = vector.load %arg4[%80, %c0_31] : memref<64x64xf32, #tpu.memory_space<vmem>>, vector<1x64xf32>
      %82 = arith.maximumf %76, %81 : vector<1x64xf32>
      %c8_i32 = arith.constant 8 : i32
      %83 = arith.addi %36, %c8_i32 : i32
      %84 = arith.index_cast %83 : i32 to index
      %85 = memref.load %arg1[%84] : memref<1280xi32, #tpu.memory_space<smem>>
      %86 = arith.index_cast %85 : i32 to index
      %c0_32 = arith.constant 0 : index
      %87 = vector.load %arg4[%86, %c0_32] : memref<64x64xf32, #tpu.memory_space<vmem>>, vector<1x64xf32>
      %88 = arith.maximumf %82, %87 : vector<1x64xf32>
      %c9_i32 = arith.constant 9 : i32
      %89 = arith.addi %36, %c9_i32 : i32
      %90 = arith.index_cast %89 : i32 to index
      %91 = memref.load %arg1[%90] : memref<1280xi32, #tpu.memory_space<smem>>
      %92 = arith.index_cast %91 : i32 to index
      %c0_33 = arith.constant 0 : index
      %93 = vector.load %arg4[%92, %c0_33] : memref<64x64xf32, #tpu.memory_space<vmem>>, vector<1x64xf32>
      %94 = arith.maximumf %88, %93 : vector<1x64xf32>
      %c10_i32 = arith.constant 10 : i32
      %95 = arith.addi %36, %c10_i32 : i32
      %96 = arith.index_cast %95 : i32 to index
      %97 = memref.load %arg1[%96] : memref<1280xi32, #tpu.memory_space<smem>>
      %98 = arith.index_cast %97 : i32 to index
      %c0_34 = arith.constant 0 : index
      %99 = vector.load %arg4[%98, %c0_34] : memref<64x64xf32, #tpu.memory_space<vmem>>, vector<1x64xf32>
      %100 = arith.maximumf %94, %99 : vector<1x64xf32>
      %c11_i32 = arith.constant 11 : i32
      %101 = arith.addi %36, %c11_i32 : i32
      %102 = arith.index_cast %101 : i32 to index
      %103 = memref.load %arg1[%102] : memref<1280xi32, #tpu.memory_space<smem>>
      %104 = arith.index_cast %103 : i32 to index
      %c0_35 = arith.constant 0 : index
      %105 = vector.load %arg4[%104, %c0_35] : memref<64x64xf32, #tpu.memory_space<vmem>>, vector<1x64xf32>
      %106 = arith.maximumf %100, %105 : vector<1x64xf32>
      %c12_i32 = arith.constant 12 : i32
      %107 = arith.addi %36, %c12_i32 : i32
      %108 = arith.index_cast %107 : i32 to index
      %109 = memref.load %arg1[%108] : memref<1280xi32, #tpu.memory_space<smem>>
      %110 = arith.index_cast %109 : i32 to index
      %c0_36 = arith.constant 0 : index
      %111 = vector.load %arg4[%110, %c0_36] : memref<64x64xf32, #tpu.memory_space<vmem>>, vector<1x64xf32>
      %112 = arith.maximumf %106, %111 : vector<1x64xf32>
      %c13_i32 = arith.constant 13 : i32
      %113 = arith.addi %36, %c13_i32 : i32
      %114 = arith.index_cast %113 : i32 to index
      %115 = memref.load %arg1[%114] : memref<1280xi32, #tpu.memory_space<smem>>
      %116 = arith.index_cast %115 : i32 to index
      %c0_37 = arith.constant 0 : index
      %117 = vector.load %arg4[%116, %c0_37] : memref<64x64xf32, #tpu.memory_space<vmem>>, vector<1x64xf32>
      %118 = arith.maximumf %112, %117 : vector<1x64xf32>
      %c14_i32 = arith.constant 14 : i32
      %119 = arith.addi %36, %c14_i32 : i32
      %120 = arith.index_cast %119 : i32 to index
      %121 = memref.load %arg1[%120] : memref<1280xi32, #tpu.memory_space<smem>>
      %122 = arith.index_cast %121 : i32 to index
      %c0_38 = arith.constant 0 : index
      %123 = vector.load %arg4[%122, %c0_38] : memref<64x64xf32, #tpu.memory_space<vmem>>, vector<1x64xf32>
      %124 = arith.maximumf %118, %123 : vector<1x64xf32>
      %c15_i32 = arith.constant 15 : i32
      %125 = arith.addi %36, %c15_i32 : i32
      %126 = arith.index_cast %125 : i32 to index
      %127 = memref.load %arg1[%126] : memref<1280xi32, #tpu.memory_space<smem>>
      %128 = arith.index_cast %127 : i32 to index
      %c0_39 = arith.constant 0 : index
      %129 = vector.load %arg4[%128, %c0_39] : memref<64x64xf32, #tpu.memory_space<vmem>>, vector<1x64xf32>
      %130 = arith.maximumf %124, %129 : vector<1x64xf32>
      %c16_i32 = arith.constant 16 : i32
      %131 = arith.addi %36, %c16_i32 : i32
      %132 = arith.index_cast %131 : i32 to index
      %133 = memref.load %arg1[%132] : memref<1280xi32, #tpu.memory_space<smem>>
      %134 = arith.index_cast %133 : i32 to index
      %c0_40 = arith.constant 0 : index
      %135 = vector.load %arg4[%134, %c0_40] : memref<64x64xf32, #tpu.memory_space<vmem>>, vector<1x64xf32>
      %136 = arith.maximumf %130, %135 : vector<1x64xf32>
      %c17_i32 = arith.constant 17 : i32
      %137 = arith.addi %36, %c17_i32 : i32
      %138 = arith.index_cast %137 : i32 to index
      %139 = memref.load %arg1[%138] : memref<1280xi32, #tpu.memory_space<smem>>
      %140 = arith.index_cast %139 : i32 to index
      %c0_41 = arith.constant 0 : index
      %141 = vector.load %arg4[%140, %c0_41] : memref<64x64xf32, #tpu.memory_space<vmem>>, vector<1x64xf32>
      %142 = arith.maximumf %136, %141 : vector<1x64xf32>
      %c18_i32 = arith.constant 18 : i32
      %143 = arith.addi %36, %c18_i32 : i32
      %144 = arith.index_cast %143 : i32 to index
      %145 = memref.load %arg1[%144] : memref<1280xi32, #tpu.memory_space<smem>>
      %146 = arith.index_cast %145 : i32 to index
      %c0_42 = arith.constant 0 : index
      %147 = vector.load %arg4[%146, %c0_42] : memref<64x64xf32, #tpu.memory_space<vmem>>, vector<1x64xf32>
      %148 = arith.maximumf %142, %147 : vector<1x64xf32>
      %c19_i32 = arith.constant 19 : i32
      %149 = arith.addi %36, %c19_i32 : i32
      %150 = arith.index_cast %149 : i32 to index
      %151 = memref.load %arg1[%150] : memref<1280xi32, #tpu.memory_space<smem>>
      %152 = arith.index_cast %151 : i32 to index
      %c0_43 = arith.constant 0 : index
      %153 = vector.load %arg4[%152, %c0_43] : memref<64x64xf32, #tpu.memory_space<vmem>>, vector<1x64xf32>
      %154 = arith.maximumf %148, %153 : vector<1x64xf32>
      %155 = arith.index_cast %arg13 : i32 to index
      %c0_44 = arith.constant 0 : index
      %156 = vector.load %arg12[%155, %c0_44] : memref<32x64xf32, #tpu.memory_space<vmem>>, vector<1x64xf32>
      tpu.vector_store %arg12[%155, %c0_44], %154 {strides = array<i32>} : memref<32x64xf32, #tpu.memory_space<vmem>>, vector<1x64xf32>,
    }
    %c32_i32_0 = arith.constant 32 : i32
    %c0 = arith.constant 0 : index
    %c0_1 = arith.constant 0 : index
    %2 = vector.load %arg2[%c0, %c0_1] : memref<32x64xbf16, #tpu.memory_space<vmem>>, vector<32x64xbf16>
    %3 = arith.extf %2 : vector<32x64xbf16> to vector<32x64xf32>
    %c0_2 = arith.constant 0 : index
    %c0_3 = arith.constant 0 : index
    %4 = vector.load %arg12[%c0_2, %c0_3] : memref<32x64xf32, #tpu.memory_space<vmem>>, vector<32x64xf32>
    %5 = arith.addf %3, %4 : vector<32x64xf32>
    %cst = arith.constant 0.000000e+00 : f32
    %6 = vector.broadcast %cst : f32 to vector<32x64xf32>
    %7 = arith.cmpf ogt, %5, %6 : vector<32x64xf32>
    %cst_4 = arith.constant 0.000000e+00 : f32
    %8 = vector.broadcast %cst_4 : f32 to vector<32x64xf32>
    %9 = arith.minimumf %5, %8 : vector<32x64xf32>
    %10 = math.exp %9 : vector<32x64xf32>
    %cst_5 = arith.constant 1.000000e+00 : f32
    %11 = vector.broadcast %cst_5 : f32 to vector<32x64xf32>
    %12 = arith.subf %10, %11 : vector<32x64xf32>
    %13 = arith.select %7, %5, %12 : vector<32x64xi1>, vector<32x64xf32>
    %c0_6 = arith.constant 0 : index
    %c0_7 = arith.constant 0 : index
    %14 = vector.load %arg5[%c0_6, %c0_7] : memref<1x64xf32, #tpu.memory_space<vmem>>, vector<1x64xf32>
    %15 = vector.broadcast %14 : vector<1x64xf32> to vector<32x64xf32>
    %16 = arith.mulf %13, %15 : vector<32x64xf32>
    %c0_8 = arith.constant 0 : index
    %c0_9 = arith.constant 0 : index
    %17 = vector.load %arg6[%c0_8, %c0_9] : memref<1x64xf32, #tpu.memory_space<vmem>>, vector<1x64xf32>
    %18 = vector.broadcast %17 : vector<1x64xf32> to vector<32x64xf32>
    %19 = arith.addf %16, %18 : vector<32x64xf32>
    %c0_10 = arith.constant 0 : index
    %c0_11 = arith.constant 0 : index
    %20 = vector.load %arg3[%c0_10, %c0_11] : memref<32x64xbf16, #tpu.memory_space<vmem>>, vector<32x64xbf16>
    %21 = arith.extf %20 : vector<32x64xbf16> to vector<32x64xf32>
    %22 = arith.addf %19, %21 : vector<32x64xf32>
    %23 = arith.truncf %22 : vector<32x64xf32> to vector<32x64xbf16>
    %c0_12 = arith.constant 0 : index
    %c0_13 = arith.constant 0 : index
    %24 = vector.load %arg9[%c0_12, %c0_13] : memref<32x64xbf16, #tpu.memory_space<vmem>>, vector<32x64xbf16>
    tpu.vector_store %arg9[%c0_12, %c0_13], %23 {strides = array<i32>} : memref<32x64xbf16, #tpu.memory_space<vmem>>, vector<32x64xbf16>,
    %c0_14 = arith.constant 0 : index
    %c0_15 = arith.constant 0 : index
    %25 = vector.load %arg7[%c0_14, %c0_15] : memref<64x128xbf16, #tpu.memory_space<vmem>>, vector<64x128xbf16>
    %cst_16 = arith.constant dense<0.000000e+00> : vector<32x128xf32>
    %26 = tpu.matmul %23, %25, %cst_16 {dimension_numbers = #tpu.dot_dimension_numbers<[1], [0], [0], [1], [0, 0, 1, 1], [], []>} : vector<32x64xbf16>, vector<64x128xbf16>, vector<32x128xf32> -> vector<32x128xf32>
    %c0_17 = arith.constant 0 : index
    %c0_18 = arith.constant 0 : index
    %27 = vector.load %arg8[%c0_17, %c0_18] : memref<1x128xf32, #tpu.memory_space<vmem>>, vector<1x128xf32>
    %28 = vector.broadcast %27 : vector<1x128xf32> to vector<32x128xf32>
    %29 = arith.addf %26, %28 : vector<32x128xf32>
    %30 = vector.extract_strided_slice %29 {offsets = [0, 0], sizes = [32, 64], strides = [1, 1]} : vector<32x128xf32> to vector<32x64xf32>
    %31 = arith.truncf %30 : vector<32x64xf32> to vector<32x64xbf16>
    %c0_19 = arith.constant 0 : index
    %c0_20 = arith.constant 0 : index
    %32 = vector.load %arg10[%c0_19, %c0_20] : memref<32x64xbf16, #tpu.memory_space<vmem>>, vector<32x64xbf16>
    tpu.vector_store %arg10[%c0_19, %c0_20], %31 {strides = array<i32>} : memref<32x64xbf16, #tpu.memory_space<vmem>>, vector<32x64xbf16>,
    %33 = vector.extract_strided_slice %29 {offsets = [0, 64], sizes = [32, 64], strides = [1, 1]} : vector<32x128xf32> to vector<32x64xf32>
    %c0_21 = arith.constant 0 : index
    %c0_22 = arith.constant 0 : index
    %34 = vector.load %arg11[%c0_21, %c0_22] : memref<32x64xf32, #tpu.memory_space<vmem>>, vector<32x64xf32>
    tpu.vector_store %arg11[%c0_21, %c0_22], %33 {strides = array<i32>} : memref<32x64xf32, #tpu.memory_space<vmem>>, vector<32x64xf32>,
    return
  }
  func.func @transform_0(%arg0: i32, %arg1: memref<1280xi32, #tpu.memory_space<smem>>) -> (i32, i32) {
    %c0_i32 = arith.constant 0 : i32
    %c0_i32_0 = arith.constant 0 : i32
    return %arg0, %c0_i32 : i32, i32
  }
  func.func @transform_1(%arg0: i32, %arg1: memref<1280xi32, #tpu.memory_space<smem>>) -> (i32, i32) {
    %c0_i32 = arith.constant 0 : i32
    %c0_i32_0 = arith.constant 0 : i32
    return %arg0, %c0_i32 : i32, i32
  }
  func.func @transform_2(%arg0: i32, %arg1: memref<1280xi32, #tpu.memory_space<smem>>) -> (i32, i32) {
    %c0_i32 = arith.constant 0 : i32
    %c0_i32_0 = arith.constant 0 : i32
    %c0_i32_1 = arith.constant 0 : i32
    return %c0_i32, %c0_i32_0 : i32, i32
  }
  func.func @transform_3(%arg0: i32, %arg1: memref<1280xi32, #tpu.memory_space<smem>>) -> (i32, i32) {
    %c0_i32 = arith.constant 0 : i32
    %c0_i32_0 = arith.constant 0 : i32
    %c0_i32_1 = arith.constant 0 : i32
    return %c0_i32, %c0_i32_0 : i32, i32
  }
  func.func @transform_4(%arg0: i32, %arg1: memref<1280xi32, #tpu.memory_space<smem>>) -> (i32, i32) {
    %c0_i32 = arith.constant 0 : i32
    %c0_i32_0 = arith.constant 0 : i32
    %c0_i32_1 = arith.constant 0 : i32
    return %c0_i32, %c0_i32_0 : i32, i32
  }
  func.func @transform_5(%arg0: i32, %arg1: memref<1280xi32, #tpu.memory_space<smem>>) -> (i32, i32) {
    %c0_i32 = arith.constant 0 : i32
    %c0_i32_0 = arith.constant 0 : i32
    %c0_i32_1 = arith.constant 0 : i32
    return %c0_i32, %c0_i32_0 : i32, i32
  }
  func.func @transform_6(%arg0: i32, %arg1: memref<1280xi32, #tpu.memory_space<smem>>) -> (i32, i32) {
    %c0_i32 = arith.constant 0 : i32
    %c0_i32_0 = arith.constant 0 : i32
    %c0_i32_1 = arith.constant 0 : i32
    return %c0_i32, %c0_i32_0 : i32, i32
  }
  func.func @transform_7(%arg0: i32, %arg1: memref<1280xi32, #tpu.memory_space<smem>>) -> (i32, i32) {
    %c0_i32 = arith.constant 0 : i32
    %c0_i32_0 = arith.constant 0 : i32
    return %arg0, %c0_i32 : i32, i32
  }
  func.func @transform_8(%arg0: i32, %arg1: memref<1280xi32, #tpu.memory_space<smem>>) -> (i32, i32) {
    %c0_i32 = arith.constant 0 : i32
    %c0_i32_0 = arith.constant 0 : i32
    return %arg0, %c0_i32 : i32, i32
  }
  func.func @transform_9(%arg0: i32, %arg1: memref<1280xi32, #tpu.memory_space<smem>>) -> (i32, i32) {
    %c0_i32 = arith.constant 0 : i32
    %c0_i32_0 = arith.constant 0 : i32
    return %arg0, %c0_i32 : i32, i32
  }
}

module attributes {stable_mosaic.version = 11 : i64} {
  func.func @_gather_post_head_kernel(%arg0: i32, %arg1: memref<1280xi32, #tpu.memory_space<smem>>, %arg2: memref<32x64xbf16, #tpu.memory_space<vmem>>, %arg3: memref<32x64xbf16, #tpu.memory_space<vmem>>, %arg4: memref<64x64xf32, #tpu.memory_space<vmem>>, %arg5: memref<1x64xf32, #tpu.memory_space<vmem>>, %arg6: memref<1x64xf32, #tpu.memory_space<vmem>>, %arg7: memref<64x64xbf16, #tpu.memory_space<vmem>>, %arg8: memref<1x64xf32, #tpu.memory_space<vmem>>, %arg9: memref<64x32xbf16, #tpu.memory_space<vmem>>, %arg10: memref<1x32xf32, #tpu.memory_space<vmem>>, %arg11: memref<32x128xbf16, #tpu.memory_space<vmem>>, %arg12: memref<1x128xf32, #tpu.memory_space<vmem>>, %arg13: memref<32x128xf32, #tpu.memory_space<vmem>>, %arg14: memref<32x64xf32, #tpu.memory_space<vmem>>) attributes {dimension_semantics = [#tpu.dimension_semantics<parallel>], iteration_bounds = array<i64: 2>, scalar_prefetch = 1 : i64, scratch_operands = 1 : i64, tpu.core_type = #tpu.core_type<tc>, window_params = [{transform_indices = @transform_0, window_bounds = array<i64: 32, 64>}, {transform_indices = @transform_1, window_bounds = array<i64: 32, 64>}, {pipeline_mode = #tpu.pipeline_mode<synchronous>, transform_indices = @transform_2, window_bounds = array<i64: 64, 64>}, {pipeline_mode = #tpu.pipeline_mode<synchronous>, transform_indices = @transform_3, window_bounds = array<i64: 1, 64>}, {pipeline_mode = #tpu.pipeline_mode<synchronous>, transform_indices = @transform_4, window_bounds = array<i64: 1, 64>}, {pipeline_mode = #tpu.pipeline_mode<synchronous>, transform_indices = @transform_5, window_bounds = array<i64: 64, 64>}, {pipeline_mode = #tpu.pipeline_mode<synchronous>, transform_indices = @transform_6, window_bounds = array<i64: 1, 64>}, {pipeline_mode = #tpu.pipeline_mode<synchronous>, transform_indices = @transform_7, window_bounds = array<i64: 64, 32>}, {pipeline_mode = #tpu.pipeline_mode<synchronous>, transform_indices = @transform_8, window_bounds = array<i64: 1, 32>}, {pipeline_mode = #tpu.pipeline_mode<synchronous>, transform_indices = @transform_9, window_bounds = array<i64: 32, 128>}, {pipeline_mode = #tpu.pipeline_mode<synchronous>, transform_indices = @transform_10, window_bounds = array<i64: 1, 128>}, {transform_indices = @transform_11, window_bounds = array<i64: 32, 128>}]} {
    %c640_i32 = arith.constant 640 : i32
    %0 = arith.muli %arg0, %c640_i32 : i32
    %c0_i32 = arith.constant 0 : i32
    %c32_i32 = arith.constant 32 : i32
    %1 = arith.addi %c0_i32, %c32_i32 : i32
    %c1_i32 = arith.constant 1 : i32
    scf.for %arg15 = %c0_i32 to %1 step %c1_i32  : i32 {
      %c20_i32 = arith.constant 20 : i32
      %58 = arith.muli %arg15, %c20_i32 : i32
      %59 = arith.addi %0, %58 : i32
      %60 = arith.index_cast %59 : i32 to index
      %61 = memref.load %arg1[%60] : memref<1280xi32, #tpu.memory_space<smem>>
      %62 = arith.index_cast %61 : i32 to index
      %c0_35 = arith.constant 0 : index
      %63 = vector.load %arg4[%62, %c0_35] : memref<64x64xf32, #tpu.memory_space<vmem>>, vector<1x64xf32>
      %c1_i32_36 = arith.constant 1 : i32
      %64 = arith.addi %59, %c1_i32_36 : i32
      %65 = arith.index_cast %64 : i32 to index
      %66 = memref.load %arg1[%65] : memref<1280xi32, #tpu.memory_space<smem>>
      %67 = arith.index_cast %66 : i32 to index
      %c0_37 = arith.constant 0 : index
      %68 = vector.load %arg4[%67, %c0_37] : memref<64x64xf32, #tpu.memory_space<vmem>>, vector<1x64xf32>
      %69 = arith.maximumf %63, %68 : vector<1x64xf32>
      %c2_i32 = arith.constant 2 : i32
      %70 = arith.addi %59, %c2_i32 : i32
      %71 = arith.index_cast %70 : i32 to index
      %72 = memref.load %arg1[%71] : memref<1280xi32, #tpu.memory_space<smem>>
      %73 = arith.index_cast %72 : i32 to index
      %c0_38 = arith.constant 0 : index
      %74 = vector.load %arg4[%73, %c0_38] : memref<64x64xf32, #tpu.memory_space<vmem>>, vector<1x64xf32>
      %75 = arith.maximumf %69, %74 : vector<1x64xf32>
      %c3_i32 = arith.constant 3 : i32
      %76 = arith.addi %59, %c3_i32 : i32
      %77 = arith.index_cast %76 : i32 to index
      %78 = memref.load %arg1[%77] : memref<1280xi32, #tpu.memory_space<smem>>
      %79 = arith.index_cast %78 : i32 to index
      %c0_39 = arith.constant 0 : index
      %80 = vector.load %arg4[%79, %c0_39] : memref<64x64xf32, #tpu.memory_space<vmem>>, vector<1x64xf32>
      %81 = arith.maximumf %75, %80 : vector<1x64xf32>
      %c4_i32 = arith.constant 4 : i32
      %82 = arith.addi %59, %c4_i32 : i32
      %83 = arith.index_cast %82 : i32 to index
      %84 = memref.load %arg1[%83] : memref<1280xi32, #tpu.memory_space<smem>>
      %85 = arith.index_cast %84 : i32 to index
      %c0_40 = arith.constant 0 : index
      %86 = vector.load %arg4[%85, %c0_40] : memref<64x64xf32, #tpu.memory_space<vmem>>, vector<1x64xf32>
      %87 = arith.maximumf %81, %86 : vector<1x64xf32>
      %c5_i32 = arith.constant 5 : i32
      %88 = arith.addi %59, %c5_i32 : i32
      %89 = arith.index_cast %88 : i32 to index
      %90 = memref.load %arg1[%89] : memref<1280xi32, #tpu.memory_space<smem>>
      %91 = arith.index_cast %90 : i32 to index
      %c0_41 = arith.constant 0 : index
      %92 = vector.load %arg4[%91, %c0_41] : memref<64x64xf32, #tpu.memory_space<vmem>>, vector<1x64xf32>
      %93 = arith.maximumf %87, %92 : vector<1x64xf32>
      %c6_i32 = arith.constant 6 : i32
      %94 = arith.addi %59, %c6_i32 : i32
      %95 = arith.index_cast %94 : i32 to index
      %96 = memref.load %arg1[%95] : memref<1280xi32, #tpu.memory_space<smem>>
      %97 = arith.index_cast %96 : i32 to index
      %c0_42 = arith.constant 0 : index
      %98 = vector.load %arg4[%97, %c0_42] : memref<64x64xf32, #tpu.memory_space<vmem>>, vector<1x64xf32>
      %99 = arith.maximumf %93, %98 : vector<1x64xf32>
      %c7_i32 = arith.constant 7 : i32
      %100 = arith.addi %59, %c7_i32 : i32
      %101 = arith.index_cast %100 : i32 to index
      %102 = memref.load %arg1[%101] : memref<1280xi32, #tpu.memory_space<smem>>
      %103 = arith.index_cast %102 : i32 to index
      %c0_43 = arith.constant 0 : index
      %104 = vector.load %arg4[%103, %c0_43] : memref<64x64xf32, #tpu.memory_space<vmem>>, vector<1x64xf32>
      %105 = arith.maximumf %99, %104 : vector<1x64xf32>
      %c8_i32 = arith.constant 8 : i32
      %106 = arith.addi %59, %c8_i32 : i32
      %107 = arith.index_cast %106 : i32 to index
      %108 = memref.load %arg1[%107] : memref<1280xi32, #tpu.memory_space<smem>>
      %109 = arith.index_cast %108 : i32 to index
      %c0_44 = arith.constant 0 : index
      %110 = vector.load %arg4[%109, %c0_44] : memref<64x64xf32, #tpu.memory_space<vmem>>, vector<1x64xf32>
      %111 = arith.maximumf %105, %110 : vector<1x64xf32>
      %c9_i32 = arith.constant 9 : i32
      %112 = arith.addi %59, %c9_i32 : i32
      %113 = arith.index_cast %112 : i32 to index
      %114 = memref.load %arg1[%113] : memref<1280xi32, #tpu.memory_space<smem>>
      %115 = arith.index_cast %114 : i32 to index
      %c0_45 = arith.constant 0 : index
      %116 = vector.load %arg4[%115, %c0_45] : memref<64x64xf32, #tpu.memory_space<vmem>>, vector<1x64xf32>
      %117 = arith.maximumf %111, %116 : vector<1x64xf32>
      %c10_i32 = arith.constant 10 : i32
      %118 = arith.addi %59, %c10_i32 : i32
      %119 = arith.index_cast %118 : i32 to index
      %120 = memref.load %arg1[%119] : memref<1280xi32, #tpu.memory_space<smem>>
      %121 = arith.index_cast %120 : i32 to index
      %c0_46 = arith.constant 0 : index
      %122 = vector.load %arg4[%121, %c0_46] : memref<64x64xf32, #tpu.memory_space<vmem>>, vector<1x64xf32>
      %123 = arith.maximumf %117, %122 : vector<1x64xf32>
      %c11_i32 = arith.constant 11 : i32
      %124 = arith.addi %59, %c11_i32 : i32
      %125 = arith.index_cast %124 : i32 to index
      %126 = memref.load %arg1[%125] : memref<1280xi32, #tpu.memory_space<smem>>
      %127 = arith.index_cast %126 : i32 to index
      %c0_47 = arith.constant 0 : index
      %128 = vector.load %arg4[%127, %c0_47] : memref<64x64xf32, #tpu.memory_space<vmem>>, vector<1x64xf32>
      %129 = arith.maximumf %123, %128 : vector<1x64xf32>
      %c12_i32 = arith.constant 12 : i32
      %130 = arith.addi %59, %c12_i32 : i32
      %131 = arith.index_cast %130 : i32 to index
      %132 = memref.load %arg1[%131] : memref<1280xi32, #tpu.memory_space<smem>>
      %133 = arith.index_cast %132 : i32 to index
      %c0_48 = arith.constant 0 : index
      %134 = vector.load %arg4[%133, %c0_48] : memref<64x64xf32, #tpu.memory_space<vmem>>, vector<1x64xf32>
      %135 = arith.maximumf %129, %134 : vector<1x64xf32>
      %c13_i32 = arith.constant 13 : i32
      %136 = arith.addi %59, %c13_i32 : i32
      %137 = arith.index_cast %136 : i32 to index
      %138 = memref.load %arg1[%137] : memref<1280xi32, #tpu.memory_space<smem>>
      %139 = arith.index_cast %138 : i32 to index
      %c0_49 = arith.constant 0 : index
      %140 = vector.load %arg4[%139, %c0_49] : memref<64x64xf32, #tpu.memory_space<vmem>>, vector<1x64xf32>
      %141 = arith.maximumf %135, %140 : vector<1x64xf32>
      %c14_i32 = arith.constant 14 : i32
      %142 = arith.addi %59, %c14_i32 : i32
      %143 = arith.index_cast %142 : i32 to index
      %144 = memref.load %arg1[%143] : memref<1280xi32, #tpu.memory_space<smem>>
      %145 = arith.index_cast %144 : i32 to index
      %c0_50 = arith.constant 0 : index
      %146 = vector.load %arg4[%145, %c0_50] : memref<64x64xf32, #tpu.memory_space<vmem>>, vector<1x64xf32>
      %147 = arith.maximumf %141, %146 : vector<1x64xf32>
      %c15_i32 = arith.constant 15 : i32
      %148 = arith.addi %59, %c15_i32 : i32
      %149 = arith.index_cast %148 : i32 to index
      %150 = memref.load %arg1[%149] : memref<1280xi32, #tpu.memory_space<smem>>
      %151 = arith.index_cast %150 : i32 to index
      %c0_51 = arith.constant 0 : index
      %152 = vector.load %arg4[%151, %c0_51] : memref<64x64xf32, #tpu.memory_space<vmem>>, vector<1x64xf32>
      %153 = arith.maximumf %147, %152 : vector<1x64xf32>
      %c16_i32 = arith.constant 16 : i32
      %154 = arith.addi %59, %c16_i32 : i32
      %155 = arith.index_cast %154 : i32 to index
      %156 = memref.load %arg1[%155] : memref<1280xi32, #tpu.memory_space<smem>>
      %157 = arith.index_cast %156 : i32 to index
      %c0_52 = arith.constant 0 : index
      %158 = vector.load %arg4[%157, %c0_52] : memref<64x64xf32, #tpu.memory_space<vmem>>, vector<1x64xf32>
      %159 = arith.maximumf %153, %158 : vector<1x64xf32>
      %c17_i32 = arith.constant 17 : i32
      %160 = arith.addi %59, %c17_i32 : i32
      %161 = arith.index_cast %160 : i32 to index
      %162 = memref.load %arg1[%161] : memref<1280xi32, #tpu.memory_space<smem>>
      %163 = arith.index_cast %162 : i32 to index
      %c0_53 = arith.constant 0 : index
      %164 = vector.load %arg4[%163, %c0_53] : memref<64x64xf32, #tpu.memory_space<vmem>>, vector<1x64xf32>
      %165 = arith.maximumf %159, %164 : vector<1x64xf32>
      %c18_i32 = arith.constant 18 : i32
      %166 = arith.addi %59, %c18_i32 : i32
      %167 = arith.index_cast %166 : i32 to index
      %168 = memref.load %arg1[%167] : memref<1280xi32, #tpu.memory_space<smem>>
      %169 = arith.index_cast %168 : i32 to index
      %c0_54 = arith.constant 0 : index
      %170 = vector.load %arg4[%169, %c0_54] : memref<64x64xf32, #tpu.memory_space<vmem>>, vector<1x64xf32>
      %171 = arith.maximumf %165, %170 : vector<1x64xf32>
      %c19_i32 = arith.constant 19 : i32
      %172 = arith.addi %59, %c19_i32 : i32
      %173 = arith.index_cast %172 : i32 to index
      %174 = memref.load %arg1[%173] : memref<1280xi32, #tpu.memory_space<smem>>
      %175 = arith.index_cast %174 : i32 to index
      %c0_55 = arith.constant 0 : index
      %176 = vector.load %arg4[%175, %c0_55] : memref<64x64xf32, #tpu.memory_space<vmem>>, vector<1x64xf32>
      %177 = arith.maximumf %171, %176 : vector<1x64xf32>
      %178 = arith.index_cast %arg15 : i32 to index
      %c0_56 = arith.constant 0 : index
      %179 = vector.load %arg14[%178, %c0_56] : memref<32x64xf32, #tpu.memory_space<vmem>>, vector<1x64xf32>
      tpu.vector_store %arg14[%178, %c0_56], %177 {strides = array<i32>} : memref<32x64xf32, #tpu.memory_space<vmem>>, vector<1x64xf32>,
    }
    %c32_i32_0 = arith.constant 32 : i32
    %c0 = arith.constant 0 : index
    %c0_1 = arith.constant 0 : index
    %2 = vector.load %arg2[%c0, %c0_1] : memref<32x64xbf16, #tpu.memory_space<vmem>>, vector<32x64xbf16>
    %3 = arith.extf %2 : vector<32x64xbf16> to vector<32x64xf32>
    %c0_2 = arith.constant 0 : index
    %c0_3 = arith.constant 0 : index
    %4 = vector.load %arg14[%c0_2, %c0_3] : memref<32x64xf32, #tpu.memory_space<vmem>>, vector<32x64xf32>
    %5 = arith.addf %3, %4 : vector<32x64xf32>
    %cst = arith.constant 0.000000e+00 : f32
    %6 = vector.broadcast %cst : f32 to vector<32x64xf32>
    %7 = arith.cmpf ogt, %5, %6 : vector<32x64xf32>
    %cst_4 = arith.constant 0.000000e+00 : f32
    %8 = vector.broadcast %cst_4 : f32 to vector<32x64xf32>
    %9 = arith.minimumf %5, %8 : vector<32x64xf32>
    %10 = math.exp %9 : vector<32x64xf32>
    %cst_5 = arith.constant 1.000000e+00 : f32
    %11 = vector.broadcast %cst_5 : f32 to vector<32x64xf32>
    %12 = arith.subf %10, %11 : vector<32x64xf32>
    %13 = arith.select %7, %5, %12 : vector<32x64xi1>, vector<32x64xf32>
    %c0_6 = arith.constant 0 : index
    %c0_7 = arith.constant 0 : index
    %14 = vector.load %arg5[%c0_6, %c0_7] : memref<1x64xf32, #tpu.memory_space<vmem>>, vector<1x64xf32>
    %15 = vector.broadcast %14 : vector<1x64xf32> to vector<32x64xf32>
    %16 = arith.mulf %13, %15 : vector<32x64xf32>
    %c0_8 = arith.constant 0 : index
    %c0_9 = arith.constant 0 : index
    %17 = vector.load %arg6[%c0_8, %c0_9] : memref<1x64xf32, #tpu.memory_space<vmem>>, vector<1x64xf32>
    %18 = vector.broadcast %17 : vector<1x64xf32> to vector<32x64xf32>
    %19 = arith.addf %16, %18 : vector<32x64xf32>
    %c0_10 = arith.constant 0 : index
    %c0_11 = arith.constant 0 : index
    %20 = vector.load %arg3[%c0_10, %c0_11] : memref<32x64xbf16, #tpu.memory_space<vmem>>, vector<32x64xbf16>
    %21 = arith.extf %20 : vector<32x64xbf16> to vector<32x64xf32>
    %22 = arith.addf %19, %21 : vector<32x64xf32>
    %23 = arith.truncf %22 : vector<32x64xf32> to vector<32x64xbf16>
    %c0_12 = arith.constant 0 : index
    %c0_13 = arith.constant 0 : index
    %24 = vector.load %arg7[%c0_12, %c0_13] : memref<64x64xbf16, #tpu.memory_space<vmem>>, vector<64x64xbf16>
    %cst_14 = arith.constant dense<0.000000e+00> : vector<32x64xf32>
    %25 = tpu.matmul %23, %24, %cst_14 {dimension_numbers = #tpu.dot_dimension_numbers<[1], [0], [0], [1], [0, 0, 1, 1], [], []>} : vector<32x64xbf16>, vector<64x64xbf16>, vector<32x64xf32> -> vector<32x64xf32>
    %c0_15 = arith.constant 0 : index
    %c0_16 = arith.constant 0 : index
    %26 = vector.load %arg8[%c0_15, %c0_16] : memref<1x64xf32, #tpu.memory_space<vmem>>, vector<1x64xf32>
    %27 = vector.broadcast %26 : vector<1x64xf32> to vector<32x64xf32>
    %28 = arith.addf %25, %27 : vector<32x64xf32>
    %cst_17 = arith.constant 0.000000e+00 : f32
    %29 = vector.broadcast %cst_17 : f32 to vector<32x64xf32>
    %30 = arith.cmpf ogt, %28, %29 : vector<32x64xf32>
    %cst_18 = arith.constant 0.000000e+00 : f32
    %31 = vector.broadcast %cst_18 : f32 to vector<32x64xf32>
    %32 = arith.minimumf %28, %31 : vector<32x64xf32>
    %33 = math.exp %32 : vector<32x64xf32>
    %cst_19 = arith.constant 1.000000e+00 : f32
    %34 = vector.broadcast %cst_19 : f32 to vector<32x64xf32>
    %35 = arith.subf %33, %34 : vector<32x64xf32>
    %36 = arith.select %30, %28, %35 : vector<32x64xi1>, vector<32x64xf32>
    %37 = arith.truncf %36 : vector<32x64xf32> to vector<32x64xbf16>
    %c0_20 = arith.constant 0 : index
    %c0_21 = arith.constant 0 : index
    %38 = vector.load %arg9[%c0_20, %c0_21] : memref<64x32xbf16, #tpu.memory_space<vmem>>, vector<64x32xbf16>
    %cst_22 = arith.constant dense<0.000000e+00> : vector<32x32xf32>
    %39 = tpu.matmul %37, %38, %cst_22 {dimension_numbers = #tpu.dot_dimension_numbers<[1], [0], [0], [1], [0, 0, 1, 1], [], []>} : vector<32x64xbf16>, vector<64x32xbf16>, vector<32x32xf32> -> vector<32x32xf32>
    %c0_23 = arith.constant 0 : index
    %c0_24 = arith.constant 0 : index
    %40 = vector.load %arg10[%c0_23, %c0_24] : memref<1x32xf32, #tpu.memory_space<vmem>>, vector<1x32xf32>
    %41 = vector.broadcast %40 : vector<1x32xf32> to vector<32x32xf32>
    %42 = arith.addf %39, %41 : vector<32x32xf32>
    %cst_25 = arith.constant 0.000000e+00 : f32
    %43 = vector.broadcast %cst_25 : f32 to vector<32x32xf32>
    %44 = arith.cmpf ogt, %42, %43 : vector<32x32xf32>
    %cst_26 = arith.constant 0.000000e+00 : f32
    %45 = vector.broadcast %cst_26 : f32 to vector<32x32xf32>
    %46 = arith.minimumf %42, %45 : vector<32x32xf32>
    %47 = math.exp %46 : vector<32x32xf32>
    %cst_27 = arith.constant 1.000000e+00 : f32
    %48 = vector.broadcast %cst_27 : f32 to vector<32x32xf32>
    %49 = arith.subf %47, %48 : vector<32x32xf32>
    %50 = arith.select %44, %42, %49 : vector<32x32xi1>, vector<32x32xf32>
    %51 = arith.truncf %50 : vector<32x32xf32> to vector<32x32xbf16>
    %c0_28 = arith.constant 0 : index
    %c0_29 = arith.constant 0 : index
    %52 = vector.load %arg11[%c0_28, %c0_29] : memref<32x128xbf16, #tpu.memory_space<vmem>>, vector<32x128xbf16>
    %cst_30 = arith.constant dense<0.000000e+00> : vector<32x128xf32>
    %53 = tpu.matmul %51, %52, %cst_30 {dimension_numbers = #tpu.dot_dimension_numbers<[1], [0], [0], [1], [0, 0, 1, 1], [], []>} : vector<32x32xbf16>, vector<32x128xbf16>, vector<32x128xf32> -> vector<32x128xf32>
    %c0_31 = arith.constant 0 : index
    %c0_32 = arith.constant 0 : index
    %54 = vector.load %arg12[%c0_31, %c0_32] : memref<1x128xf32, #tpu.memory_space<vmem>>, vector<1x128xf32>
    %55 = vector.broadcast %54 : vector<1x128xf32> to vector<32x128xf32>
    %56 = arith.addf %53, %55 : vector<32x128xf32>
    %c0_33 = arith.constant 0 : index
    %c0_34 = arith.constant 0 : index
    %57 = vector.load %arg13[%c0_33, %c0_34] : memref<32x128xf32, #tpu.memory_space<vmem>>, vector<32x128xf32>
    tpu.vector_store %arg13[%c0_33, %c0_34], %56 {strides = array<i32>} : memref<32x128xf32, #tpu.memory_space<vmem>>, vector<32x128xf32>,
    return
  }
  func.func @transform_0(%arg0: i32, %arg1: memref<1280xi32, #tpu.memory_space<smem>>) -> (i32, i32) {
    %c0_i32 = arith.constant 0 : i32
    %c0_i32_0 = arith.constant 0 : i32
    return %arg0, %c0_i32 : i32, i32
  }
  func.func @transform_1(%arg0: i32, %arg1: memref<1280xi32, #tpu.memory_space<smem>>) -> (i32, i32) {
    %c0_i32 = arith.constant 0 : i32
    %c0_i32_0 = arith.constant 0 : i32
    return %arg0, %c0_i32 : i32, i32
  }
  func.func @transform_2(%arg0: i32, %arg1: memref<1280xi32, #tpu.memory_space<smem>>) -> (i32, i32) {
    %c0_i32 = arith.constant 0 : i32
    %c0_i32_0 = arith.constant 0 : i32
    %c0_i32_1 = arith.constant 0 : i32
    return %c0_i32, %c0_i32_0 : i32, i32
  }
  func.func @transform_3(%arg0: i32, %arg1: memref<1280xi32, #tpu.memory_space<smem>>) -> (i32, i32) {
    %c0_i32 = arith.constant 0 : i32
    %c0_i32_0 = arith.constant 0 : i32
    %c0_i32_1 = arith.constant 0 : i32
    return %c0_i32, %c0_i32_0 : i32, i32
  }
  func.func @transform_4(%arg0: i32, %arg1: memref<1280xi32, #tpu.memory_space<smem>>) -> (i32, i32) {
    %c0_i32 = arith.constant 0 : i32
    %c0_i32_0 = arith.constant 0 : i32
    %c0_i32_1 = arith.constant 0 : i32
    return %c0_i32, %c0_i32_0 : i32, i32
  }
  func.func @transform_5(%arg0: i32, %arg1: memref<1280xi32, #tpu.memory_space<smem>>) -> (i32, i32) {
    %c0_i32 = arith.constant 0 : i32
    %c0_i32_0 = arith.constant 0 : i32
    %c0_i32_1 = arith.constant 0 : i32
    return %c0_i32, %c0_i32_0 : i32, i32
  }
  func.func @transform_6(%arg0: i32, %arg1: memref<1280xi32, #tpu.memory_space<smem>>) -> (i32, i32) {
    %c0_i32 = arith.constant 0 : i32
    %c0_i32_0 = arith.constant 0 : i32
    %c0_i32_1 = arith.constant 0 : i32
    return %c0_i32, %c0_i32_0 : i32, i32
  }
  func.func @transform_7(%arg0: i32, %arg1: memref<1280xi32, #tpu.memory_space<smem>>) -> (i32, i32) {
    %c0_i32 = arith.constant 0 : i32
    %c0_i32_0 = arith.constant 0 : i32
    %c0_i32_1 = arith.constant 0 : i32
    return %c0_i32, %c0_i32_0 : i32, i32
  }
  func.func @transform_8(%arg0: i32, %arg1: memref<1280xi32, #tpu.memory_space<smem>>) -> (i32, i32) {
    %c0_i32 = arith.constant 0 : i32
    %c0_i32_0 = arith.constant 0 : i32
    %c0_i32_1 = arith.constant 0 : i32
    return %c0_i32, %c0_i32_0 : i32, i32
  }
  func.func @transform_9(%arg0: i32, %arg1: memref<1280xi32, #tpu.memory_space<smem>>) -> (i32, i32) {
    %c0_i32 = arith.constant 0 : i32
    %c0_i32_0 = arith.constant 0 : i32
    %c0_i32_1 = arith.constant 0 : i32
    return %c0_i32, %c0_i32_0 : i32, i32
  }
  func.func @transform_10(%arg0: i32, %arg1: memref<1280xi32, #tpu.memory_space<smem>>) -> (i32, i32) {
    %c0_i32 = arith.constant 0 : i32
    %c0_i32_0 = arith.constant 0 : i32
    %c0_i32_1 = arith.constant 0 : i32
    return %c0_i32, %c0_i32_0 : i32, i32
  }
  func.func @transform_11(%arg0: i32, %arg1: memref<1280xi32, #tpu.memory_space<smem>>) -> (i32, i32) {
    %c0_i32 = arith.constant 0 : i32
    %c0_i32_0 = arith.constant 0 : i32
    return %arg0, %c0_i32 : i32, i32
  }
}

</mosaic_0001>

<llo_original>
// kernel: net_forward.5
$region0: #{net_forward.5}
  #allocation0 [shape = 'u32[]', space=smem, size = 0x4, offset = 0x4, fixed_abs, tag = 'smem constant byte address 0x4 - core index']
  #allocation1 [shape = 'u32[72,128]{1,0:T(1,128)}', space=vmem, size = 0x9000, scoped, tag = 'internal scratch']
  %s0 = inlined_call_operand.vmem [shape: f32[64,8], index: 0, kind: input, shape index: {}]
  %s1 = inlined_call_operand.vmem [shape: bf16[8,32], index: 1, kind: input, shape index: {}]
  %s2 = inlined_call_operand.vmem [shape: f32[1,32], index: 2, kind: input, shape index: {}]
  %s3 = inlined_call_operand.vmem [shape: bf16[32,64], index: 3, kind: input, shape index: {}]
  %s4 = inlined_call_operand.vmem [shape: f32[1,64], index: 4, kind: input, shape index: {}]
  %s5 = inlined_call_operand.vmem [shape: bf16[64,128], index: 5, kind: input, shape index: {}]
  %s6 = inlined_call_operand.vmem [shape: f32[1,128], index: 6, kind: input, shape index: {}]
  %s7 = inlined_call_operand.vmem [shape: bf16[64,64], index: 7, kind: output, shape index: {0}]
  %s8 = inlined_call_operand.vmem [shape: bf16[64,64], index: 8, kind: output, shape index: {1}]
  %s9 = inlined_call_operand.vmem [shape: f32[64,64], index: 9, kind: output, shape index: {2}]
  %10 = xla_tuple %s7, %s8, %s9
  %s11 = sld [smem:[#allocation0]]
  $region77: #{net_forward.5} parent=0
    _
  %s13 = ssub.s32 1, %s11
  %s14 = scalar_select 0, %s13, %s11
  loop: start=0, step=1, limit=4
  $region2: #{net_forward.5} parent=0 // loop_pre_header
    _
  $region3: #{net_forward.5} parent=0 // loop_header
    %s16 = sphi 0, %s20
    %p17 = scmp.ge.s32.totalorder %s16, 4
    %s26 = sphi 0, %s28
    %s29 = sphi 0, %s26
    %s30 = sphi 0, %s29
    %s46 = sphi 0, %s30
    %s50 = sphi 0, %s50
    %s52 = sphi 0, %s50
    %s53 = sphi 0, %s52
    %s67 = sphi 0, %s53
    %s71 = sphi 0, %s71
    %s73 = sphi 0, %s71
    %s74 = sphi 0, %s73
    %s88 = sphi 0, %s74
    %s92 = sphi 0, %s92
    %s94 = sphi 0, %s92
    %s95 = sphi 0, %s94
    %s109 = sphi 0, %s95
    %s113 = sphi 0, %s113
    %s115 = sphi 0, %s113
    %s116 = sphi 0, %s115
    %s130 = sphi 0, %s116
    %s134 = sphi 0, %s134
    %s136 = sphi 0, %s134
    %s137 = sphi 0, %s136
    %s151 = sphi 0, %s137
    %s155 = sphi 0, %s155
    %s157 = sphi 0, %s155
    %s158 = sphi 0, %s157
    %s172 = sphi 0, %s158
    %s178 = sphi 0, %s180
    %s181 = sphi 0, %s178
    %s182 = sphi 0, %s181
    %s198 = sphi 0, %s182
    %s204 = sphi 0, %s206
    %s207 = sphi 0, %s204
    %s208 = sphi 0, %s207
    %s224 = sphi 0, %s208
    %s230 = sphi 0, %s232
    %s233 = sphi 0, %s230
    %s234 = sphi 0, %s233
    %s250 = sphi 0, %s234
  $region4: #{net_forward.5} parent=0 // loop_header_branch
    %19 = sbr.rel (%p17) target = $region8
  $region5: #{net_forward.5} parent=0 // loop_body
    %s21 = ssub.s32 %s16, 1
    %s22 = ssub.s32 %s16, 2
    %s23 = sadd.s32 %s16, 1
    %s24 = ssub.s32 %s16, %s23
    %p25 = scmp.eq.s32.totalorder %s24, 0
    %s27 = sadd.s32 %s26, 1
    %s28 = scalar_select %p25, %s26, %s27
    %p31 = pneg %p25
    %p32 = scmp.eq.s32.totalorder %s16, 1
    %p33 = por %p31, %p32
    %p34 = scmp.ne.s32.totalorder %s26, %s29
    %p35 = scmp.eq.s32.totalorder %s16, 0
    %p36 = por %p34, %p35
    %p37 = scmp.ne.s32.totalorder %s26, %s29
    %p38 = scmp.eq.s32.totalorder %s21, 1
    %p39 = por %p37, %p38
    %p40 = scmp.ne.s32.totalorder %s29, %s30
    %p41 = scmp.eq.s32.totalorder %s21, 0
    %p42 = por %p40, %p41
    %p43 = scmp.ne.s32.totalorder %s29, %s30
    %p44 = scmp.eq.s32.totalorder %s22, 1
    %p45 = por %p43, %p44
    %p47 = scmp.ne.s32.totalorder %s30, %s46
    %p48 = scmp.eq.s32.totalorder %s22, 0
    %p49 = por %p47, %p48
    %s51 = sadd.s32 %s50, 1
    %p54 = scmp.eq.s32.totalorder %s16, 1
    %p55 = scmp.ne.s32.totalorder %s50, %s52
    %p56 = scmp.eq.s32.totalorder %s16, 0
    %p57 = por %p55, %p56
    %p58 = scmp.ne.s32.totalorder %s50, %s52
    %p59 = scmp.eq.s32.totalorder %s21, 1
    %p60 = por %p58, %p59
    %p61 = scmp.ne.s32.totalorder %s52, %s53
    %p62 = scmp.eq.s32.totalorder %s21, 0
    %p63 = por %p61, %p62
    %p64 = scmp.ne.s32.totalorder %s52, %s53
    %p65 = scmp.eq.s32.totalorder %s22, 1
    %p66 = por %p64, %p65
    %p68 = scmp.ne.s32.totalorder %s53, %s67
    %p69 = scmp.eq.s32.totalorder %s22, 0
    %p70 = por %p68, %p69
    %s72 = sadd.s32 %s71, 1
    %p75 = scmp.eq.s32.totalorder %s16, 1
    %p76 = scmp.ne.s32.totalorder %s71, %s73
    %p77 = scmp.eq.s32.totalorder %s16, 0
    %p78 = por %p76, %p77
    %p79 = scmp.ne.s32.totalorder %s71, %s73
    %p80 = scmp.eq.s32.totalorder %s21, 1
    %p81 = por %p79, %p80
    %p82 = scmp.ne.s32.totalorder %s73, %s74
    %p83 = scmp.eq.s32.totalorder %s21, 0
    %p84 = por %p82, %p83
    %p85 = scmp.ne.s32.totalorder %s73, %s74
    %p86 = scmp.eq.s32.totalorder %s22, 1
    %p87 = por %p85, %p86
    %p89 = scmp.ne.s32.totalorder %s74, %s88
    %p90 = scmp.eq.s32.totalorder %s22, 0
    %p91 = por %p89, %p90
    %s93 = sadd.s32 %s92, 1
    %p96 = scmp.eq.s32.totalorder %s16, 1
    %p97 = scmp.ne.s32.totalorder %s92, %s94
    %p98 = scmp.eq.s32.totalorder %s16, 0
    %p99 = por %p97, %p98
    %p100 = scmp.ne.s32.totalorder %s92, %s94
    %p101 = scmp.eq.s32.totalorder %s21, 1
    %p102 = por %p100, %p101
    %p103 = scmp.ne.s32.totalorder %s94, %s95
    %p104 = scmp.eq.s32.totalorder %s21, 0
    %p105 = por %p103, %p104
    %p106 = scmp.ne.s32.totalorder %s94, %s95
    %p107 = scmp.eq.s32.totalorder %s22, 1
    %p108 = por %p106, %p107
    %p110 = scmp.ne.s32.totalorder %s95, %s109
    %p111 = scmp.eq.s32.totalorder %s22, 0
    %p112 = por %p110, %p111
    %s114 = sadd.s32 %s113, 1
    %p117 = scmp.eq.s32.totalorder %s16, 1
    %p118 = scmp.ne.s32.totalorder %s113, %s115
    %p119 = scmp.eq.s32.totalorder %s16, 0
    %p120 = por %p118, %p119
    %p121 = scmp.ne.s32.totalorder %s113, %s115
    %p122 = scmp.eq.s32.totalorder %s21, 1
    %p123 = por %p121, %p122
    %p124 = scmp.ne.s32.totalorder %s115, %s116
    %p125 = scmp.eq.s32.totalorder %s21, 0
    %p126 = por %p124, %p125
    %p127 = scmp.ne.s32.totalorder %s115, %s116
    %p128 = scmp.eq.s32.totalorder %s22, 1
    %p129 = por %p127, %p128
    %p131 = scmp.ne.s32.totalorder %s116, %s130
    %p132 = scmp.eq.s32.totalorder %s22, 0
    %p133 = por %p131, %p132
    %s135 = sadd.s32 %s134, 1
    %p138 = scmp.eq.s32.totalorder %s16, 1
    %p139 = scmp.ne.s32.totalorder %s134, %s136
    %p140 = scmp.eq.s32.totalorder %s16, 0
    %p141 = por %p139, %p140
    %p142 = scmp.ne.s32.totalorder %s134, %s136
    %p143 = scmp.eq.s32.totalorder %s21, 1
    %p144 = por %p142, %p143
    %p145 = scmp.ne.s32.totalorder %s136, %s137
    %p146 = scmp.eq.s32.totalorder %s21, 0
    %p147 = por %p145, %p146
    %p148 = scmp.ne.s32.totalorder %s136, %s137
    %p149 = scmp.eq.s32.totalorder %s22, 1
    %p150 = por %p148, %p149
    %p152 = scmp.ne.s32.totalorder %s137, %s151
    %p153 = scmp.eq.s32.totalorder %s22, 0
    %p154 = por %p152, %p153
    %s156 = sadd.s32 %s155, 1
    %p159 = scmp.eq.s32.totalorder %s16, 1
    %p160 = scmp.ne.s32.totalorder %s155, %s157
    %p161 = scmp.eq.s32.totalorder %s16, 0
    %p162 = por %p160, %p161
    %p163 = scmp.ne.s32.totalorder %s155, %s157
    %p164 = scmp.eq.s32.totalorder %s21, 1
    %p165 = por %p163, %p164
    %p166 = scmp.ne.s32.totalorder %s157, %s158
    %p167 = scmp.eq.s32.totalorder %s21, 0
    %p168 = por %p166, %p167
    %p169 = scmp.ne.s32.totalorder %s157, %s158
    %p170 = scmp.eq.s32.totalorder %s22, 1
    %p171 = por %p169, %p170
    %p173 = scmp.ne.s32.totalorder %s158, %s172
    %p174 = scmp.eq.s32.totalorder %s22, 0
    %p175 = por %p173, %p174
    %s176 = ssub.s32 %s16, %s23
    %p177 = scmp.eq.s32.totalorder %s176, 0
    %s179 = sadd.s32 %s178, 1
    %s180 = scalar_select %p177, %s178, %s179
    %p183 = pneg %p177
    %p184 = scmp.eq.s32.totalorder %s16, 1
    %p185 = por %p183, %p184
    %p186 = scmp.ne.s32.totalorder %s178, %s181
    %p187 = scmp.eq.s32.totalorder %s16, 0
    %p188 = por %p186, %p187
    %p189 = scmp.ne.s32.totalorder %s178, %s181
    %p190 = scmp.eq.s32.totalorder %s21, 1
    %p191 = por %p189, %p190
    %p192 = scmp.ne.s32.totalorder %s181, %s182
    %p193 = scmp.eq.s32.totalorder %s21, 0
    %p194 = por %p192, %p193
    %p195 = scmp.ne.s32.totalorder %s181, %s182
    %p196 = scmp.eq.s32.totalorder %s22, 1
    %p197 = por %p195, %p196
    %p199 = scmp.ne.s32.totalorder %s182, %s198
    %p200 = scmp.eq.s32.totalorder %s22, 0
    %p201 = por %p199, %p200
    %s202 = ssub.s32 %s16, %s23
    %p203 = scmp.eq.s32.totalorder %s202, 0
    %s205 = sadd.s32 %s204, 1
    %s206 = scalar_select %p203, %s204, %s205
    %p209 = pneg %p203
    %p210 = scmp.eq.s32.totalorder %s16, 1
    %p211 = por %p209, %p210
    %p212 = scmp.ne.s32.totalorder %s204, %s207
    %p213 = scmp.eq.s32.totalorder %s16, 0
    %p214 = por %p212, %p213
    %p215 = scmp.ne.s32.totalorder %s204, %s207
    %p216 = scmp.eq.s32.totalorder %s21, 1
    %p217 = por %p215, %p216
    %p218 = scmp.ne.s32.totalorder %s207, %s208
    %p219 = scmp.eq.s32.totalorder %s21, 0
    %p220 = por %p218, %p219
    %p221 = scmp.ne.s32.totalorder %s207, %s208
    %p222 = scmp.eq.s32.totalorder %s22, 1
    %p223 = por %p221, %p222
    %p225 = scmp.ne.s32.totalorder %s208, %s224
    %p226 = scmp.eq.s32.totalorder %s22, 0
    %p227 = por %p225, %p226
    %s228 = ssub.s32 %s16, %s23
    %p229 = scmp.eq.s32.totalorder %s228, 0
    %s231 = sadd.s32 %s230, 1
    %s232 = scalar_select %p229, %s230, %s231
    %p235 = pneg %p229
    %p236 = scmp.eq.s32.totalorder %s16, 1
    %p237 = por %p235, %p236
    %p238 = scmp.ne.s32.totalorder %s230, %s233
    %p239 = scmp.eq.s32.totalorder %s16, 0
    %p240 = por %p238, %p239
    %p241 = scmp.ne.s32.totalorder %s230, %s233
    %p242 = scmp.eq.s32.totalorder %s21, 1
    %p243 = por %p241, %p242
    %p244 = scmp.ne.s32.totalorder %s233, %s234
    %p245 = scmp.eq.s32.totalorder %s21, 0
    %p246 = por %p244, %p245
    %p247 = scmp.ne.s32.totalorder %s233, %s234
    %p248 = scmp.eq.s32.totalorder %s22, 1
    %p249 = por %p247, %p248
    %p251 = scmp.ne.s32.totalorder %s234, %s250
    %p252 = scmp.eq.s32.totalorder %s22, 0
    %p253 = por %p251, %p252
    %p254 = scmp.le.s32.totalorder 1, %s16
    %p255 = scmp.lt.s32.totalorder %s16, 3
    %p256 = pnand %p254, %p255
    %p257 = pneg %p256
    // Predicated region
    $region9: #{net_forward.5} parent=5 // pred_check
      _
    $region10: #{net_forward.5} parent=5 // pred_check_branch
      %259 = sbr.rel (%p256) target = $region12
    $region11: #{net_forward.5} parent=5 // pred_region
      %s260 = ssub.s32 %s16, 1
      // Predicated region
      $region13: #{net_forward.5} parent=11 // pred_check
        %p261 = pneg %p63
      $region14: #{net_forward.5} parent=11 // pred_check_branch
        %263 = sbr.rel (%p261) target = $region16
      $region15: #{net_forward.5} parent=11 // pred_region
        _
      $region16: #{net_forward.5} parent=11 // pred_fallthru
        _
      // Predicated region
      $region17: #{net_forward.5} parent=11 // pred_check
        %p264 = pneg %p84
      $region18: #{net_forward.5} parent=11 // pred_check_branch
        %266 = sbr.rel (%p264) target = $region20
      $region19: #{net_forward.5} parent=11 // pred_region
        _
      $region20: #{net_forward.5} parent=11 // pred_fallthru
        _
      // Predicated region
      $region21: #{net_forward.5} parent=11 // pred_check
        %p267 = pneg %p105
      $region22: #{net_forward.5} parent=11 // pred_check_branch
        %269 = sbr.rel (%p267) target = $region24
      $region23: #{net_forward.5} parent=11 // pred_region
        _
      $region24: #{net_forward.5} parent=11 // pred_fallthru
        _
      // Predicated region
      $region25: #{net_forward.5} parent=11 // pred_check
        %p270 = pneg %p126
      $region26: #{net_forward.5} parent=11 // pred_check_branch
        %272 = sbr.rel (%p270) target = $region28
      $region27: #{net_forward.5} parent=11 // pred_region
        _
      $region28: #{net_forward.5} parent=11 // pred_fallthru
        _
      // Predicated region
      $region29: #{net_forward.5} parent=11 // pred_check
        %p273 = pneg %p147
      $region30: #{net_forward.5} parent=11 // pred_check_branch
        %275 = sbr.rel (%p273) target = $region32
      $region31: #{net_forward.5} parent=11 // pred_region
        _
      $region32: #{net_forward.5} parent=11 // pred_fallthru
        _
      // Predicated region
      $region33: #{net_forward.5} parent=11 // pred_check
        %p276 = pneg %p168
      $region34: #{net_forward.5} parent=11 // pred_check_branch
        %278 = sbr.rel (%p276) target = $region36
      $region35: #{net_forward.5} parent=11 // pred_region
        _
      $region36: #{net_forward.5} parent=11 // pred_fallthru
        _
    $region12: #{net_forward.5} parent=5 // pred_fallthru
      _
    %p279 = scmp.lt.s32.totalorder %s16, 2
    // Predicated region
    $region37: #{net_forward.5} parent=5 // pred_check
      %p280 = pneg %p279
    $region38: #{net_forward.5} parent=5 // pred_check_branch
      %282 = sbr.rel (%p280) target = $region40
    $region39: #{net_forward.5} parent=5 // pred_region
      // Predicated region
      $region41: #{net_forward.5} parent=39 // pred_check
        %p283 = pneg %p36
      $region42: #{net_forward.5} parent=39 // pred_check_branch
        %285 = sbr.rel (%p283) target = $region44
      $region43: #{net_forward.5} parent=39 // pred_region
        %s286 = smul.u32 4, %s16
        %p287 = scmp.lt.s32.totalorder %s286, 7
        %s288 = scalar_select %p287, %s286, 7
        %s289 = smul.addr %s288, 8
        %s290 = scalar_lea.vmem %s0, %s289
        %s291 = smul.u32 4, %s16
      $region44: #{net_forward.5} parent=39 // pred_fallthru
        _
    $region40: #{net_forward.5} parent=5 // pred_fallthru
      _
    %p292 = scmp.le.s32.totalorder 1, %s16
    %p293 = scmp.lt.s32.totalorder %s16, 3
    %p294 = pnand %p292, %p293
    %p295 = pneg %p294
    // Predicated region
    $region45: #{net_forward.5} parent=5 // pred_check
      _
    $region46: #{net_forward.5} parent=5 // pred_check_branch
      %297 = sbr.rel (%p294) target = $region48
    $region47: #{net_forward.5} parent=5 // pred_region
      %s298 = ssub.s32 %s16, 1
      %s299 = smul.u32 4, %s21
      %p300 = scmp.lt.s32.totalorder %s299, 7
      %s301 = scalar_select %p300, %s299, 7
      %s302 = smul.addr %s301, 8
      %s303 = scalar_lea.vmem %s0, %s302
      %p304 = pneg %p42
      %p305 = pneg %p39
      %p306 = pneg %p63
      %p307 = pneg %p60
      %p308 = pneg %p84
      %p309 = pneg %p81
      %p310 = pneg %p105
      %p311 = pneg %p102
      %p312 = pneg %p126
      %p313 = pneg %p123
      %p314 = pneg %p147
      %p315 = pneg %p144
      %p316 = pneg %p168
      %p317 = pneg %p165
      %p318 = pneg %p194
      %p319 = pneg %p191
      %s320 = smul.u32 4, %s21
      %p321 = scmp.lt.s32.totalorder %s320, 7
      %s322 = scalar_select %p321, %s320, 7
      %s323 = smul.addr %s322, 4
      %s324 = scalar_lea.vmem %s7, %s323
      %p325 = pneg %p220
      %p326 = pneg %p217
      %s327 = smul.u32 4, %s21
      %p328 = scmp.lt.s32.totalorder %s327, 7
      %s329 = scalar_select %p328, %s327, 7
      %s330 = smul.addr %s329, 4
      %s331 = scalar_lea.vmem %s8, %s330
      %p332 = pneg %p246
      %p333 = pneg %p243
      %s334 = smul.u32 4, %s21
      %p335 = scmp.lt.s32.totalorder %s334, 7
      %s336 = scalar_select %p335, %s334, 7
      %s337 = smul.addr %s336, 8
      %s338 = scalar_lea.vmem %s9, %s337
      %s339 = smul.u32 4, %s21
      %p340 = scmp.lt.s32.totalorder %s339, 7
      %s341 = scalar_select %p340, %s339, 7
      %s342 = smul.addr %s341, 8
      %s343 = scalar_lea.vmem %s0, %s342
      %s344 = smul.u32 4, %s21
      %s345 = smul.u32 4, %s21
      %p346 = scmp.lt.s32.totalorder %s345, 7
      %s347 = scalar_select %p346, %s345, 7
      %s348 = smul.addr %s347, 4
      %s349 = scalar_lea.vmem %s7, %s348
      %s350 = smul.u32 4, %s21
      %s351 = smul.u32 4, %s21
      %p352 = scmp.lt.s32.totalorder %s351, 7
      %s353 = scalar_select %p352, %s351, 7
      %s354 = smul.addr %s353, 4
      %s355 = scalar_lea.vmem %s8, %s354
      %s356 = smul.u32 4, %s21
      %s357 = smul.u32 4, %s21
      %p358 = scmp.lt.s32.totalorder %s357, 7
      %s359 = scalar_select %p358, %s357, 7
      %s360 = smul.addr %s359, 8
      %s361 = scalar_lea.vmem %s9, %s360
      %s362 = smul.u32 4, %s21
      %v364 = vld [vmem:[%s343] sm:$0xff]
      %v365 = vld [vmem:[%s343 + $0x8] sm:$0xff]
      %v366 = vld [vmem:[%s343 + $0x10] sm:$0xff]
      %v367 = vld [vmem:[%s343 + $0x18] sm:$0xff]
      %v368 = vpack.c.bf16 %v365, %v364
      %v369 = vpack.c.bf16 %v367, %v366
      %v370 = vld [vmem:[%s1] sm:$0xf]
      %v371 = vld [vmem:[%s2] sm:$0x1]
      %v373 = vperm.slane %v371, 0
      %vm375 = vcmask 64512
      %v377 = vsel %vm375, %v368, 0
      %v380 = vsel %vm375, %v369, 0
      %vm382 = vcmask 1043456
      %v384 = vsel %vm382, %v370, 0
      %386 = vmatpush.bf16.msra.mxu0 0
      %387 = vmatpush.bf16.msra.mxu0 0
      %388 = vmatpush.bf16.msra.mxu0 0
      %389 = vmatpush.bf16.msra.mxu0 0
      %390 = vmatpush.bf16.msra.mxu0 0
      %391 = vmatpush.bf16.msra.mxu0 0
      %392 = vmatpush.bf16.msra.mxu0 0
      %393 = vmatpush.bf16.msra.mxu0 %v384
      %394 = vmatmul.bf16.gmra.mxu0 %v377
      %v395 = vpop.f32.mrf.mxu0
      %v396 = vadd.f32 %v373, %v395
      %v397 = vpop.f32.mrf.mxu0
      %v398 = vadd.f32 %v373, %v397
      %399 = vmatmul.bf16.gmra.mxu0 %v380
      %v400 = vpop.f32.mrf.mxu0
      %v401 = vadd.f32 %v373, %v400
      %v402 = vpop.f32.mrf.mxu0
      %v403 = vadd.f32 %v373, %v402
      %404 = vdwg.mxu0
      %vm405 = vcmp.gt.f32.partialorder %v396, 0.0
      %vm406 = vcmp.gt.f32.partialorder %v398, 0.0
      %vm407 = vcmp.gt.f32.partialorder %v401, 0.0
      %vm408 = vcmp.gt.f32.partialorder %v403, 0.0
      %v409 = vmin.f32 %v396, 0.0
      %v410 = vmin.f32 %v398, 0.0
      %v411 = vmin.f32 %v401, 0.0
      %v412 = vmin.f32 %v403, 0.0
      %v413 = vmul.f32 %v409, 1.442695
      %v414 = vpow.pop %v413
      %v415 = vmul.f32 %v410, 1.442695
      %v416 = vpow.pop %v415
      %v417 = vmul.f32 %v411, 1.442695
      %v418 = vpow.pop %v417
      %v419 = vmul.f32 %v412, 1.442695
      %v420 = vpow.pop %v419
      %v421 = vsub.f32 %v414, 1.0
      %v422 = vsub.f32 %v416, 1.0
      %v423 = vsub.f32 %v418, 1.0
      %v424 = vsub.f32 %v420, 1.0
      %v425 = vsel %vm405, %v396, %v421
      %v426 = vsel %vm406, %v398, %v422
      %v427 = vsel %vm407, %v401, %v423
      %v428 = vsel %vm408, %v403, %v424
      %v429 = vpack.c.bf16 %v426, %v425
      %v430 = vpack.c.bf16 %v428, %v427
      %v431 = vld [vmem:[%s3] sm:$0xf]
      %v432 = vld [vmem:[%s3 + $0x4] sm:$0xf]
      %v433 = vld [vmem:[%s3 + $0x8] sm:$0xf]
      %v434 = vld [vmem:[%s3 + $0xc] sm:$0xf]
      %v435 = vld [vmem:[%s4] sm:$0x1]
      %v437 = vperm.slane %v435, 0
      %v443 = vunpack.c.l.b16 %v431
      %v444 = vunpack.c.l.b16 %v432
      %v445 = vunpack.c.l.b16 %v433
      %v446 = vunpack.c.l.b16 %v434
      %v447 = vpack.c.b16 %v444, %v443
      %v448 = vpack.c.b16 %v446, %v445
      %vm451 = vcmask 261120
      %v453 = vsel %vm451, %v429, 0
      %v456 = vsel %vm451, %v430, 0
      %458 = vmatpush.bf16.msra.mxu0 0
      %459 = vmatpush.bf16.msra.mxu0 0
      %460 = vmatpush.bf16.msra.mxu0 0
      %461 = vmatpush.bf16.msra.mxu0 0
      %462 = vmatpush.bf16.msra.mxu0 0
      %463 = vmatpush.bf16.msra.mxu0 0
      %464 = vmatpush.bf16.msra.mxu0 %v448
      %465 = vmatpush.bf16.msra.mxu0 %v447
      %466 = vmatmul.bf16.gmra.mxu0 %v453
      %v467 = vpop.f32.mrf.mxu0
      %v468 = vadd.f32 %v437, %v467
      %v469 = vpop.f32.mrf.mxu0
      %v470 = vadd.f32 %v437, %v469
      %471 = vmatmul.bf16.gmra.mxu0 %v456
      %v472 = vpop.f32.mrf.mxu0
      %v473 = vadd.f32 %v437, %v472
      %v474 = vpop.f32.mrf.mxu0
      %v475 = vadd.f32 %v437, %v474
      %476 = vdwg.mxu0
      %vm477 = vcmp.gt.f32.partialorder %v468, 0.0
      %vm478 = vcmp.gt.f32.partialorder %v470, 0.0
      %vm479 = vcmp.gt.f32.partialorder %v473, 0.0
      %vm480 = vcmp.gt.f32.partialorder %v475, 0.0
      %v481 = vmin.f32 %v468, 0.0
      %v482 = vmin.f32 %v470, 0.0
      %v483 = vmin.f32 %v473, 0.0
      %v484 = vmin.f32 %v475, 0.0
      %v485 = vmul.f32 %v481, 1.442695
      %v486 = vpow.pop %v485
      %v487 = vmul.f32 %v482, 1.442695
      %v488 = vpow.pop %v487
      %v489 = vmul.f32 %v483, 1.442695
      %v490 = vpow.pop %v489
      %v491 = vmul.f32 %v484, 1.442695
      %v492 = vpow.pop %v491
      %v493 = vsub.f32 %v486, 1.0
      %v494 = vsub.f32 %v488, 1.0
      %v495 = vsub.f32 %v490, 1.0
      %v496 = vsub.f32 %v492, 1.0
      %v497 = vsel %vm477, %v468, %v493
      %v498 = vsel %vm478, %v470, %v494
      %v499 = vsel %vm479, %v473, %v495
      %v500 = vsel %vm480, %v475, %v496
      %v501 = vpack.c.bf16 %v497, %v497
      %v502 = vpack.c.bf16 %v498, %v498
      %v503 = vpack.c.bf16 %v499, %v499
      %v504 = vpack.c.bf16 %v500, %v500
      %vm505 = vcmask 519168
      %506 = vst.msk [vmem:[%s349] sm:$0xf] %vm505, %v501
      %507 = vst.msk [vmem:[%s349 + $0x4] sm:$0xf] %vm505, %v502
      %508 = vst.msk [vmem:[%s349 + $0x8] sm:$0xf] %vm505, %v503
      %509 = vst.msk [vmem:[%s349 + $0xc] sm:$0xf] %vm505, %v504
      %v510 = vld [vmem:[%s5] sm:$0xf]
      %v511 = vld [vmem:[%s5 + $0x4] sm:$0xf]
      %v512 = vld [vmem:[%s5 + $0x8] sm:$0xf]
      %v513 = vld [vmem:[%s5 + $0xc] sm:$0xf]
      %v514 = vld [vmem:[%s5 + $0x10] sm:$0xf]
      %v515 = vld [vmem:[%s5 + $0x14] sm:$0xf]
      %v516 = vld [vmem:[%s5 + $0x18] sm:$0xf]
      %v517 = vld [vmem:[%s5 + $0x1c] sm:$0xf]
      %v518 = vld [vmem:[%s6] sm:$0x1]
      %v520 = vperm.slane %v518, 0
      %v526 = vunpack.c.l.b16 %v501
      %v527 = vunpack.c.l.b16 %v502
      %v528 = vunpack.c.l.b16 %v503
      %v529 = vunpack.c.l.b16 %v504
      %v530 = vpack.c.b16 %v527, %v526
      %v531 = vpack.c.b16 %v529, %v528
      %v540 = vunpack.c.l.b16 %v510
      %v541 = vunpack.c.l.b16 %v511
      %v542 = vunpack.c.l.b16 %v512
      %v543 = vunpack.c.l.b16 %v513
      %v544 = vunpack.c.l.b16 %v514
      %v545 = vunpack.c.l.b16 %v515
      %v546 = vunpack.c.l.b16 %v516
      %v547 = vunpack.c.l.b16 %v517
      %v548 = vpack.c.b16 %v541, %v540
      %v549 = vpack.c.b16 %v543, %v542
      %v550 = vpack.c.b16 %v545, %v544
      %v551 = vpack.c.b16 %v547, %v546
      %vm556 = vcmask 523264
      %v558 = vsel %vm556, %v530, 0
      %v561 = vsel %vm556, %v531, 0
      %563 = vmatpush.bf16.msra.mxu0 0
      %564 = vmatpush.bf16.msra.mxu0 0
      %565 = vmatpush.bf16.msra.mxu0 0
      %566 = vmatpush.bf16.msra.mxu0 0
      %567 = vmatpush.bf16.msra.mxu0 %v551
      %568 = vmatpush.bf16.msra.mxu0 %v550
      %569 = vmatpush.bf16.msra.mxu0 %v549
      %570 = vmatpush.bf16.msra.mxu0 %v548
      %571 = vmatmul.bf16.gmra.mxu0 %v558
      %v572 = vpop.f32.mrf.mxu0
      %v573 = vadd.f32 %v520, %v572
      %v574 = vpop.f32.mrf.mxu0
      %v575 = vadd.f32 %v520, %v574
      %576 = vmatmul.bf16.gmra.mxu0 %v561
      %v577 = vpop.f32.mrf.mxu0
      %v578 = vadd.f32 %v520, %v577
      %v579 = vpop.f32.mrf.mxu0
      %v580 = vadd.f32 %v520, %v579
      %581 = vdwg.mxu0
      %v582 = vpack.c.bf16 %v573, %v573
      %v583 = vpack.c.bf16 %v575, %v575
      %v584 = vpack.c.bf16 %v578, %v578
      %v585 = vpack.c.bf16 %v580, %v580
      %586 = vst.msk [vmem:[%s355] sm:$0xf] %vm505, %v582
      %587 = vst.msk [vmem:[%s355 + $0x4] sm:$0xf] %vm505, %v583
      %588 = vst.msk [vmem:[%s355 + $0x8] sm:$0xf] %vm505, %v584
      %589 = vst.msk [vmem:[%s355 + $0xc] sm:$0xf] %vm505, %v585
      %594 = vrot.lane.b32.xlu0 %v573, 64
      %v595 = vpop.permute.xlu0 %594
      %596 = vrot.lane.b32.xlu0 %v575, 64
      %v597 = vpop.permute.xlu0 %596
      %598 = vrot.lane.b32.xlu0 %v578, 64
      %v599 = vpop.permute.xlu0 %598
      %600 = vrot.lane.b32.xlu0 %v580, 64
      %v601 = vpop.permute.xlu0 %600
      %606 = vst.msk [vmem:[%s361] sm:$0xff] %vm556, %v595
      %607 = vst.msk [vmem:[%s361 + $0x8] sm:$0xff] %vm556, %v597
      %608 = vst.msk [vmem:[%s361 + $0x10] sm:$0xff] %vm556, %v599
      %609 = vst.msk [vmem:[%s361 + $0x18] sm:$0xff] %vm556, %v601
      %s610 = smul.u32 4, %s21
      %p611 = scmp.lt.s32.totalorder %s610, 7
      %s612 = scalar_select %p611, %s610, 7
      %s613 = smul.addr %s612, 4
      %s614 = scalar_lea.vmem %s7, %s613
      %s615 = smul.u32 4, %s21
      %p616 = scmp.lt.s32.totalorder %s615, 7
      %s617 = scalar_select %p616, %s615, 7
      %s618 = smul.addr %s617, 4
      %s619 = scalar_lea.vmem %s8, %s618
      %s620 = smul.u32 4, %s21
      %p621 = scmp.lt.s32.totalorder %s620, 7
      %s622 = scalar_select %p621, %s620, 7
      %s623 = smul.addr %s622, 8
      %s624 = scalar_lea.vmem %s9, %s623
      // Predicated region
      $region49: #{net_forward.5} parent=47 // pred_check
        %p625 = pneg %p191
      $region50: #{net_forward.5} parent=47 // pred_check_branch
        %627 = sbr.rel (%p625) target = $region52
      $region51: #{net_forward.5} parent=47 // pred_region
        %s628 = smul.u32 4, %s21
      $region52: #{net_forward.5} parent=47 // pred_fallthru
        _
      // Predicated region
      $region53: #{net_forward.5} parent=47 // pred_check
        %p629 = pneg %p217
      $region54: #{net_forward.5} parent=47 // pred_check_branch
        %631 = sbr.rel (%p629) target = $region56
      $region55: #{net_forward.5} parent=47 // pred_region
        %s632 = smul.u32 4, %s21
      $region56: #{net_forward.5} parent=47 // pred_fallthru
        _
      // Predicated region
      $region57: #{net_forward.5} parent=47 // pred_check
        %p633 = pneg %p243
      $region58: #{net_forward.5} parent=47 // pred_check_branch
        %635 = sbr.rel (%p633) target = $region60
      $region59: #{net_forward.5} parent=47 // pred_region
        %s636 = smul.u32 4, %s21
      $region60: #{net_forward.5} parent=47 // pred_fallthru
        _
    $region48: #{net_forward.5} parent=5 // pred_fallthru
      _
    %p637 = scmp.le.s32.totalorder 2, %s16
    // Predicated region
    $region61: #{net_forward.5} parent=5 // pred_check
      %p638 = pneg %p637
    $region62: #{net_forward.5} parent=5 // pred_check_branch
      %640 = sbr.rel (%p638) target = $region64
    $region63: #{net_forward.5} parent=5 // pred_region
      %s641 = ssub.s32 %s16, 2
      // Predicated region
      $region65: #{net_forward.5} parent=63 // pred_check
        %p642 = pneg %p197
      $region66: #{net_forward.5} parent=63 // pred_check_branch
        %644 = sbr.rel (%p642) target = $region68
      $region67: #{net_forward.5} parent=63 // pred_region
        %s645 = smul.u32 4, %s22
        %p646 = scmp.lt.s32.totalorder %s645, 7
        %s647 = scalar_select %p646, %s645, 7
        %s648 = smul.addr %s647, 4
        %s649 = scalar_lea.vmem %s7, %s648
      $region68: #{net_forward.5} parent=63 // pred_fallthru
        _
      // Predicated region
      $region69: #{net_forward.5} parent=63 // pred_check
        %p650 = pneg %p223
      $region70: #{net_forward.5} parent=63 // pred_check_branch
        %652 = sbr.rel (%p650) target = $region72
      $region71: #{net_forward.5} parent=63 // pred_region
        %s653 = smul.u32 4, %s22
        %p654 = scmp.lt.s32.totalorder %s653, 7
        %s655 = scalar_select %p654, %s653, 7
        %s656 = smul.addr %s655, 4
        %s657 = scalar_lea.vmem %s8, %s656
      $region72: #{net_forward.5} parent=63 // pred_fallthru
        _
      // Predicated region
      $region73: #{net_forward.5} parent=63 // pred_check
        %p658 = pneg %p249
      $region74: #{net_forward.5} parent=63 // pred_check_branch
        %660 = sbr.rel (%p658) target = $region76
      $region75: #{net_forward.5} parent=63 // pred_region
        %s661 = smul.u32 4, %s22
        %p662 = scmp.lt.s32.totalorder %s661, 7
        %s663 = scalar_select %p662, %s661, 7
        %s664 = smul.addr %s663, 8
        %s665 = scalar_lea.vmem %s9, %s664
      $region76: #{net_forward.5} parent=63 // pred_fallthru
        _
    $region64: #{net_forward.5} parent=5 // pred_fallthru
      _
  $region6: #{net_forward.5} parent=0 // loop_footer
    %s20 = sadd.s32 1, %s16
  $region7: #{net_forward.5} parent=0 // loop_footer_branch
    %15 = sbr.rel target = $region3
  $region8: #{net_forward.5} parent=0 // loop_exit
    _

// kernel: net_forward.6
$region0: #{net_forward.6}
  #allocation0 [shape = 'u32[]', space=smem, size = 0x4, offset = 0x4, fixed_abs, tag = 'smem constant byte address 0x4 - core index']
  #allocation1 [shape = 'u32[72,128]{1,0:T(1,128)}', space=vmem, size = 0x9000, scoped, tag = 'internal scratch']
  #allocation2 [shape = 'f32[32,64]{1,0:T(8,128)}', space=vmem, size = 0x4000, scoped, tag = 'scratch operand']
  #allocation3 [shape = 's32[1]{0}', space=sflag, size = 0x4, scoped, tag = 'scoped memory for net_forward.6']
  #allocation4 [shape = 'u8[1536]{0}', space=smem, size = 0x600, scoped, tag = 'prefetched SMEM operand 0']
  %s0 = inlined_call_operand.vmem [shape: s32[320], index: 0, kind: input, shape index: {}]
  %s1 = inlined_call_operand.vmem [shape: bf16[64,64], index: 1, kind: input, shape index: {}]
  %s2 = inlined_call_operand.vmem [shape: bf16[64,64], index: 2, kind: input, shape index: {}]
  %s3 = inlined_call_operand.vmem [shape: f32[64,64], index: 3, kind: input, shape index: {}]
  %s4 = inlined_call_operand.vmem [shape: f32[1,64], index: 4, kind: input, shape index: {}]
  %s5 = inlined_call_operand.vmem [shape: f32[1,64], index: 5, kind: input, shape index: {}]
  %s6 = inlined_call_operand.vmem [shape: bf16[64,128], index: 6, kind: input, shape index: {}]
  %s7 = inlined_call_operand.vmem [shape: f32[1,128], index: 7, kind: input, shape index: {}]
  %s8 = inlined_call_operand.vmem [shape: bf16[64,64], index: 8, kind: output, shape index: {0}]
  %s9 = inlined_call_operand.vmem [shape: bf16[64,64], index: 9, kind: output, shape index: {1}]
  %s10 = inlined_call_operand.vmem [shape: f32[64,64], index: 10, kind: output, shape index: {2}]
  %11 = xla_tuple %s8, %s9, %s10
  %s12 = sld [smem:[#allocation0]]
  $region84: #{net_forward.6} parent=0
    _
  %s14 = ssub.s32 1, %s12
  %s15 = scalar_select 0, %s14, %s12
  %s17 = sshll.u32 %s0, 4
  %s18 = int_to_ptr.vmem [resolvable:$true] %s17
  %20 = dma.vmem_to_smem %s18, 48, [#allocation4], [#allocation3]
  %22 = dma.done [#allocation3], 48
  %23 = sfence
  loop: start=0, step=1, limit=4
  $region2: #{net_forward.6} parent=0 // loop_pre_header
    _
  $region3: #{net_forward.6} parent=0 // loop_header
    %s25 = sphi 0, %s29
    %p26 = scmp.ge.s32.totalorder %s25, 4
    %s35 = sphi 0, %s37
    %s38 = sphi 0, %s35
    %s39 = sphi 0, %s38
    %s55 = sphi 0, %s39
    %s61 = sphi 0, %s63
    %s64 = sphi 0, %s61
    %s65 = sphi 0, %s64
    %s81 = sphi 0, %s65
    %s85 = sphi 0, %s85
    %s87 = sphi 0, %s85
    %s88 = sphi 0, %s87
    %s102 = sphi 0, %s88
    %s106 = sphi 0, %s106
    %s108 = sphi 0, %s106
    %s109 = sphi 0, %s108
    %s123 = sphi 0, %s109
    %s127 = sphi 0, %s127
    %s129 = sphi 0, %s127
    %s130 = sphi 0, %s129
    %s144 = sphi 0, %s130
    %s148 = sphi 0, %s148
    %s150 = sphi 0, %s148
    %s151 = sphi 0, %s150
    %s165 = sphi 0, %s151
    %s169 = sphi 0, %s169
    %s171 = sphi 0, %s169
    %s172 = sphi 0, %s171
    %s186 = sphi 0, %s172
    %s192 = sphi 0, %s194
    %s195 = sphi 0, %s192
    %s196 = sphi 0, %s195
    %s212 = sphi 0, %s196
    %s218 = sphi 0, %s220
    %s221 = sphi 0, %s218
    %s222 = sphi 0, %s221
    %s238 = sphi 0, %s222
    %s244 = sphi 0, %s246
    %s247 = sphi 0, %s244
    %s248 = sphi 0, %s247
    %s264 = sphi 0, %s248
  $region4: #{net_forward.6} parent=0 // loop_header_branch
    %28 = sbr.rel (%p26) target = $region8
  $region5: #{net_forward.6} parent=0 // loop_body
    %s30 = ssub.s32 %s25, 1
    %s31 = ssub.s32 %s25, 2
    %s32 = sadd.s32 %s25, 1
    %s33 = ssub.s32 %s25, %s32
    %p34 = scmp.eq.s32.totalorder %s33, 0
    %s36 = sadd.s32 %s35, 1
    %s37 = scalar_select %p34, %s35, %s36
    %p40 = pneg %p34
    %p41 = scmp.eq.s32.totalorder %s25, 1
    %p42 = por %p40, %p41
    %p43 = scmp.ne.s32.totalorder %s35, %s38
    %p44 = scmp.eq.s32.totalorder %s25, 0
    %p45 = por %p43, %p44
    %p46 = scmp.ne.s32.totalorder %s35, %s38
    %p47 = scmp.eq.s32.totalorder %s30, 1
    %p48 = por %p46, %p47
    %p49 = scmp.ne.s32.totalorder %s38, %s39
    %p50 = scmp.eq.s32.totalorder %s30, 0
    %p51 = por %p49, %p50
    %p52 = scmp.ne.s32.totalorder %s38, %s39
    %p53 = scmp.eq.s32.totalorder %s31, 1
    %p54 = por %p52, %p53
    %p56 = scmp.ne.s32.totalorder %s39, %s55
    %p57 = scmp.eq.s32.totalorder %s31, 0
    %p58 = por %p56, %p57
    %s59 = ssub.s32 %s25, %s32
    %p60 = scmp.eq.s32.totalorder %s59, 0
    %s62 = sadd.s32 %s61, 1
    %s63 = scalar_select %p60, %s61, %s62
    %p66 = pneg %p60
    %p67 = scmp.eq.s32.totalorder %s25, 1
    %p68 = por %p66, %p67
    %p69 = scmp.ne.s32.totalorder %s61, %s64
    %p70 = scmp.eq.s32.totalorder %s25, 0
    %p71 = por %p69, %p70
    %p72 = scmp.ne.s32.totalorder %s61, %s64
    %p73 = scmp.eq.s32.totalorder %s30, 1
    %p74 = por %p72, %p73
    %p75 = scmp.ne.s32.totalorder %s64, %s65
    %p76 = scmp.eq.s32.totalorder %s30, 0
    %p77 = por %p75, %p76
    %p78 = scmp.ne.s32.totalorder %s64, %s65
    %p79 = scmp.eq.s32.totalorder %s31, 1
    %p80 = por %p78, %p79
    %p82 = scmp.ne.s32.totalorder %s65, %s81
    %p83 = scmp.eq.s32.totalorder %s31, 0
    %p84 = por %p82, %p83
    %s86 = sadd.s32 %s85, 1
    %p89 = scmp.eq.s32.totalorder %s25, 1
    %p90 = scmp.ne.s32.totalorder %s85, %s87
    %p91 = scmp.eq.s32.totalorder %s25, 0
    %p92 = por %p90, %p91
    %p93 = scmp.ne.s32.totalorder %s85, %s87
    %p94 = scmp.eq.s32.totalorder %s30, 1
    %p95 = por %p93, %p94
    %p96 = scmp.ne.s32.totalorder %s87, %s88
    %p97 = scmp.eq.s32.totalorder %s30, 0
    %p98 = por %p96, %p97
    %p99 = scmp.ne.s32.totalorder %s87, %s88
    %p100 = scmp.eq.s32.totalorder %s31, 1
    %p101 = por %p99, %p100
    %p103 = scmp.ne.s32.totalorder %s88, %s102
    %p104 = scmp.eq.s32.totalorder %s31, 0
    %p105 = por %p103, %p104
    %s107 = sadd.s32 %s106, 1
    %p110 = scmp.eq.s32.totalorder %s25, 1
    %p111 = scmp.ne.s32.totalorder %s106, %s108
    %p112 = scmp.eq.s32.totalorder %s25, 0
    %p113 = por %p111, %p112
    %p114 = scmp.ne.s32.totalorder %s106, %s108
    %p115 = scmp.eq.s32.totalorder %s30, 1
    %p116 = por %p114, %p115
    %p117 = scmp.ne.s32.totalorder %s108, %s109
    %p118 = scmp.eq.s32.totalorder %s30, 0
    %p119 = por %p117, %p118
    %p120 = scmp.ne.s32.totalorder %s108, %s109
    %p121 = scmp.eq.s32.totalorder %s31, 1
    %p122 = por %p120, %p121
    %p124 = scmp.ne.s32.totalorder %s109, %s123
    %p125 = scmp.eq.s32.totalorder %s31, 0
    %p126 = por %p124, %p125
    %s128 = sadd.s32 %s127, 1
    %p131 = scmp.eq.s32.totalorder %s25, 1
    %p132 = scmp.ne.s32.totalorder %s127, %s129
    %p133 = scmp.eq.s32.totalorder %s25, 0
    %p134 = por %p132, %p133
    %p135 = scmp.ne.s32.totalorder %s127, %s129
    %p136 = scmp.eq.s32.totalorder %s30, 1
    %p137 = por %p135, %p136
    %p138 = scmp.ne.s32.totalorder %s129, %s130
    %p139 = scmp.eq.s32.totalorder %s30, 0
    %p140 = por %p138, %p139
    %p141 = scmp.ne.s32.totalorder %s129, %s130
    %p142 = scmp.eq.s32.totalorder %s31, 1
    %p143 = por %p141, %p142
    %p145 = scmp.ne.s32.totalorder %s130, %s144
    %p146 = scmp.eq.s32.totalorder %s31, 0
    %p147 = por %p145, %p146
    %s149 = sadd.s32 %s148, 1
    %p152 = scmp.eq.s32.totalorder %s25, 1
    %p153 = scmp.ne.s32.totalorder %s148, %s150
    %p154 = scmp.eq.s32.totalorder %s25, 0
    %p155 = por %p153, %p154
    %p156 = scmp.ne.s32.totalorder %s148, %s150
    %p157 = scmp.eq.s32.totalorder %s30, 1
    %p158 = por %p156, %p157
    %p159 = scmp.ne.s32.totalorder %s150, %s151
    %p160 = scmp.eq.s32.totalorder %s30, 0
    %p161 = por %p159, %p160
    %p162 = scmp.ne.s32.totalorder %s150, %s151
    %p163 = scmp.eq.s32.totalorder %s31, 1
    %p164 = por %p162, %p163
    %p166 = scmp.ne.s32.totalorder %s151, %s165
    %p167 = scmp.eq.s32.totalorder %s31, 0
    %p168 = por %p166, %p167
    %s170 = sadd.s32 %s169, 1
    %p173 = scmp.eq.s32.totalorder %s25, 1
    %p174 = scmp.ne.s32.totalorder %s169, %s171
    %p175 = scmp.eq.s32.totalorder %s25, 0
    %p176 = por %p174, %p175
    %p177 = scmp.ne.s32.totalorder %s169, %s171
    %p178 = scmp.eq.s32.totalorder %s30, 1
    %p179 = por %p177, %p178
    %p180 = scmp.ne.s32.totalorder %s171, %s172
    %p181 = scmp.eq.s32.totalorder %s30, 0
    %p182 = por %p180, %p181
    %p183 = scmp.ne.s32.totalorder %s171, %s172
    %p184 = scmp.eq.s32.totalorder %s31, 1
    %p185 = por %p183, %p184
    %p187 = scmp.ne.s32.totalorder %s172, %s186
    %p188 = scmp.eq.s32.totalorder %s31, 0
    %p189 = por %p187, %p188
    %s190 = ssub.s32 %s25, %s32
    %p191 = scmp.eq.s32.totalorder %s190, 0
    %s193 = sadd.s32 %s192, 1
    %s194 = scalar_select %p191, %s192, %s193
    %p197 = pneg %p191
    %p198 = scmp.eq.s32.totalorder %s25, 1
    %p199 = por %p197, %p198
    %p200 = scmp.ne.s32.totalorder %s192, %s195
    %p201 = scmp.eq.s32.totalorder %s25, 0
    %p202 = por %p200, %p201
    %p203 = scmp.ne.s32.totalorder %s192, %s195
    %p204 = scmp.eq.s32.totalorder %s30, 1
    %p205 = por %p203, %p204
    %p206 = scmp.ne.s32.totalorder %s195, %s196
    %p207 = scmp.eq.s32.totalorder %s30, 0
    %p208 = por %p206, %p207
    %p209 = scmp.ne.s32.totalorder %s195, %s196
    %p210 = scmp.eq.s32.totalorder %s31, 1
    %p211 = por %p209, %p210
    %p213 = scmp.ne.s32.totalorder %s196, %s212
    %p214 = scmp.eq.s32.totalorder %s31, 0
    %p215 = por %p213, %p214
    %s216 = ssub.s32 %s25, %s32
    %p217 = scmp.eq.s32.totalorder %s216, 0
    %s219 = sadd.s32 %s218, 1
    %s220 = scalar_select %p217, %s218, %s219
    %p223 = pneg %p217
    %p224 = scmp.eq.s32.totalorder %s25, 1
    %p225 = por %p223, %p224
    %p226 = scmp.ne.s32.totalorder %s218, %s221
    %p227 = scmp.eq.s32.totalorder %s25, 0
    %p228 = por %p226, %p227
    %p229 = scmp.ne.s32.totalorder %s218, %s221
    %p230 = scmp.eq.s32.totalorder %s30, 1
    %p231 = por %p229, %p230
    %p232 = scmp.ne.s32.totalorder %s221, %s222
    %p233 = scmp.eq.s32.totalorder %s30, 0
    %p234 = por %p232, %p233
    %p235 = scmp.ne.s32.totalorder %s221, %s222
    %p236 = scmp.eq.s32.totalorder %s31, 1
    %p237 = por %p235, %p236
    %p239 = scmp.ne.s32.totalorder %s222, %s238
    %p240 = scmp.eq.s32.totalorder %s31, 0
    %p241 = por %p239, %p240
    %s242 = ssub.s32 %s25, %s32
    %p243 = scmp.eq.s32.totalorder %s242, 0
    %s245 = sadd.s32 %s244, 1
    %s246 = scalar_select %p243, %s244, %s245
    %p249 = pneg %p243
    %p250 = scmp.eq.s32.totalorder %s25, 1
    %p251 = por %p249, %p250
    %p252 = scmp.ne.s32.totalorder %s244, %s247
    %p253 = scmp.eq.s32.totalorder %s25, 0
    %p254 = por %p252, %p253
    %p255 = scmp.ne.s32.totalorder %s244, %s247
    %p256 = scmp.eq.s32.totalorder %s30, 1
    %p257 = por %p255, %p256
    %p258 = scmp.ne.s32.totalorder %s247, %s248
    %p259 = scmp.eq.s32.totalorder %s30, 0
    %p260 = por %p258, %p259
    %p261 = scmp.ne.s32.totalorder %s247, %s248
    %p262 = scmp.eq.s32.totalorder %s31, 1
    %p263 = por %p261, %p262
    %p265 = scmp.ne.s32.totalorder %s248, %s264
    %p266 = scmp.eq.s32.totalorder %s31, 0
    %p267 = por %p265, %p266
    %p268 = scmp.le.s32.totalorder 1, %s25
    %p269 = scmp.lt.s32.totalorder %s25, 3
    %p270 = pnand %p268, %p269
    %p271 = pneg %p270
    // Predicated region
    $region9: #{net_forward.6} parent=5 // pred_check
      _
    $region10: #{net_forward.6} parent=5 // pred_check_branch
      %273 = sbr.rel (%p270) target = $region12
    $region11: #{net_forward.6} parent=5 // pred_region
      %s274 = ssub.s32 %s25, 1
      // Predicated region
      $region13: #{net_forward.6} parent=11 // pred_check
        %p275 = pneg %p98
      $region14: #{net_forward.6} parent=11 // pred_check_branch
        %277 = sbr.rel (%p275) target = $region16
      $region15: #{net_forward.6} parent=11 // pred_region
        _
      $region16: #{net_forward.6} parent=11 // pred_fallthru
        _
      // Predicated region
      $region17: #{net_forward.6} parent=11 // pred_check
        %p278 = pneg %p119
      $region18: #{net_forward.6} parent=11 // pred_check_branch
        %280 = sbr.rel (%p278) target = $region20
      $region19: #{net_forward.6} parent=11 // pred_region
        _
      $region20: #{net_forward.6} parent=11 // pred_fallthru
        _
      // Predicated region
      $region21: #{net_forward.6} parent=11 // pred_check
        %p281 = pneg %p140
      $region22: #{net_forward.6} parent=11 // pred_check_branch
        %283 = sbr.rel (%p281) target = $region24
      $region23: #{net_forward.6} parent=11 // pred_region
        _
      $region24: #{net_forward.6} parent=11 // pred_fallthru
        _
      // Predicated region
      $region25: #{net_forward.6} parent=11 // pred_check
        %p284 = pneg %p161
      $region26: #{net_forward.6} parent=11 // pred_check_branch
        %286 = sbr.rel (%p284) target = $region28
      $region27: #{net_forward.6} parent=11 // pred_region
        _
      $region28: #{net_forward.6} parent=11 // pred_fallthru
        _
      // Predicated region
      $region29: #{net_forward.6} parent=11 // pred_check
        %p287 = pneg %p182
      $region30: #{net_forward.6} parent=11 // pred_check_branch
        %289 = sbr.rel (%p287) target = $region32
      $region31: #{net_forward.6} parent=11 // pred_region
        _
      $region32: #{net_forward.6} parent=11 // pred_fallthru
        _
    $region12: #{net_forward.6} parent=5 // pred_fallthru
      _
    %p290 = scmp.lt.s32.totalorder %s25, 2
    // Predicated region
    $region33: #{net_forward.6} parent=5 // pred_check
      %p291 = pneg %p290
    $region34: #{net_forward.6} parent=5 // pred_check_branch
      %293 = sbr.rel (%p291) target = $region36
    $region35: #{net_forward.6} parent=5 // pred_region
      // Predicated region
      $region37: #{net_forward.6} parent=35 // pred_check
        %p294 = pneg %p45
      $region38: #{net_forward.6} parent=35 // pred_check_branch
        %296 = sbr.rel (%p294) target = $region40
      $region39: #{net_forward.6} parent=35 // pred_region
        %s297 = smul.u32 4, %s25
        %p298 = scmp.lt.s32.totalorder %s297, 7
        %s299 = scalar_select %p298, %s297, 7
        %s300 = smul.addr %s299, 4
        %s301 = scalar_lea.vmem %s1, %s300
        %s302 = smul.u32 4, %s25
      $region40: #{net_forward.6} parent=35 // pred_fallthru
        _
      // Predicated region
      $region41: #{net_forward.6} parent=35 // pred_check
        %p303 = pneg %p71
      $region42: #{net_forward.6} parent=35 // pred_check_branch
        %305 = sbr.rel (%p303) target = $region44
      $region43: #{net_forward.6} parent=35 // pred_region
        %s306 = smul.u32 4, %s25
        %p307 = scmp.lt.s32.totalorder %s306, 7
        %s308 = scalar_select %p307, %s306, 7
        %s309 = smul.addr %s308, 4
        %s310 = scalar_lea.vmem %s2, %s309
        %s311 = smul.u32 4, %s25
      $region44: #{net_forward.6} parent=35 // pred_fallthru
        _
    $region36: #{net_forward.6} parent=5 // pred_fallthru
      _
    %p312 = scmp.le.s32.totalorder 1, %s25
    %p313 = scmp.lt.s32.totalorder %s25, 3
    %p314 = pnand %p312, %p313
    %p315 = pneg %p314
    // Predicated region
    $region45: #{net_forward.6} parent=5 // pred_check
      _
    $region46: #{net_forward.6} parent=5 // pred_check_branch
      %317 = sbr.rel (%p314) target = $region48
    $region47: #{net_forward.6} parent=5 // pred_region
      %s318 = ssub.s32 %s25, 1
      %s319 = smul.u32 4, %s30
      %p320 = scmp.lt.s32.totalorder %s319, 7
      %s321 = scalar_select %p320, %s319, 7
      %s322 = smul.addr %s321, 4
      %s323 = scalar_lea.vmem %s1, %s322
      %p324 = pneg %p51
      %p325 = pneg %p48
      %s326 = smul.u32 4, %s30
      %p327 = scmp.lt.s32.totalorder %s326, 7
      %s328 = scalar_select %p327, %s326, 7
      %s329 = smul.addr %s328, 4
      %s330 = scalar_lea.vmem %s2, %s329
      %p331 = pneg %p77
      %p332 = pneg %p74
      %p333 = pneg %p98
      %p334 = pneg %p95
      %p335 = pneg %p119
      %p336 = pneg %p116
      %p337 = pneg %p140
      %p338 = pneg %p137
      %p339 = pneg %p161
      %p340 = pneg %p158
      %p341 = pneg %p182
      %p342 = pneg %p179
      %p343 = pneg %p208
      %p344 = pneg %p205
      %s345 = smul.u32 4, %s30
      %p346 = scmp.lt.s32.totalorder %s345, 7
      %s347 = scalar_select %p346, %s345, 7
      %s348 = smul.addr %s347, 4
      %s349 = scalar_lea.vmem %s8, %s348
      %p350 = pneg %p234
      %p351 = pneg %p231
      %s352 = smul.u32 4, %s30
      %p353 = scmp.lt.s32.totalorder %s352, 7
      %s354 = scalar_select %p353, %s352, 7
      %s355 = smul.addr %s354, 4
      %s356 = scalar_lea.vmem %s9, %s355
      %p357 = pneg %p260
      %p358 = pneg %p257
      %s359 = smul.u32 4, %s30
      %p360 = scmp.lt.s32.totalorder %s359, 7
      %s361 = scalar_select %p360, %s359, 7
      %s362 = smul.addr %s361, 8
      %s363 = scalar_lea.vmem %s10, %s362
      %s364 = smul.u32 4, %s30
      %p365 = scmp.lt.s32.totalorder %s364, 7
      %s366 = scalar_select %p365, %s364, 7
      %s367 = smul.addr %s366, 4
      %s368 = scalar_lea.vmem %s1, %s367
      %s369 = smul.u32 4, %s30
      %s370 = smul.u32 4, %s30
      %p371 = scmp.lt.s32.totalorder %s370, 7
      %s372 = scalar_select %p371, %s370, 7
      %s373 = smul.addr %s372, 4
      %s374 = scalar_lea.vmem %s2, %s373
      %s375 = smul.u32 4, %s30
      %s376 = smul.u32 4, %s30
      %p377 = scmp.lt.s32.totalorder %s376, 7
      %s378 = scalar_select %p377, %s376, 7
      %s379 = smul.addr %s378, 4
      %s380 = scalar_lea.vmem %s8, %s379
      %s381 = smul.u32 4, %s30
      %s382 = smul.u32 4, %s30
      %p383 = scmp.lt.s32.totalorder %s382, 7
      %s384 = scalar_select %p383, %s382, 7
      %s385 = smul.addr %s384, 4
      %s386 = scalar_lea.vmem %s9, %s385
      %s387 = smul.u32 4, %s30
      %s388 = smul.u32 4, %s30
      %p389 = scmp.lt.s32.totalorder %s388, 7
      %s390 = scalar_select %p389, %s388, 7
      %s391 = smul.addr %s390, 8
      %s392 = scalar_lea.vmem %s10, %s391
      %s393 = smul.u32 4, %s30
      %s395 = smul.u32 %s30, 160
      loop: start=0, step=1, limit=32
      $region49: #{net_forward.6} parent=47 // loop_pre_header
        _
      $region50: #{net_forward.6} parent=47 // loop_header
        %s397 = sphi 0, %s401
        %p398 = scmp.ge.s32.totalorder %s397, 32
      $region51: #{net_forward.6} parent=47 // loop_header_branch
        %400 = sbr.rel (%p398) target = $region55
      $region52: #{net_forward.6} parent=47 // loop_body
        %s402 = smul.u32 %s397, 5
        %s403 = sadd.s32 %s395, %s402
        %s404 = sld [smem:[#allocation4 + %s403]]
        %s405 = scalar_lea.vmem %s3, %s404
        %v406 = vld [vmem:[%s405] sm:$0x1]
        %s407 = sadd.s32 %s403, 1
        %s408 = sld [smem:[#allocation4 + %s407]]
        %s409 = scalar_lea.vmem %s3, %s408
        %v410 = vld [vmem:[%s409] sm:$0x1]
        %v411 = vmax.f32 %v406, %v410
        %s412 = sadd.s32 %s403, 2
        %s413 = sld [smem:[#allocation4 + %s412]]
        %s414 = scalar_lea.vmem %s3, %s413
        %v415 = vld [vmem:[%s414] sm:$0x1]
        %v416 = vmax.f32 %v411, %v415
        %s417 = sadd.s32 %s403, 3
        %s418 = sld [smem:[#allocation4 + %s417]]
        %s419 = scalar_lea.vmem %s3, %s418
        %v420 = vld [vmem:[%s419] sm:$0x1]
        %v421 = vmax.f32 %v416, %v420
        %s422 = sadd.s32 %s403, 4
        %s423 = sld [smem:[#allocation4 + %s422]]
        %s424 = scalar_lea.vmem %s3, %s423
        %v425 = vld [vmem:[%s424] sm:$0x1]
        %v426 = vmax.f32 %v421, %v425
        %s427 = scalar_lea.vmem [#allocation2], %s397
        %vm428 = vcmask 516096
        %429 = vst.msk [vmem:[%s427] sm:$0x1] %vm428, %v426
      $region53: #{net_forward.6} parent=47 // loop_footer
        %s401 = sadd.s32 1, %s397
      $region54: #{net_forward.6} parent=47 // loop_footer_branch
        %396 = sbr.rel target = $region50
      $region55: #{net_forward.6} parent=47 // loop_exit
        _
      %v430 = vld [vmem:[%s368] sm:$0xf]
      %v431 = vld [vmem:[%s368 + $0x4] sm:$0xf]
      %v432 = vld [vmem:[%s368 + $0x8] sm:$0xf]
      %v433 = vld [vmem:[%s368 + $0xc] sm:$0xf]
      %v434 = vunpack.c.l.bf16 %v430
      %v435 = vunpack.c.l.bf16 %v431
      %v436 = vunpack.c.l.bf16 %v432
      %v437 = vunpack.c.l.bf16 %v433
      %v438 = vld [vmem:[#allocation2] sm:$0xff]
      %v439 = vld [vmem:[#allocation2 + $0x8] sm:$0xff]
      %v440 = vld [vmem:[#allocation2 + $0x10] sm:$0xff]
      %v441 = vld [vmem:[#allocation2 + $0x18] sm:$0xff]
      %v442 = vadd.f32 %v434, %v438
      %v443 = vadd.f32 %v435, %v439
      %v444 = vadd.f32 %v436, %v440
      %v445 = vadd.f32 %v437, %v441
      %vm446 = vcmp.gt.f32.partialorder %v442, 0.0
      %vm447 = vcmp.gt.f32.partialorder %v443, 0.0
      %vm448 = vcmp.gt.f32.partialorder %v444, 0.0
      %vm449 = vcmp.gt.f32.partialorder %v445, 0.0
      %v450 = vmin.f32 %v442, 0.0
      %v451 = vmin.f32 %v443, 0.0
      %v452 = vmin.f32 %v444, 0.0
      %v453 = vmin.f32 %v445, 0.0
      %v454 = vmul.f32 %v450, 1.442695
      %v455 = vpow.pop %v454
      %v456 = vmul.f32 %v451, 1.442695
      %v457 = vpow.pop %v456
      %v458 = vmul.f32 %v452, 1.442695
      %v459 = vpow.pop %v458
      %v460 = vmul.f32 %v453, 1.442695
      %v461 = vpow.pop %v460
      %v462 = vsub.f32 %v455, 1.0
      %v463 = vsub.f32 %v457, 1.0
      %v464 = vsub.f32 %v459, 1.0
      %v465 = vsub.f32 %v461, 1.0
      %v466 = vsel %vm446, %v442, %v462
      %v467 = vsel %vm447, %v443, %v463
      %v468 = vsel %vm448, %v444, %v464
      %v469 = vsel %vm449, %v445, %v465
      %v470 = vld [vmem:[%s4] sm:$0x1]
      %v472 = vperm.slane %v470, 0
      %v474 = vmul.f32 %v466, %v472
      %v475 = vmul.f32 %v467, %v472
      %v476 = vmul.f32 %v468, %v472
      %v477 = vmul.f32 %v469, %v472
      %v478 = vld [vmem:[%s5] sm:$0x1]
      %v480 = vperm.slane %v478, 0
      %v482 = vadd.f32 %v474, %v480
      %v483 = vadd.f32 %v475, %v480
      %v484 = vadd.f32 %v476, %v480
      %v485 = vadd.f32 %v477, %v480
      %v486 = vld [vmem:[%s374] sm:$0xf]
      %v487 = vld [vmem:[%s374 + $0x4] sm:$0xf]
      %v488 = vld [vmem:[%s374 + $0x8] sm:$0xf]
      %v489 = vld [vmem:[%s374 + $0xc] sm:$0xf]
      %v490 = vunpack.c.l.bf16 %v486
      %v491 = vunpack.c.l.bf16 %v487
      %v492 = vunpack.c.l.bf16 %v488
      %v493 = vunpack.c.l.bf16 %v489
      %v494 = vadd.f32 %v482, %v490
      %v495 = vadd.f32 %v483, %v491
      %v496 = vadd.f32 %v484, %v492
      %v497 = vadd.f32 %v485, %v493
      %v498 = vpack.c.bf16 %v494, %v494
      %v499 = vpack.c.bf16 %v495, %v495
      %v500 = vpack.c.bf16 %v496, %v496
      %v501 = vpack.c.bf16 %v497, %v497
      %vm502 = vcmask 519168
      %503 = vst.msk [vmem:[%s380] sm:$0xf] %vm502, %v498
      %504 = vst.msk [vmem:[%s380 + $0x4] sm:$0xf] %vm502, %v499
      %505 = vst.msk [vmem:[%s380 + $0x8] sm:$0xf] %vm502, %v500
      %506 = vst.msk [vmem:[%s380 + $0xc] sm:$0xf] %vm502, %v501
      %v507 = vld [vmem:[%s6] sm:$0xf]
      %v508 = vld [vmem:[%s6 + $0x4] sm:$0xf]
      %v509 = vld [vmem:[%s6 + $0x8] sm:$0xf]
      %v510 = vld [vmem:[%s6 + $0xc] sm:$0xf]
      %v511 = vld [vmem:[%s6 + $0x10] sm:$0xf]
      %v512 = vld [vmem:[%s6 + $0x14] sm:$0xf]
      %v513 = vld [vmem:[%s6 + $0x18] sm:$0xf]
      %v514 = vld [vmem:[%s6 + $0x1c] sm:$0xf]
      %v515 = vld [vmem:[%s7] sm:$0x1]
      %v517 = vperm.slane %v515, 0
      %v523 = vunpack.c.l.b16 %v498
      %v524 = vunpack.c.l.b16 %v499
      %v525 = vunpack.c.l.b16 %v500
      %v526 = vunpack.c.l.b16 %v501
      %v527 = vpack.c.b16 %v524, %v523
      %v528 = vpack.c.b16 %v526, %v525
      %v537 = vunpack.c.l.b16 %v507
      %v538 = vunpack.c.l.b16 %v508
      %v539 = vunpack.c.l.b16 %v509
      %v540 = vunpack.c.l.b16 %v510
      %v541 = vunpack.c.l.b16 %v511
      %v542 = vunpack.c.l.b16 %v512
      %v543 = vunpack.c.l.b16 %v513
      %v544 = vunpack.c.l.b16 %v514
      %v545 = vpack.c.b16 %v538, %v537
      %v546 = vpack.c.b16 %v540, %v539
      %v547 = vpack.c.b16 %v542, %v541
      %v548 = vpack.c.b16 %v544, %v543
      %vm553 = vcmask 523264
      %v555 = vsel %vm553, %v527, 0
      %v558 = vsel %vm553, %v528, 0
      %560 = vmatpush.bf16.msra.mxu0 0
      %561 = vmatpush.bf16.msra.mxu0 0
      %562 = vmatpush.bf16.msra.mxu0 0
      %563 = vmatpush.bf16.msra.mxu0 0
      %564 = vmatpush.bf16.msra.mxu0 %v548
      %565 = vmatpush.bf16.msra.mxu0 %v547
      %566 = vmatpush.bf16.msra.mxu0 %v546
      %567 = vmatpush.bf16.msra.mxu0 %v545
      %568 = vmatmul.bf16.gmra.mxu0 %v555
      %v569 = vpop.f32.mrf.mxu0
      %v570 = vadd.f32 %v517, %v569
      %v571 = vpop.f32.mrf.mxu0
      %v572 = vadd.f32 %v517, %v571
      %573 = vmatmul.bf16.gmra.mxu0 %v558
      %v574 = vpop.f32.mrf.mxu0
      %v575 = vadd.f32 %v517, %v574
      %v576 = vpop.f32.mrf.mxu0
      %v577 = vadd.f32 %v517, %v576
      %578 = vdwg.mxu0
      %v579 = vpack.c.bf16 %v570, %v570
      %v580 = vpack.c.bf16 %v572, %v572
      %v581 = vpack.c.bf16 %v575, %v575
      %v582 = vpack.c.bf16 %v577, %v577
      %583 = vst.msk [vmem:[%s386] sm:$0xf] %vm502, %v579
      %584 = vst.msk [vmem:[%s386 + $0x4] sm:$0xf] %vm502, %v580
      %585 = vst.msk [vmem:[%s386 + $0x8] sm:$0xf] %vm502, %v581
      %586 = vst.msk [vmem:[%s386 + $0xc] sm:$0xf] %vm502, %v582
      %591 = vrot.lane.b32.xlu0 %v570, 64
      %v592 = vpop.permute.xlu0 %591
      %593 = vrot.lane.b32.xlu0 %v572, 64
      %v594 = vpop.permute.xlu0 %593
      %595 = vrot.lane.b32.xlu0 %v575, 64
      %v596 = vpop.permute.xlu0 %595
      %597 = vrot.lane.b32.xlu0 %v577, 64
      %v598 = vpop.permute.xlu0 %597
      %603 = vst.msk [vmem:[%s392] sm:$0xff] %vm553, %v592
      %604 = vst.msk [vmem:[%s392 + $0x8] sm:$0xff] %vm553, %v594
      %605 = vst.msk [vmem:[%s392 + $0x10] sm:$0xff] %vm553, %v596
      %606 = vst.msk [vmem:[%s392 + $0x18] sm:$0xff] %vm553, %v598
      %s607 = smul.u32 4, %s30
      %p608 = scmp.lt.s32.totalorder %s607, 7
      %s609 = scalar_select %p608, %s607, 7
      %s610 = smul.addr %s609, 4
      %s611 = scalar_lea.vmem %s8, %s610
      %s612 = smul.u32 4, %s30
      %p613 = scmp.lt.s32.totalorder %s612, 7
      %s614 = scalar_select %p613, %s612, 7
      %s615 = smul.addr %s614, 4
      %s616 = scalar_lea.vmem %s9, %s615
      %s617 = smul.u32 4, %s30
      %p618 = scmp.lt.s32.totalorder %s617, 7
      %s619 = scalar_select %p618, %s617, 7
      %s620 = smul.addr %s619, 8
      %s621 = scalar_lea.vmem %s10, %s620
      // Predicated region
      $region56: #{net_forward.6} parent=47 // pred_check
        %p622 = pneg %p205
      $region57: #{net_forward.6} parent=47 // pred_check_branch
        %624 = sbr.rel (%p622) target = $region59
      $region58: #{net_forward.6} parent=47 // pred_region
        %s625 = smul.u32 4, %s30
      $region59: #{net_forward.6} parent=47 // pred_fallthru
        _
      // Predicated region
      $region60: #{net_forward.6} parent=47 // pred_check
        %p626 = pneg %p231
      $region61: #{net_forward.6} parent=47 // pred_check_branch
        %628 = sbr.rel (%p626) target = $region63
      $region62: #{net_forward.6} parent=47 // pred_region
        %s629 = smul.u32 4, %s30
      $region63: #{net_forward.6} parent=47 // pred_fallthru
        _
      // Predicated region
      $region64: #{net_forward.6} parent=47 // pred_check
        %p630 = pneg %p257
      $region65: #{net_forward.6} parent=47 // pred_check_branch
        %632 = sbr.rel (%p630) target = $region67
      $region66: #{net_forward.6} parent=47 // pred_region
        %s633 = smul.u32 4, %s30
      $region67: #{net_forward.6} parent=47 // pred_fallthru
        _
    $region48: #{net_forward.6} parent=5 // pred_fallthru
      _
    %p634 = scmp.le.s32.totalorder 2, %s25
    // Predicated region
    $region68: #{net_forward.6} parent=5 // pred_check
      %p635 = pneg %p634
    $region69: #{net_forward.6} parent=5 // pred_check_branch
      %637 = sbr.rel (%p635) target = $region71
    $region70: #{net_forward.6} parent=5 // pred_region
      %s638 = ssub.s32 %s25, 2
      // Predicated region
      $region72: #{net_forward.6} parent=70 // pred_check
        %p639 = pneg %p211
      $region73: #{net_forward.6} parent=70 // pred_check_branch
        %641 = sbr.rel (%p639) target = $region75
      $region74: #{net_forward.6} parent=70 // pred_region
        %s642 = smul.u32 4, %s31
        %p643 = scmp.lt.s32.totalorder %s642, 7
        %s644 = scalar_select %p643, %s642, 7
        %s645 = smul.addr %s644, 4
        %s646 = scalar_lea.vmem %s8, %s645
      $region75: #{net_forward.6} parent=70 // pred_fallthru
        _
      // Predicated region
      $region76: #{net_forward.6} parent=70 // pred_check
        %p647 = pneg %p237
      $region77: #{net_forward.6} parent=70 // pred_check_branch
        %649 = sbr.rel (%p647) target = $region79
      $region78: #{net_forward.6} parent=70 // pred_region
        %s650 = smul.u32 4, %s31
        %p651 = scmp.lt.s32.totalorder %s650, 7
        %s652 = scalar_select %p651, %s650, 7
        %s653 = smul.addr %s652, 4
        %s654 = scalar_lea.vmem %s9, %s653
      $region79: #{net_forward.6} parent=70 // pred_fallthru
        _
      // Predicated region
      $region80: #{net_forward.6} parent=70 // pred_check
        %p655 = pneg %p263
      $region81: #{net_forward.6} parent=70 // pred_check_branch
        %657 = sbr.rel (%p655) target = $region83
      $region82: #{net_forward.6} parent=70 // pred_region
        %s658 = smul.u32 4, %s31
        %p659 = scmp.lt.s32.totalorder %s658, 7
        %s660 = scalar_select %p659, %s658, 7
        %s661 = smul.addr %s660, 8
        %s662 = scalar_lea.vmem %s10, %s661
      $region83: #{net_forward.6} parent=70 // pred_fallthru
        _
    $region71: #{net_forward.6} parent=5 // pred_fallthru
      _
  $region6: #{net_forward.6} parent=0 // loop_footer
    %s29 = sadd.s32 1, %s25
  $region7: #{net_forward.6} parent=0 // loop_footer_branch
    %24 = sbr.rel target = $region3
  $region8: #{net_forward.6} parent=0 // loop_exit
    _

// kernel: net_forward.7
$region0: #{net_forward.7}
  #allocation0 [shape = 'u32[]', space=smem, size = 0x4, offset = 0x4, fixed_abs, tag = 'smem constant byte address 0x4 - core index']
  #allocation1 [shape = 'u32[72,128]{1,0:T(1,128)}', space=vmem, size = 0x9000, scoped, tag = 'internal scratch']
  #allocation2 [shape = 'f32[32,64]{1,0:T(8,128)}', space=vmem, size = 0x4000, scoped, tag = 'scratch operand']
  #allocation3 [shape = 's32[1]{0}', space=sflag, size = 0x4, scoped, tag = 'scoped memory for net_forward.7']
  #allocation4 [shape = 'u8[5120]{0}', space=smem, size = 0x1400, scoped, tag = 'prefetched SMEM operand 0']
  %s0 = inlined_call_operand.vmem [shape: s32[1280], index: 0, kind: input, shape index: {}]
  %s1 = inlined_call_operand.vmem [shape: bf16[64,64], index: 1, kind: input, shape index: {}]
  %s2 = inlined_call_operand.vmem [shape: bf16[64,64], index: 2, kind: input, shape index: {}]
  %s3 = inlined_call_operand.vmem [shape: f32[64,64], index: 3, kind: input, shape index: {}]
  %s4 = inlined_call_operand.vmem [shape: f32[1,64], index: 4, kind: input, shape index: {}]
  %s5 = inlined_call_operand.vmem [shape: f32[1,64], index: 5, kind: input, shape index: {}]
  %s6 = inlined_call_operand.vmem [shape: bf16[64,128], index: 6, kind: input, shape index: {}]
  %s7 = inlined_call_operand.vmem [shape: f32[1,128], index: 7, kind: input, shape index: {}]
  %s8 = inlined_call_operand.vmem [shape: bf16[64,64], index: 8, kind: output, shape index: {0}]
  %s9 = inlined_call_operand.vmem [shape: bf16[64,64], index: 9, kind: output, shape index: {1}]
  %s10 = inlined_call_operand.vmem [shape: f32[64,64], index: 10, kind: output, shape index: {2}]
  %11 = xla_tuple %s8, %s9, %s10
  %s12 = sld [smem:[#allocation0]]
  $region84: #{net_forward.7} parent=0
    _
  %s14 = ssub.s32 1, %s12
  %s15 = scalar_select 0, %s14, %s12
  %s17 = sshll.u32 %s0, 4
  %s18 = int_to_ptr.vmem [resolvable:$true] %s17
  %20 = dma.vmem_to_smem %s18, 160, [#allocation4], [#allocation3]
  %22 = dma.done [#allocation3], 160
  %23 = sfence
  loop: start=0, step=1, limit=4
  $region2: #{net_forward.7} parent=0 // loop_pre_header
    _
  $region3: #{net_forward.7} parent=0 // loop_header
    %s25 = sphi 0, %s29
    %p26 = scmp.ge.s32.totalorder %s25, 4
    %s35 = sphi 0, %s37
    %s38 = sphi 0, %s35
    %s39 = sphi 0, %s38
    %s55 = sphi 0, %s39
    %s61 = sphi 0, %s63
    %s64 = sphi 0, %s61
    %s65 = sphi 0, %s64
    %s81 = sphi 0, %s65
    %s85 = sphi 0, %s85
    %s87 = sphi 0, %s85
    %s88 = sphi 0, %s87
    %s102 = sphi 0, %s88
    %s106 = sphi 0, %s106
    %s108 = sphi 0, %s106
    %s109 = sphi 0, %s108
    %s123 = sphi 0, %s109
    %s127 = sphi 0, %s127
    %s129 = sphi 0, %s127
    %s130 = sphi 0, %s129
    %s144 = sphi 0, %s130
    %s148 = sphi 0, %s148
    %s150 = sphi 0, %s148
    %s151 = sphi 0, %s150
    %s165 = sphi 0, %s151
    %s169 = sphi 0, %s169
    %s171 = sphi 0, %s169
    %s172 = sphi 0, %s171
    %s186 = sphi 0, %s172
    %s192 = sphi 0, %s194
    %s195 = sphi 0, %s192
    %s196 = sphi 0, %s195
    %s212 = sphi 0, %s196
    %s218 = sphi 0, %s220
    %s221 = sphi 0, %s218
    %s222 = sphi 0, %s221
    %s238 = sphi 0, %s222
    %s244 = sphi 0, %s246
    %s247 = sphi 0, %s244
    %s248 = sphi 0, %s247
    %s264 = sphi 0, %s248
  $region4: #{net_forward.7} parent=0 // loop_header_branch
    %28 = sbr.rel (%p26) target = $region8
  $region5: #{net_forward.7} parent=0 // loop_body
    %s30 = ssub.s32 %s25, 1
    %s31 = ssub.s32 %s25, 2
    %s32 = sadd.s32 %s25, 1
    %s33 = ssub.s32 %s25, %s32
    %p34 = scmp.eq.s32.totalorder %s33, 0
    %s36 = sadd.s32 %s35, 1
    %s37 = scalar_select %p34, %s35, %s36
    %p40 = pneg %p34
    %p41 = scmp.eq.s32.totalorder %s25, 1
    %p42 = por %p40, %p41
    %p43 = scmp.ne.s32.totalorder %s35, %s38
    %p44 = scmp.eq.s32.totalorder %s25, 0
    %p45 = por %p43, %p44
    %p46 = scmp.ne.s32.totalorder %s35, %s38
    %p47 = scmp.eq.s32.totalorder %s30, 1
    %p48 = por %p46, %p47
    %p49 = scmp.ne.s32.totalorder %s38, %s39
    %p50 = scmp.eq.s32.totalorder %s30, 0
    %p51 = por %p49, %p50
    %p52 = scmp.ne.s32.totalorder %s38, %s39
    %p53 = scmp.eq.s32.totalorder %s31, 1
    %p54 = por %p52, %p53
    %p56 = scmp.ne.s32.totalorder %s39, %s55
    %p57 = scmp.eq.s32.totalorder %s31, 0
    %p58 = por %p56, %p57
    %s59 = ssub.s32 %s25, %s32
    %p60 = scmp.eq.s32.totalorder %s59, 0
    %s62 = sadd.s32 %s61, 1
    %s63 = scalar_select %p60, %s61, %s62
    %p66 = pneg %p60
    %p67 = scmp.eq.s32.totalorder %s25, 1
    %p68 = por %p66, %p67
    %p69 = scmp.ne.s32.totalorder %s61, %s64
    %p70 = scmp.eq.s32.totalorder %s25, 0
    %p71 = por %p69, %p70
    %p72 = scmp.ne.s32.totalorder %s61, %s64
    %p73 = scmp.eq.s32.totalorder %s30, 1
    %p74 = por %p72, %p73
    %p75 = scmp.ne.s32.totalorder %s64, %s65
    %p76 = scmp.eq.s32.totalorder %s30, 0
    %p77 = por %p75, %p76
    %p78 = scmp.ne.s32.totalorder %s64, %s65
    %p79 = scmp.eq.s32.totalorder %s31, 1
    %p80 = por %p78, %p79
    %p82 = scmp.ne.s32.totalorder %s65, %s81
    %p83 = scmp.eq.s32.totalorder %s31, 0
    %p84 = por %p82, %p83
    %s86 = sadd.s32 %s85, 1
    %p89 = scmp.eq.s32.totalorder %s25, 1
    %p90 = scmp.ne.s32.totalorder %s85, %s87
    %p91 = scmp.eq.s32.totalorder %s25, 0
    %p92 = por %p90, %p91
    %p93 = scmp.ne.s32.totalorder %s85, %s87
    %p94 = scmp.eq.s32.totalorder %s30, 1
    %p95 = por %p93, %p94
    %p96 = scmp.ne.s32.totalorder %s87, %s88
    %p97 = scmp.eq.s32.totalorder %s30, 0
    %p98 = por %p96, %p97
    %p99 = scmp.ne.s32.totalorder %s87, %s88
    %p100 = scmp.eq.s32.totalorder %s31, 1
    %p101 = por %p99, %p100
    %p103 = scmp.ne.s32.totalorder %s88, %s102
    %p104 = scmp.eq.s32.totalorder %s31, 0
    %p105 = por %p103, %p104
    %s107 = sadd.s32 %s106, 1
    %p110 = scmp.eq.s32.totalorder %s25, 1
    %p111 = scmp.ne.s32.totalorder %s106, %s108
    %p112 = scmp.eq.s32.totalorder %s25, 0
    %p113 = por %p111, %p112
    %p114 = scmp.ne.s32.totalorder %s106, %s108
    %p115 = scmp.eq.s32.totalorder %s30, 1
    %p116 = por %p114, %p115
    %p117 = scmp.ne.s32.totalorder %s108, %s109
    %p118 = scmp.eq.s32.totalorder %s30, 0
    %p119 = por %p117, %p118
    %p120 = scmp.ne.s32.totalorder %s108, %s109
    %p121 = scmp.eq.s32.totalorder %s31, 1
    %p122 = por %p120, %p121
    %p124 = scmp.ne.s32.totalorder %s109, %s123
    %p125 = scmp.eq.s32.totalorder %s31, 0
    %p126 = por %p124, %p125
    %s128 = sadd.s32 %s127, 1
    %p131 = scmp.eq.s32.totalorder %s25, 1
    %p132 = scmp.ne.s32.totalorder %s127, %s129
    %p133 = scmp.eq.s32.totalorder %s25, 0
    %p134 = por %p132, %p133
    %p135 = scmp.ne.s32.totalorder %s127, %s129
    %p136 = scmp.eq.s32.totalorder %s30, 1
    %p137 = por %p135, %p136
    %p138 = scmp.ne.s32.totalorder %s129, %s130
    %p139 = scmp.eq.s32.totalorder %s30, 0
    %p140 = por %p138, %p139
    %p141 = scmp.ne.s32.totalorder %s129, %s130
    %p142 = scmp.eq.s32.totalorder %s31, 1
    %p143 = por %p141, %p142
    %p145 = scmp.ne.s32.totalorder %s130, %s144
    %p146 = scmp.eq.s32.totalorder %s31, 0
    %p147 = por %p145, %p146
    %s149 = sadd.s32 %s148, 1
    %p152 = scmp.eq.s32.totalorder %s25, 1
    %p153 = scmp.ne.s32.totalorder %s148, %s150
    %p154 = scmp.eq.s32.totalorder %s25, 0
    %p155 = por %p153, %p154
    %p156 = scmp.ne.s32.totalorder %s148, %s150
    %p157 = scmp.eq.s32.totalorder %s30, 1
    %p158 = por %p156, %p157
    %p159 = scmp.ne.s32.totalorder %s150, %s151
    %p160 = scmp.eq.s32.totalorder %s30, 0
    %p161 = por %p159, %p160
    %p162 = scmp.ne.s32.totalorder %s150, %s151
    %p163 = scmp.eq.s32.totalorder %s31, 1
    %p164 = por %p162, %p163
    %p166 = scmp.ne.s32.totalorder %s151, %s165
    %p167 = scmp.eq.s32.totalorder %s31, 0
    %p168 = por %p166, %p167
    %s170 = sadd.s32 %s169, 1
    %p173 = scmp.eq.s32.totalorder %s25, 1
    %p174 = scmp.ne.s32.totalorder %s169, %s171
    %p175 = scmp.eq.s32.totalorder %s25, 0
    %p176 = por %p174, %p175
    %p177 = scmp.ne.s32.totalorder %s169, %s171
    %p178 = scmp.eq.s32.totalorder %s30, 1
    %p179 = por %p177, %p178
    %p180 = scmp.ne.s32.totalorder %s171, %s172
    %p181 = scmp.eq.s32.totalorder %s30, 0
    %p182 = por %p180, %p181
    %p183 = scmp.ne.s32.totalorder %s171, %s172
    %p184 = scmp.eq.s32.totalorder %s31, 1
    %p185 = por %p183, %p184
    %p187 = scmp.ne.s32.totalorder %s172, %s186
    %p188 = scmp.eq.s32.totalorder %s31, 0
    %p189 = por %p187, %p188
    %s190 = ssub.s32 %s25, %s32
    %p191 = scmp.eq.s32.totalorder %s190, 0
    %s193 = sadd.s32 %s192, 1
    %s194 = scalar_select %p191, %s192, %s193
    %p197 = pneg %p191
    %p198 = scmp.eq.s32.totalorder %s25, 1
    %p199 = por %p197, %p198
    %p200 = scmp.ne.s32.totalorder %s192, %s195
    %p201 = scmp.eq.s32.totalorder %s25, 0
    %p202 = por %p200, %p201
    %p203 = scmp.ne.s32.totalorder %s192, %s195
    %p204 = scmp.eq.s32.totalorder %s30, 1
    %p205 = por %p203, %p204
    %p206 = scmp.ne.s32.totalorder %s195, %s196
    %p207 = scmp.eq.s32.totalorder %s30, 0
    %p208 = por %p206, %p207
    %p209 = scmp.ne.s32.totalorder %s195, %s196
    %p210 = scmp.eq.s32.totalorder %s31, 1
    %p211 = por %p209, %p210
    %p213 = scmp.ne.s32.totalorder %s196, %s212
    %p214 = scmp.eq.s32.totalorder %s31, 0
    %p215 = por %p213, %p214
    %s216 = ssub.s32 %s25, %s32
    %p217 = scmp.eq.s32.totalorder %s216, 0
    %s219 = sadd.s32 %s218, 1
    %s220 = scalar_select %p217, %s218, %s219
    %p223 = pneg %p217
    %p224 = scmp.eq.s32.totalorder %s25, 1
    %p225 = por %p223, %p224
    %p226 = scmp.ne.s32.totalorder %s218, %s221
    %p227 = scmp.eq.s32.totalorder %s25, 0
    %p228 = por %p226, %p227
    %p229 = scmp.ne.s32.totalorder %s218, %s221
    %p230 = scmp.eq.s32.totalorder %s30, 1
    %p231 = por %p229, %p230
    %p232 = scmp.ne.s32.totalorder %s221, %s222
    %p233 = scmp.eq.s32.totalorder %s30, 0
    %p234 = por %p232, %p233
    %p235 = scmp.ne.s32.totalorder %s221, %s222
    %p236 = scmp.eq.s32.totalorder %s31, 1
    %p237 = por %p235, %p236
    %p239 = scmp.ne.s32.totalorder %s222, %s238
    %p240 = scmp.eq.s32.totalorder %s31, 0
    %p241 = por %p239, %p240
    %s242 = ssub.s32 %s25, %s32
    %p243 = scmp.eq.s32.totalorder %s242, 0
    %s245 = sadd.s32 %s244, 1
    %s246 = scalar_select %p243, %s244, %s245
    %p249 = pneg %p243
    %p250 = scmp.eq.s32.totalorder %s25, 1
    %p251 = por %p249, %p250
    %p252 = scmp.ne.s32.totalorder %s244, %s247
    %p253 = scmp.eq.s32.totalorder %s25, 0
    %p254 = por %p252, %p253
    %p255 = scmp.ne.s32.totalorder %s244, %s247
    %p256 = scmp.eq.s32.totalorder %s30, 1
    %p257 = por %p255, %p256
    %p258 = scmp.ne.s32.totalorder %s247, %s248
    %p259 = scmp.eq.s32.totalorder %s30, 0
    %p260 = por %p258, %p259
    %p261 = scmp.ne.s32.totalorder %s247, %s248
    %p262 = scmp.eq.s32.totalorder %s31, 1
    %p263 = por %p261, %p262
    %p265 = scmp.ne.s32.totalorder %s248, %s264
    %p266 = scmp.eq.s32.totalorder %s31, 0
    %p267 = por %p265, %p266
    %p268 = scmp.le.s32.totalorder 1, %s25
    %p269 = scmp.lt.s32.totalorder %s25, 3
    %p270 = pnand %p268, %p269
    %p271 = pneg %p270
    // Predicated region
    $region9: #{net_forward.7} parent=5 // pred_check
      _
    $region10: #{net_forward.7} parent=5 // pred_check_branch
      %273 = sbr.rel (%p270) target = $region12
    $region11: #{net_forward.7} parent=5 // pred_region
      %s274 = ssub.s32 %s25, 1
      // Predicated region
      $region13: #{net_forward.7} parent=11 // pred_check
        %p275 = pneg %p98
      $region14: #{net_forward.7} parent=11 // pred_check_branch
        %277 = sbr.rel (%p275) target = $region16
      $region15: #{net_forward.7} parent=11 // pred_region
        _
      $region16: #{net_forward.7} parent=11 // pred_fallthru
        _
      // Predicated region
      $region17: #{net_forward.7} parent=11 // pred_check
        %p278 = pneg %p119
      $region18: #{net_forward.7} parent=11 // pred_check_branch
        %280 = sbr.rel (%p278) target = $region20
      $region19: #{net_forward.7} parent=11 // pred_region
        _
      $region20: #{net_forward.7} parent=11 // pred_fallthru
        _
      // Predicated region
      $region21: #{net_forward.7} parent=11 // pred_check
        %p281 = pneg %p140
      $region22: #{net_forward.7} parent=11 // pred_check_branch
        %283 = sbr.rel (%p281) target = $region24
      $region23: #{net_forward.7} parent=11 // pred_region
        _
      $region24: #{net_forward.7} parent=11 // pred_fallthru
        _
      // Predicated region
      $region25: #{net_forward.7} parent=11 // pred_check
        %p284 = pneg %p161
      $region26: #{net_forward.7} parent=11 // pred_check_branch
        %286 = sbr.rel (%p284) target = $region28
      $region27: #{net_forward.7} parent=11 // pred_region
        _
      $region28: #{net_forward.7} parent=11 // pred_fallthru
        _
      // Predicated region
      $region29: #{net_forward.7} parent=11 // pred_check
        %p287 = pneg %p182
      $region30: #{net_forward.7} parent=11 // pred_check_branch
        %289 = sbr.rel (%p287) target = $region32
      $region31: #{net_forward.7} parent=11 // pred_region
        _
      $region32: #{net_forward.7} parent=11 // pred_fallthru
        _
    $region12: #{net_forward.7} parent=5 // pred_fallthru
      _
    %p290 = scmp.lt.s32.totalorder %s25, 2
    // Predicated region
    $region33: #{net_forward.7} parent=5 // pred_check
      %p291 = pneg %p290
    $region34: #{net_forward.7} parent=5 // pred_check_branch
      %293 = sbr.rel (%p291) target = $region36
    $region35: #{net_forward.7} parent=5 // pred_region
      // Predicated region
      $region37: #{net_forward.7} parent=35 // pred_check
        %p294 = pneg %p45
      $region38: #{net_forward.7} parent=35 // pred_check_branch
        %296 = sbr.rel (%p294) target = $region40
      $region39: #{net_forward.7} parent=35 // pred_region
        %s297 = smul.u32 4, %s25
        %p298 = scmp.lt.s32.totalorder %s297, 7
        %s299 = scalar_select %p298, %s297, 7
        %s300 = smul.addr %s299, 4
        %s301 = scalar_lea.vmem %s1, %s300
        %s302 = smul.u32 4, %s25
      $region40: #{net_forward.7} parent=35 // pred_fallthru
        _
      // Predicated region
      $region41: #{net_forward.7} parent=35 // pred_check
        %p303 = pneg %p71
      $region42: #{net_forward.7} parent=35 // pred_check_branch
        %305 = sbr.rel (%p303) target = $region44
      $region43: #{net_forward.7} parent=35 // pred_region
        %s306 = smul.u32 4, %s25
        %p307 = scmp.lt.s32.totalorder %s306, 7
        %s308 = scalar_select %p307, %s306, 7
        %s309 = smul.addr %s308, 4
        %s310 = scalar_lea.vmem %s2, %s309
        %s311 = smul.u32 4, %s25
      $region44: #{net_forward.7} parent=35 // pred_fallthru
        _
    $region36: #{net_forward.7} parent=5 // pred_fallthru
      _
    %p312 = scmp.le.s32.totalorder 1, %s25
    %p313 = scmp.lt.s32.totalorder %s25, 3
    %p314 = pnand %p312, %p313
    %p315 = pneg %p314
    // Predicated region
    $region45: #{net_forward.7} parent=5 // pred_check
      _
    $region46: #{net_forward.7} parent=5 // pred_check_branch
      %317 = sbr.rel (%p314) target = $region48
    $region47: #{net_forward.7} parent=5 // pred_region
      %s318 = ssub.s32 %s25, 1
      %s319 = smul.u32 4, %s30
      %p320 = scmp.lt.s32.totalorder %s319, 7
      %s321 = scalar_select %p320, %s319, 7
      %s322 = smul.addr %s321, 4
      %s323 = scalar_lea.vmem %s1, %s322
      %p324 = pneg %p51
      %p325 = pneg %p48
      %s326 = smul.u32 4, %s30
      %p327 = scmp.lt.s32.totalorder %s326, 7
      %s328 = scalar_select %p327, %s326, 7
      %s329 = smul.addr %s328, 4
      %s330 = scalar_lea.vmem %s2, %s329
      %p331 = pneg %p77
      %p332 = pneg %p74
      %p333 = pneg %p98
      %p334 = pneg %p95
      %p335 = pneg %p119
      %p336 = pneg %p116
      %p337 = pneg %p140
      %p338 = pneg %p137
      %p339 = pneg %p161
      %p340 = pneg %p158
      %p341 = pneg %p182
      %p342 = pneg %p179
      %p343 = pneg %p208
      %p344 = pneg %p205
      %s345 = smul.u32 4, %s30
      %p346 = scmp.lt.s32.totalorder %s345, 7
      %s347 = scalar_select %p346, %s345, 7
      %s348 = smul.addr %s347, 4
      %s349 = scalar_lea.vmem %s8, %s348
      %p350 = pneg %p234
      %p351 = pneg %p231
      %s352 = smul.u32 4, %s30
      %p353 = scmp.lt.s32.totalorder %s352, 7
      %s354 = scalar_select %p353, %s352, 7
      %s355 = smul.addr %s354, 4
      %s356 = scalar_lea.vmem %s9, %s355
      %p357 = pneg %p260
      %p358 = pneg %p257
      %s359 = smul.u32 4, %s30
      %p360 = scmp.lt.s32.totalorder %s359, 7
      %s361 = scalar_select %p360, %s359, 7
      %s362 = smul.addr %s361, 8
      %s363 = scalar_lea.vmem %s10, %s362
      %s364 = smul.u32 4, %s30
      %p365 = scmp.lt.s32.totalorder %s364, 7
      %s366 = scalar_select %p365, %s364, 7
      %s367 = smul.addr %s366, 4
      %s368 = scalar_lea.vmem %s1, %s367
      %s369 = smul.u32 4, %s30
      %s370 = smul.u32 4, %s30
      %p371 = scmp.lt.s32.totalorder %s370, 7
      %s372 = scalar_select %p371, %s370, 7
      %s373 = smul.addr %s372, 4
      %s374 = scalar_lea.vmem %s2, %s373
      %s375 = smul.u32 4, %s30
      %s376 = smul.u32 4, %s30
      %p377 = scmp.lt.s32.totalorder %s376, 7
      %s378 = scalar_select %p377, %s376, 7
      %s379 = smul.addr %s378, 4
      %s380 = scalar_lea.vmem %s8, %s379
      %s381 = smul.u32 4, %s30
      %s382 = smul.u32 4, %s30
      %p383 = scmp.lt.s32.totalorder %s382, 7
      %s384 = scalar_select %p383, %s382, 7
      %s385 = smul.addr %s384, 4
      %s386 = scalar_lea.vmem %s9, %s385
      %s387 = smul.u32 4, %s30
      %s388 = smul.u32 4, %s30
      %p389 = scmp.lt.s32.totalorder %s388, 7
      %s390 = scalar_select %p389, %s388, 7
      %s391 = smul.addr %s390, 8
      %s392 = scalar_lea.vmem %s10, %s391
      %s393 = smul.u32 4, %s30
      %s395 = smul.u32 %s30, 640
      loop: start=0, step=1, limit=32
      $region49: #{net_forward.7} parent=47 // loop_pre_header
        _
      $region50: #{net_forward.7} parent=47 // loop_header
        %s397 = sphi 0, %s401
        %p398 = scmp.ge.s32.totalorder %s397, 32
      $region51: #{net_forward.7} parent=47 // loop_header_branch
        %400 = sbr.rel (%p398) target = $region55
      $region52: #{net_forward.7} parent=47 // loop_body
        %s402 = smul.u32 %s397, 20
        %s403 = sadd.s32 %s395, %s402
        %s404 = sld [smem:[#allocation4 + %s403]]
        %s405 = scalar_lea.vmem %s3, %s404
        %v406 = vld [vmem:[%s405] sm:$0x1]
        %s407 = sadd.s32 %s403, 1
        %s408 = sld [smem:[#allocation4 + %s407]]
        %s409 = scalar_lea.vmem %s3, %s408
        %v410 = vld [vmem:[%s409] sm:$0x1]
        %v411 = vmax.f32 %v406, %v410
        %s412 = sadd.s32 %s403, 2
        %s413 = sld [smem:[#allocation4 + %s412]]
        %s414 = scalar_lea.vmem %s3, %s413
        %v415 = vld [vmem:[%s414] sm:$0x1]
        %v416 = vmax.f32 %v411, %v415
        %s417 = sadd.s32 %s403, 3
        %s418 = sld [smem:[#allocation4 + %s417]]
        %s419 = scalar_lea.vmem %s3, %s418
        %v420 = vld [vmem:[%s419] sm:$0x1]
        %v421 = vmax.f32 %v416, %v420
        %s422 = sadd.s32 %s403, 4
        %s423 = sld [smem:[#allocation4 + %s422]]
        %s424 = scalar_lea.vmem %s3, %s423
        %v425 = vld [vmem:[%s424] sm:$0x1]
        %v426 = vmax.f32 %v421, %v425
        %s427 = sadd.s32 %s403, 5
        %s428 = sld [smem:[#allocation4 + %s427]]
        %s429 = scalar_lea.vmem %s3, %s428
        %v430 = vld [vmem:[%s429] sm:$0x1]
        %v431 = vmax.f32 %v426, %v430
        %s432 = sadd.s32 %s403, 6
        %s433 = sld [smem:[#allocation4 + %s432]]
        %s434 = scalar_lea.vmem %s3, %s433
        %v435 = vld [vmem:[%s434] sm:$0x1]
        %v436 = vmax.f32 %v431, %v435
        %s437 = sadd.s32 %s403, 7
        %s438 = sld [smem:[#allocation4 + %s437]]
        %s439 = scalar_lea.vmem %s3, %s438
        %v440 = vld [vmem:[%s439] sm:$0x1]
        %v441 = vmax.f32 %v436, %v440
        %s442 = sadd.s32 %s403, 8
        %s443 = sld [smem:[#allocation4 + %s442]]
        %s444 = scalar_lea.vmem %s3, %s443
        %v445 = vld [vmem:[%s444] sm:$0x1]
        %v446 = vmax.f32 %v441, %v445
        %s447 = sadd.s32 %s403, 9
        %s448 = sld [smem:[#allocation4 + %s447]]
        %s449 = scalar_lea.vmem %s3, %s448
        %v450 = vld [vmem:[%s449] sm:$0x1]
        %v451 = vmax.f32 %v446, %v450
        %s452 = sadd.s32 %s403, 10
        %s453 = sld [smem:[#allocation4 + %s452]]
        %s454 = scalar_lea.vmem %s3, %s453
        %v455 = vld [vmem:[%s454] sm:$0x1]
        %v456 = vmax.f32 %v451, %v455
        %s457 = sadd.s32 %s403, 11
        %s458 = sld [smem:[#allocation4 + %s457]]
        %s459 = scalar_lea.vmem %s3, %s458
        %v460 = vld [vmem:[%s459] sm:$0x1]
        %v461 = vmax.f32 %v456, %v460
        %s462 = sadd.s32 %s403, 12
        %s463 = sld [smem:[#allocation4 + %s462]]
        %s464 = scalar_lea.vmem %s3, %s463
        %v465 = vld [vmem:[%s464] sm:$0x1]
        %v466 = vmax.f32 %v461, %v465
        %s467 = sadd.s32 %s403, 13
        %s468 = sld [smem:[#allocation4 + %s467]]
        %s469 = scalar_lea.vmem %s3, %s468
        %v470 = vld [vmem:[%s469] sm:$0x1]
        %v471 = vmax.f32 %v466, %v470
        %s472 = sadd.s32 %s403, 14
        %s473 = sld [smem:[#allocation4 + %s472]]
        %s474 = scalar_lea.vmem %s3, %s473
        %v475 = vld [vmem:[%s474] sm:$0x1]
        %v476 = vmax.f32 %v471, %v475
        %s477 = sadd.s32 %s403, 15
        %s478 = sld [smem:[#allocation4 + %s477]]
        %s479 = scalar_lea.vmem %s3, %s478
        %v480 = vld [vmem:[%s479] sm:$0x1]
        %v481 = vmax.f32 %v476, %v480
        %s482 = sadd.s32 %s403, 16
        %s483 = sld [smem:[#allocation4 + %s482]]
        %s484 = scalar_lea.vmem %s3, %s483
        %v485 = vld [vmem:[%s484] sm:$0x1]
        %v486 = vmax.f32 %v481, %v485
        %s487 = sadd.s32 %s403, 17
        %s488 = sld [smem:[#allocation4 + %s487]]
        %s489 = scalar_lea.vmem %s3, %s488
        %v490 = vld [vmem:[%s489] sm:$0x1]
        %v491 = vmax.f32 %v486, %v490
        %s492 = sadd.s32 %s403, 18
        %s493 = sld [smem:[#allocation4 + %s492]]
        %s494 = scalar_lea.vmem %s3, %s493
        %v495 = vld [vmem:[%s494] sm:$0x1]
        %v496 = vmax.f32 %v491, %v495
        %s497 = sadd.s32 %s403, 19
        %s498 = sld [smem:[#allocation4 + %s497]]
        %s499 = scalar_lea.vmem %s3, %s498
        %v500 = vld [vmem:[%s499] sm:$0x1]
        %v501 = vmax.f32 %v496, %v500
        %s502 = scalar_lea.vmem [#allocation2], %s397
        %vm503 = vcmask 516096
        %504 = vst.msk [vmem:[%s502] sm:$0x1] %vm503, %v501
      $region53: #{net_forward.7} parent=47 // loop_footer
        %s401 = sadd.s32 1, %s397
      $region54: #{net_forward.7} parent=47 // loop_footer_branch
        %396 = sbr.rel target = $region50
      $region55: #{net_forward.7} parent=47 // loop_exit
        _
      %v505 = vld [vmem:[%s368] sm:$0xf]
      %v506 = vld [vmem:[%s368 + $0x4] sm:$0xf]
      %v507 = vld [vmem:[%s368 + $0x8] sm:$0xf]
      %v508 = vld [vmem:[%s368 + $0xc] sm:$0xf]
      %v509 = vunpack.c.l.bf16 %v505
      %v510 = vunpack.c.l.bf16 %v506
      %v511 = vunpack.c.l.bf16 %v507
      %v512 = vunpack.c.l.bf16 %v508
      %v513 = vld [vmem:[#allocation2] sm:$0xff]
      %v514 = vld [vmem:[#allocation2 + $0x8] sm:$0xff]
      %v515 = vld [vmem:[#allocation2 + $0x10] sm:$0xff]
      %v516 = vld [vmem:[#allocation2 + $0x18] sm:$0xff]
      %v517 = vadd.f32 %v509, %v513
      %v518 = vadd.f32 %v510, %v514
      %v519 = vadd.f32 %v511, %v515
      %v520 = vadd.f32 %v512, %v516
      %vm521 = vcmp.gt.f32.partialorder %v517, 0.0
      %vm522 = vcmp.gt.f32.partialorder %v518, 0.0
      %vm523 = vcmp.gt.f32.partialorder %v519, 0.0
      %vm524 = vcmp.gt.f32.partialorder %v520, 0.0
      %v525 = vmin.f32 %v517, 0.0
      %v526 = vmin.f32 %v518, 0.0
      %v527 = vmin.f32 %v519, 0.0
      %v528 = vmin.f32 %v520, 0.0
      %v529 = vmul.f32 %v525, 1.442695
      %v530 = vpow.pop %v529
      %v531 = vmul.f32 %v526, 1.442695
      %v532 = vpow.pop %v531
      %v533 = vmul.f32 %v527, 1.442695
      %v534 = vpow.pop %v533
      %v535 = vmul.f32 %v528, 1.442695
      %v536 = vpow.pop %v535
      %v537 = vsub.f32 %v530, 1.0
      %v538 = vsub.f32 %v532, 1.0
      %v539 = vsub.f32 %v534, 1.0
      %v540 = vsub.f32 %v536, 1.0
      %v541 = vsel %vm521, %v517, %v537
      %v542 = vsel %vm522, %v518, %v538
      %v543 = vsel %vm523, %v519, %v539
      %v544 = vsel %vm524, %v520, %v540
      %v545 = vld [vmem:[%s4] sm:$0x1]
      %v547 = vperm.slane %v545, 0
      %v549 = vmul.f32 %v541, %v547
      %v550 = vmul.f32 %v542, %v547
      %v551 = vmul.f32 %v543, %v547
      %v552 = vmul.f32 %v544, %v547
      %v553 = vld [vmem:[%s5] sm:$0x1]
      %v555 = vperm.slane %v553, 0
      %v557 = vadd.f32 %v549, %v555
      %v558 = vadd.f32 %v550, %v555
      %v559 = vadd.f32 %v551, %v555
      %v560 = vadd.f32 %v552, %v555
      %v561 = vld [vmem:[%s374] sm:$0xf]
      %v562 = vld [vmem:[%s374 + $0x4] sm:$0xf]
      %v563 = vld [vmem:[%s374 + $0x8] sm:$0xf]
      %v564 = vld [vmem:[%s374 + $0xc] sm:$0xf]
      %v565 = vunpack.c.l.bf16 %v561
      %v566 = vunpack.c.l.bf16 %v562
      %v567 = vunpack.c.l.bf16 %v563
      %v568 = vunpack.c.l.bf16 %v564
      %v569 = vadd.f32 %v557, %v565
      %v570 = vadd.f32 %v558, %v566
      %v571 = vadd.f32 %v559, %v567
      %v572 = vadd.f32 %v560, %v568
      %v573 = vpack.c.bf16 %v569, %v569
      %v574 = vpack.c.bf16 %v570, %v570
      %v575 = vpack.c.bf16 %v571, %v571
      %v576 = vpack.c.bf16 %v572, %v572
      %vm577 = vcmask 519168
      %578 = vst.msk [vmem:[%s380] sm:$0xf] %vm577, %v573
      %579 = vst.msk [vmem:[%s380 + $0x4] sm:$0xf] %vm577, %v574
      %580 = vst.msk [vmem:[%s380 + $0x8] sm:$0xf] %vm577, %v575
      %581 = vst.msk [vmem:[%s380 + $0xc] sm:$0xf] %vm577, %v576
      %v582 = vld [vmem:[%s6] sm:$0xf]
      %v583 = vld [vmem:[%s6 + $0x4] sm:$0xf]
      %v584 = vld [vmem:[%s6 + $0x8] sm:$0xf]
      %v585 = vld [vmem:[%s6 + $0xc] sm:$0xf]
      %v586 = vld [vmem:[%s6 + $0x10] sm:$0xf]
      %v587 = vld [vmem:[%s6 + $0x14] sm:$0xf]
      %v588 = vld [vmem:[%s6 + $0x18] sm:$0xf]
      %v589 = vld [vmem:[%s6 + $0x1c] sm:$0xf]
      %v590 = vld [vmem:[%s7] sm:$0x1]
      %v592 = vperm.slane %v590, 0
      %v598 = vunpack.c.l.b16 %v573
      %v599 = vunpack.c.l.b16 %v574
      %v600 = vunpack.c.l.b16 %v575
      %v601 = vunpack.c.l.b16 %v576
      %v602 = vpack.c.b16 %v599, %v598
      %v603 = vpack.c.b16 %v601, %v600
      %v612 = vunpack.c.l.b16 %v582
      %v613 = vunpack.c.l.b16 %v583
      %v614 = vunpack.c.l.b16 %v584
      %v615 = vunpack.c.l.b16 %v585
      %v616 = vunpack.c.l.b16 %v586
      %v617 = vunpack.c.l.b16 %v587
      %v618 = vunpack.c.l.b16 %v588
      %v619 = vunpack.c.l.b16 %v589
      %v620 = vpack.c.b16 %v613, %v612
      %v621 = vpack.c.b16 %v615, %v614
      %v622 = vpack.c.b16 %v617, %v616
      %v623 = vpack.c.b16 %v619, %v618
      %vm628 = vcmask 523264
      %v630 = vsel %vm628, %v602, 0
      %v633 = vsel %vm628, %v603, 0
      %635 = vmatpush.bf16.msra.mxu0 0
      %636 = vmatpush.bf16.msra.mxu0 0
      %637 = vmatpush.bf16.msra.mxu0 0
      %638 = vmatpush.bf16.msra.mxu0 0
      %639 = vmatpush.bf16.msra.mxu0 %v623
      %640 = vmatpush.bf16.msra.mxu0 %v622
      %641 = vmatpush.bf16.msra.mxu0 %v621
      %642 = vmatpush.bf16.msra.mxu0 %v620
      %643 = vmatmul.bf16.gmra.mxu0 %v630
      %v644 = vpop.f32.mrf.mxu0
      %v645 = vadd.f32 %v592, %v644
      %v646 = vpop.f32.mrf.mxu0
      %v647 = vadd.f32 %v592, %v646
      %648 = vmatmul.bf16.gmra.mxu0 %v633
      %v649 = vpop.f32.mrf.mxu0
      %v650 = vadd.f32 %v592, %v649
      %v651 = vpop.f32.mrf.mxu0
      %v652 = vadd.f32 %v592, %v651
      %653 = vdwg.mxu0
      %v654 = vpack.c.bf16 %v645, %v645
      %v655 = vpack.c.bf16 %v647, %v647
      %v656 = vpack.c.bf16 %v650, %v650
      %v657 = vpack.c.bf16 %v652, %v652
      %658 = vst.msk [vmem:[%s386] sm:$0xf] %vm577, %v654
      %659 = vst.msk [vmem:[%s386 + $0x4] sm:$0xf] %vm577, %v655
      %660 = vst.msk [vmem:[%s386 + $0x8] sm:$0xf] %vm577, %v656
      %661 = vst.msk [vmem:[%s386 + $0xc] sm:$0xf] %vm577, %v657
      %666 = vrot.lane.b32.xlu0 %v645, 64
      %v667 = vpop.permute.xlu0 %666
      %668 = vrot.lane.b32.xlu0 %v647, 64
      %v669 = vpop.permute.xlu0 %668
      %670 = vrot.lane.b32.xlu0 %v650, 64
      %v671 = vpop.permute.xlu0 %670
      %672 = vrot.lane.b32.xlu0 %v652, 64
      %v673 = vpop.permute.xlu0 %672
      %678 = vst.msk [vmem:[%s392] sm:$0xff] %vm628, %v667
      %679 = vst.msk [vmem:[%s392 + $0x8] sm:$0xff] %vm628, %v669
      %680 = vst.msk [vmem:[%s392 + $0x10] sm:$0xff] %vm628, %v671
      %681 = vst.msk [vmem:[%s392 + $0x18] sm:$0xff] %vm628, %v673
      %s682 = smul.u32 4, %s30
      %p683 = scmp.lt.s32.totalorder %s682, 7
      %s684 = scalar_select %p683, %s682, 7
      %s685 = smul.addr %s684, 4
      %s686 = scalar_lea.vmem %s8, %s685
      %s687 = smul.u32 4, %s30
      %p688 = scmp.lt.s32.totalorder %s687, 7
      %s689 = scalar_select %p688, %s687, 7
      %s690 = smul.addr %s689, 4
      %s691 = scalar_lea.vmem %s9, %s690
      %s692 = smul.u32 4, %s30
      %p693 = scmp.lt.s32.totalorder %s692, 7
      %s694 = scalar_select %p693, %s692, 7
      %s695 = smul.addr %s694, 8
      %s696 = scalar_lea.vmem %s10, %s695
      // Predicated region
      $region56: #{net_forward.7} parent=47 // pred_check
        %p697 = pneg %p205
      $region57: #{net_forward.7} parent=47 // pred_check_branch
        %699 = sbr.rel (%p697) target = $region59
      $region58: #{net_forward.7} parent=47 // pred_region
        %s700 = smul.u32 4, %s30
      $region59: #{net_forward.7} parent=47 // pred_fallthru
        _
      // Predicated region
      $region60: #{net_forward.7} parent=47 // pred_check
        %p701 = pneg %p231
      $region61: #{net_forward.7} parent=47 // pred_check_branch
        %703 = sbr.rel (%p701) target = $region63
      $region62: #{net_forward.7} parent=47 // pred_region
        %s704 = smul.u32 4, %s30
      $region63: #{net_forward.7} parent=47 // pred_fallthru
        _
      // Predicated region
      $region64: #{net_forward.7} parent=47 // pred_check
        %p705 = pneg %p257
      $region65: #{net_forward.7} parent=47 // pred_check_branch
        %707 = sbr.rel (%p705) target = $region67
      $region66: #{net_forward.7} parent=47 // pred_region
        %s708 = smul.u32 4, %s30
      $region67: #{net_forward.7} parent=47 // pred_fallthru
        _
    $region48: #{net_forward.7} parent=5 // pred_fallthru
      _
    %p709 = scmp.le.s32.totalorder 2, %s25
    // Predicated region
    $region68: #{net_forward.7} parent=5 // pred_check
      %p710 = pneg %p709
    $region69: #{net_forward.7} parent=5 // pred_check_branch
      %712 = sbr.rel (%p710) target = $region71
    $region70: #{net_forward.7} parent=5 // pred_region
      %s713 = ssub.s32 %s25, 2
      // Predicated region
      $region72: #{net_forward.7} parent=70 // pred_check
        %p714 = pneg %p211
      $region73: #{net_forward.7} parent=70 // pred_check_branch
        %716 = sbr.rel (%p714) target = $region75
      $region74: #{net_forward.7} parent=70 // pred_region
        %s717 = smul.u32 4, %s31
        %p718 = scmp.lt.s32.totalorder %s717, 7
        %s719 = scalar_select %p718, %s717, 7
        %s720 = smul.addr %s719, 4
        %s721 = scalar_lea.vmem %s8, %s720
      $region75: #{net_forward.7} parent=70 // pred_fallthru
        _
      // Predicated region
      $region76: #{net_forward.7} parent=70 // pred_check
        %p722 = pneg %p237
      $region77: #{net_forward.7} parent=70 // pred_check_branch
        %724 = sbr.rel (%p722) target = $region79
      $region78: #{net_forward.7} parent=70 // pred_region
        %s725 = smul.u32 4, %s31
        %p726 = scmp.lt.s32.totalorder %s725, 7
        %s727 = scalar_select %p726, %s725, 7
        %s728 = smul.addr %s727, 4
        %s729 = scalar_lea.vmem %s9, %s728
      $region79: #{net_forward.7} parent=70 // pred_fallthru
        _
      // Predicated region
      $region80: #{net_forward.7} parent=70 // pred_check
        %p730 = pneg %p263
      $region81: #{net_forward.7} parent=70 // pred_check_branch
        %732 = sbr.rel (%p730) target = $region83
      $region82: #{net_forward.7} parent=70 // pred_region
        %s733 = smul.u32 4, %s31
        %p734 = scmp.lt.s32.totalorder %s733, 7
        %s735 = scalar_select %p734, %s733, 7
        %s736 = smul.addr %s735, 8
        %s737 = scalar_lea.vmem %s10, %s736
      $region83: #{net_forward.7} parent=70 // pred_fallthru
        _
    $region71: #{net_forward.7} parent=5 // pred_fallthru
      _
  $region6: #{net_forward.7} parent=0 // loop_footer
    %s29 = sadd.s32 1, %s25
  $region7: #{net_forward.7} parent=0 // loop_footer_branch
    %24 = sbr.rel target = $region3
  $region8: #{net_forward.7} parent=0 // loop_exit
    _

// kernel: net_forward.9
$region0: #{net_forward.9}
  #allocation0 [shape = 'u32[]', space=smem, size = 0x4, offset = 0x4, fixed_abs, tag = 'smem constant byte address 0x4 - core index']
  #allocation1 [shape = 'u32[72,128]{1,0:T(1,128)}', space=vmem, size = 0x9000, scoped, tag = 'internal scratch']
  #allocation2 [shape = 'f32[32,64]{1,0:T(8,128)}', space=vmem, size = 0x4000, scoped, tag = 'scratch operand']
  #allocation3 [shape = 's32[1]{0}', space=sflag, size = 0x4, scoped, tag = 'scoped memory for net_forward.9']
  #allocation4 [shape = 'u8[5120]{0}', space=smem, size = 0x1400, scoped, tag = 'prefetched SMEM operand 0']
  %s0 = inlined_call_operand.vmem [shape: s32[1280], index: 0, kind: input, shape index: {}]
  %s1 = inlined_call_operand.vmem [shape: bf16[64,64], index: 1, kind: input, shape index: {}]
  %s2 = inlined_call_operand.vmem [shape: bf16[64,64], index: 2, kind: input, shape index: {}]
  %s3 = inlined_call_operand.vmem [shape: f32[64,64], index: 3, kind: input, shape index: {}]
  %s4 = inlined_call_operand.vmem [shape: f32[1,64], index: 4, kind: input, shape index: {}]
  %s5 = inlined_call_operand.vmem [shape: f32[1,64], index: 5, kind: input, shape index: {}]
  %s6 = inlined_call_operand.vmem [shape: bf16[64,64], index: 6, kind: input, shape index: {}]
  %s7 = inlined_call_operand.vmem [shape: f32[1,64], index: 7, kind: input, shape index: {}]
  %s8 = inlined_call_operand.vmem [shape: bf16[64,32], index: 8, kind: input, shape index: {}]
  %s9 = inlined_call_operand.vmem [shape: f32[1,32], index: 9, kind: input, shape index: {}]
  %s10 = inlined_call_operand.vmem [shape: bf16[32,128], index: 10, kind: input, shape index: {}]
  %s11 = inlined_call_operand.vmem [shape: f32[1,128], index: 11, kind: input, shape index: {}]
  %s12 = inlined_call_operand.vmem [shape: f32[64,128], index: 12, kind: output, shape index: {}]
  %s13 = sld [smem:[#allocation0]]
  $region84: #{net_forward.9} parent=0
    _
  %s15 = ssub.s32 1, %s13
  %s16 = scalar_select 0, %s15, %s13
  %s18 = sshll.u32 %s0, 4
  %s19 = int_to_ptr.vmem [resolvable:$true] %s18
  %21 = dma.vmem_to_smem %s19, 160, [#allocation4], [#allocation3]
  %23 = dma.done [#allocation3], 160
  %24 = sfence
  loop: start=0, step=1, limit=4
  $region2: #{net_forward.9} parent=0 // loop_pre_header
    _
  $region3: #{net_forward.9} parent=0 // loop_header
    %s26 = sphi 0, %s30
    %p27 = scmp.ge.s32.totalorder %s26, 4
    %s36 = sphi 0, %s38
    %s39 = sphi 0, %s36
    %s40 = sphi 0, %s39
    %s56 = sphi 0, %s40
    %s62 = sphi 0, %s64
    %s65 = sphi 0, %s62
    %s66 = sphi 0, %s65
    %s82 = sphi 0, %s66
    %s86 = sphi 0, %s86
    %s88 = sphi 0, %s86
    %s89 = sphi 0, %s88
    %s103 = sphi 0, %s89
    %s107 = sphi 0, %s107
    %s109 = sphi 0, %s107
    %s110 = sphi 0, %s109
    %s124 = sphi 0, %s110
    %s128 = sphi 0, %s128
    %s130 = sphi 0, %s128
    %s131 = sphi 0, %s130
    %s145 = sphi 0, %s131
    %s149 = sphi 0, %s149
    %s151 = sphi 0, %s149
    %s152 = sphi 0, %s151
    %s166 = sphi 0, %s152
    %s170 = sphi 0, %s170
    %s172 = sphi 0, %s170
    %s173 = sphi 0, %s172
    %s187 = sphi 0, %s173
    %s191 = sphi 0, %s191
    %s193 = sphi 0, %s191
    %s194 = sphi 0, %s193
    %s208 = sphi 0, %s194
    %s212 = sphi 0, %s212
    %s214 = sphi 0, %s212
    %s215 = sphi 0, %s214
    %s229 = sphi 0, %s215
    %s233 = sphi 0, %s233
    %s235 = sphi 0, %s233
    %s236 = sphi 0, %s235
    %s250 = sphi 0, %s236
    %s254 = sphi 0, %s254
    %s256 = sphi 0, %s254
    %s257 = sphi 0, %s256
    %s271 = sphi 0, %s257
    %s277 = sphi 0, %s279
    %s280 = sphi 0, %s277
    %s281 = sphi 0, %s280
    %s297 = sphi 0, %s281
  $region4: #{net_forward.9} parent=0 // loop_header_branch
    %29 = sbr.rel (%p27) target = $region8
  $region5: #{net_forward.9} parent=0 // loop_body
    %s31 = ssub.s32 %s26, 1
    %s32 = ssub.s32 %s26, 2
    %s33 = sadd.s32 %s26, 1
    %s34 = ssub.s32 %s26, %s33
    %p35 = scmp.eq.s32.totalorder %s34, 0
    %s37 = sadd.s32 %s36, 1
    %s38 = scalar_select %p35, %s36, %s37
    %p41 = pneg %p35
    %p42 = scmp.eq.s32.totalorder %s26, 1
    %p43 = por %p41, %p42
    %p44 = scmp.ne.s32.totalorder %s36, %s39
    %p45 = scmp.eq.s32.totalorder %s26, 0
    %p46 = por %p44, %p45
    %p47 = scmp.ne.s32.totalorder %s36, %s39
    %p48 = scmp.eq.s32.totalorder %s31, 1
    %p49 = por %p47, %p48
    %p50 = scmp.ne.s32.totalorder %s39, %s40
    %p51 = scmp.eq.s32.totalorder %s31, 0
    %p52 = por %p50, %p51
    %p53 = scmp.ne.s32.totalorder %s39, %s40
    %p54 = scmp.eq.s32.totalorder %s32, 1
    %p55 = por %p53, %p54
    %p57 = scmp.ne.s32.totalorder %s40, %s56
    %p58 = scmp.eq.s32.totalorder %s32, 0
    %p59 = por %p57, %p58
    %s60 = ssub.s32 %s26, %s33
    %p61 = scmp.eq.s32.totalorder %s60, 0
    %s63 = sadd.s32 %s62, 1
    %s64 = scalar_select %p61, %s62, %s63
    %p67 = pneg %p61
    %p68 = scmp.eq.s32.totalorder %s26, 1
    %p69 = por %p67, %p68
    %p70 = scmp.ne.s32.totalorder %s62, %s65
    %p71 = scmp.eq.s32.totalorder %s26, 0
    %p72 = por %p70, %p71
    %p73 = scmp.ne.s32.totalorder %s62, %s65
    %p74 = scmp.eq.s32.totalorder %s31, 1
    %p75 = por %p73, %p74
    %p76 = scmp.ne.s32.totalorder %s65, %s66
    %p77 = scmp.eq.s32.totalorder %s31, 0
    %p78 = por %p76, %p77
    %p79 = scmp.ne.s32.totalorder %s65, %s66
    %p80 = scmp.eq.s32.totalorder %s32, 1
    %p81 = por %p79, %p80
    %p83 = scmp.ne.s32.totalorder %s66, %s82
    %p84 = scmp.eq.s32.totalorder %s32, 0
    %p85 = por %p83, %p84
    %s87 = sadd.s32 %s86, 1
    %p90 = scmp.eq.s32.totalorder %s26, 1
    %p91 = scmp.ne.s32.totalorder %s86, %s88
    %p92 = scmp.eq.s32.totalorder %s26, 0
    %p93 = por %p91, %p92
    %p94 = scmp.ne.s32.totalorder %s86, %s88
    %p95 = scmp.eq.s32.totalorder %s31, 1
    %p96 = por %p94, %p95
    %p97 = scmp.ne.s32.totalorder %s88, %s89
    %p98 = scmp.eq.s32.totalorder %s31, 0
    %p99 = por %p97, %p98
    %p100 = scmp.ne.s32.totalorder %s88, %s89
    %p101 = scmp.eq.s32.totalorder %s32, 1
    %p102 = por %p100, %p101
    %p104 = scmp.ne.s32.totalorder %s89, %s103
    %p105 = scmp.eq.s32.totalorder %s32, 0
    %p106 = por %p104, %p105
    %s108 = sadd.s32 %s107, 1
    %p111 = scmp.eq.s32.totalorder %s26, 1
    %p112 = scmp.ne.s32.totalorder %s107, %s109
    %p113 = scmp.eq.s32.totalorder %s26, 0
    %p114 = por %p112, %p113
    %p115 = scmp.ne.s32.totalorder %s107, %s109
    %p116 = scmp.eq.s32.totalorder %s31, 1
    %p117 = por %p115, %p116
    %p118 = scmp.ne.s32.totalorder %s109, %s110
    %p119 = scmp.eq.s32.totalorder %s31, 0
    %p120 = por %p118, %p119
    %p121 = scmp.ne.s32.totalorder %s109, %s110
    %p122 = scmp.eq.s32.totalorder %s32, 1
    %p123 = por %p121, %p122
    %p125 = scmp.ne.s32.totalorder %s110, %s124
    %p126 = scmp.eq.s32.totalorder %s32, 0
    %p127 = por %p125, %p126
    %s129 = sadd.s32 %s128, 1
    %p132 = scmp.eq.s32.totalorder %s26, 1
    %p133 = scmp.ne.s32.totalorder %s128, %s130
    %p134 = scmp.eq.s32.totalorder %s26, 0
    %p135 = por %p133, %p134
    %p136 = scmp.ne.s32.totalorder %s128, %s130
    %p137 = scmp.eq.s32.totalorder %s31, 1
    %p138 = por %p136, %p137
    %p139 = scmp.ne.s32.totalorder %s130, %s131
    %p140 = scmp.eq.s32.totalorder %s31, 0
    %p141 = por %p139, %p140
    %p142 = scmp.ne.s32.totalorder %s130, %s131
    %p143 = scmp.eq.s32.totalorder %s32, 1
    %p144 = por %p142, %p143
    %p146 = scmp.ne.s32.totalorder %s131, %s145
    %p147 = scmp.eq.s32.totalorder %s32, 0
    %p148 = por %p146, %p147
    %s150 = sadd.s32 %s149, 1
    %p153 = scmp.eq.s32.totalorder %s26, 1
    %p154 = scmp.ne.s32.totalorder %s149, %s151
    %p155 = scmp.eq.s32.totalorder %s26, 0
    %p156 = por %p154, %p155
    %p157 = scmp.ne.s32.totalorder %s149, %s151
    %p158 = scmp.eq.s32.totalorder %s31, 1
    %p159 = por %p157, %p158
    %p160 = scmp.ne.s32.totalorder %s151, %s152
    %p161 = scmp.eq.s32.totalorder %s31, 0
    %p162 = por %p160, %p161
    %p163 = scmp.ne.s32.totalorder %s151, %s152
    %p164 = scmp.eq.s32.totalorder %s32, 1
    %p165 = por %p163, %p164
    %p167 = scmp.ne.s32.totalorder %s152, %s166
    %p168 = scmp.eq.s32.totalorder %s32, 0
    %p169 = por %p167, %p168
    %s171 = sadd.s32 %s170, 1
    %p174 = scmp.eq.s32.totalorder %s26, 1
    %p175 = scmp.ne.s32.totalorder %s170, %s172
    %p176 = scmp.eq.s32.totalorder %s26, 0
    %p177 = por %p175, %p176
    %p178 = scmp.ne.s32.totalorder %s170, %s172
    %p179 = scmp.eq.s32.totalorder %s31, 1
    %p180 = por %p178, %p179
    %p181 = scmp.ne.s32.totalorder %s172, %s173
    %p182 = scmp.eq.s32.totalorder %s31, 0
    %p183 = por %p181, %p182
    %p184 = scmp.ne.s32.totalorder %s172, %s173
    %p185 = scmp.eq.s32.totalorder %s32, 1
    %p186 = por %p184, %p185
    %p188 = scmp.ne.s32.totalorder %s173, %s187
    %p189 = scmp.eq.s32.totalorder %s32, 0
    %p190 = por %p188, %p189
    %s192 = sadd.s32 %s191, 1
    %p195 = scmp.eq.s32.totalorder %s26, 1
    %p196 = scmp.ne.s32.totalorder %s191, %s193
    %p197 = scmp.eq.s32.totalorder %s26, 0
    %p198 = por %p196, %p197
    %p199 = scmp.ne.s32.totalorder %s191, %s193
    %p200 = scmp.eq.s32.totalorder %s31, 1
    %p201 = por %p199, %p200
    %p202 = scmp.ne.s32.totalorder %s193, %s194
    %p203 = scmp.eq.s32.totalorder %s31, 0
    %p204 = por %p202, %p203
    %p205 = scmp.ne.s32.totalorder %s193, %s194
    %p206 = scmp.eq.s32.totalorder %s32, 1
    %p207 = por %p205, %p206
    %p209 = scmp.ne.s32.totalorder %s194, %s208
    %p210 = scmp.eq.s32.totalorder %s32, 0
    %p211 = por %p209, %p210
    %s213 = sadd.s32 %s212, 1
    %p216 = scmp.eq.s32.totalorder %s26, 1
    %p217 = scmp.ne.s32.totalorder %s212, %s214
    %p218 = scmp.eq.s32.totalorder %s26, 0
    %p219 = por %p217, %p218
    %p220 = scmp.ne.s32.totalorder %s212, %s214
    %p221 = scmp.eq.s32.totalorder %s31, 1
    %p222 = por %p220, %p221
    %p223 = scmp.ne.s32.totalorder %s214, %s215
    %p224 = scmp.eq.s32.totalorder %s31, 0
    %p225 = por %p223, %p224
    %p226 = scmp.ne.s32.totalorder %s214, %s215
    %p227 = scmp.eq.s32.totalorder %s32, 1
    %p228 = por %p226, %p227
    %p230 = scmp.ne.s32.totalorder %s215, %s229
    %p231 = scmp.eq.s32.totalorder %s32, 0
    %p232 = por %p230, %p231
    %s234 = sadd.s32 %s233, 1
    %p237 = scmp.eq.s32.totalorder %s26, 1
    %p238 = scmp.ne.s32.totalorder %s233, %s235
    %p239 = scmp.eq.s32.totalorder %s26, 0
    %p240 = por %p238, %p239
    %p241 = scmp.ne.s32.totalorder %s233, %s235
    %p242 = scmp.eq.s32.totalorder %s31, 1
    %p243 = por %p241, %p242
    %p244 = scmp.ne.s32.totalorder %s235, %s236
    %p245 = scmp.eq.s32.totalorder %s31, 0
    %p246 = por %p244, %p245
    %p247 = scmp.ne.s32.totalorder %s235, %s236
    %p248 = scmp.eq.s32.totalorder %s32, 1
    %p249 = por %p247, %p248
    %p251 = scmp.ne.s32.totalorder %s236, %s250
    %p252 = scmp.eq.s32.totalorder %s32, 0
    %p253 = por %p251, %p252
    %s255 = sadd.s32 %s254, 1
    %p258 = scmp.eq.s32.totalorder %s26, 1
    %p259 = scmp.ne.s32.totalorder %s254, %s256
    %p260 = scmp.eq.s32.totalorder %s26, 0
    %p261 = por %p259, %p260
    %p262 = scmp.ne.s32.totalorder %s254, %s256
    %p263 = scmp.eq.s32.totalorder %s31, 1
    %p264 = por %p262, %p263
    %p265 = scmp.ne.s32.totalorder %s256, %s257
    %p266 = scmp.eq.s32.totalorder %s31, 0
    %p267 = por %p265, %p266
    %p268 = scmp.ne.s32.totalorder %s256, %s257
    %p269 = scmp.eq.s32.totalorder %s32, 1
    %p270 = por %p268, %p269
    %p272 = scmp.ne.s32.totalorder %s257, %s271
    %p273 = scmp.eq.s32.totalorder %s32, 0
    %p274 = por %p272, %p273
    %s275 = ssub.s32 %s26, %s33
    %p276 = scmp.eq.s32.totalorder %s275, 0
    %s278 = sadd.s32 %s277, 1
    %s279 = scalar_select %p276, %s277, %s278
    %p282 = pneg %p276
    %p283 = scmp.eq.s32.totalorder %s26, 1
    %p284 = por %p282, %p283
    %p285 = scmp.ne.s32.totalorder %s277, %s280
    %p286 = scmp.eq.s32.totalorder %s26, 0
    %p287 = por %p285, %p286
    %p288 = scmp.ne.s32.totalorder %s277, %s280
    %p289 = scmp.eq.s32.totalorder %s31, 1
    %p290 = por %p288, %p289
    %p291 = scmp.ne.s32.totalorder %s280, %s281
    %p292 = scmp.eq.s32.totalorder %s31, 0
    %p293 = por %p291, %p292
    %p294 = scmp.ne.s32.totalorder %s280, %s281
    %p295 = scmp.eq.s32.totalorder %s32, 1
    %p296 = por %p294, %p295
    %p298 = scmp.ne.s32.totalorder %s281, %s297
    %p299 = scmp.eq.s32.totalorder %s32, 0
    %p300 = por %p298, %p299
    %p301 = scmp.le.s32.totalorder 1, %s26
    %p302 = scmp.lt.s32.totalorder %s26, 3
    %p303 = pnand %p301, %p302
    %p304 = pneg %p303
    // Predicated region
    $region9: #{net_forward.9} parent=5 // pred_check
      _
    $region10: #{net_forward.9} parent=5 // pred_check_branch
      %306 = sbr.rel (%p303) target = $region12
    $region11: #{net_forward.9} parent=5 // pred_region
      %s307 = ssub.s32 %s26, 1
      // Predicated region
      $region13: #{net_forward.9} parent=11 // pred_check
        %p308 = pneg %p99
      $region14: #{net_forward.9} parent=11 // pred_check_branch
        %310 = sbr.rel (%p308) target = $region16
      $region15: #{net_forward.9} parent=11 // pred_region
        _
      $region16: #{net_forward.9} parent=11 // pred_fallthru
        _
      // Predicated region
      $region17: #{net_forward.9} parent=11 // pred_check
        %p311 = pneg %p120
      $region18: #{net_forward.9} parent=11 // pred_check_branch
        %313 = sbr.rel (%p311) target = $region20
      $region19: #{net_forward.9} parent=11 // pred_region
        _
      $region20: #{net_forward.9} parent=11 // pred_fallthru
        _
      // Predicated region
      $region21: #{net_forward.9} parent=11 // pred_check
        %p314 = pneg %p141
      $region22: #{net_forward.9} parent=11 // pred_check_branch
        %316 = sbr.rel (%p314) target = $region24
      $region23: #{net_forward.9} parent=11 // pred_region
        _
      $region24: #{net_forward.9} parent=11 // pred_fallthru
        _
      // Predicated region
      $region25: #{net_forward.9} parent=11 // pred_check
        %p317 = pneg %p162
      $region26: #{net_forward.9} parent=11 // pred_check_branch
        %319 = sbr.rel (%p317) target = $region28
      $region27: #{net_forward.9} parent=11 // pred_region
        _
      $region28: #{net_forward.9} parent=11 // pred_fallthru
        _
      // Predicated region
      $region29: #{net_forward.9} parent=11 // pred_check
        %p320 = pneg %p183
      $region30: #{net_forward.9} parent=11 // pred_check_branch
        %322 = sbr.rel (%p320) target = $region32
      $region31: #{net_forward.9} parent=11 // pred_region
        _
      $region32: #{net_forward.9} parent=11 // pred_fallthru
        _
      // Predicated region
      $region33: #{net_forward.9} parent=11 // pred_check
        %p323 = pneg %p204
      $region34: #{net_forward.9} parent=11 // pred_check_branch
        %325 = sbr.rel (%p323) target = $region36
      $region35: #{net_forward.9} parent=11 // pred_region
        _
      $region36: #{net_forward.9} parent=11 // pred_fallthru
        _
      // Predicated region
      $region37: #{net_forward.9} parent=11 // pred_check
        %p326 = pneg %p225
      $region38: #{net_forward.9} parent=11 // pred_check_branch
        %328 = sbr.rel (%p326) target = $region40
      $region39: #{net_forward.9} parent=11 // pred_region
        _
      $region40: #{net_forward.9} parent=11 // pred_fallthru
        _
      // Predicated region
      $region41: #{net_forward.9} parent=11 // pred_check
        %p329 = pneg %p246
      $region42: #{net_forward.9} parent=11 // pred_check_branch
        %331 = sbr.rel (%p329) target = $region44
      $region43: #{net_forward.9} parent=11 // pred_region
        _
      $region44: #{net_forward.9} parent=11 // pred_fallthru
        _
      // Predicated region
      $region45: #{net_forward.9} parent=11 // pred_check
        %p332 = pneg %p267
      $region46: #{net_forward.9} parent=11 // pred_check_branch
        %334 = sbr.rel (%p332) target = $region48
      $region47: #{net_forward.9} parent=11 // pred_region
        _
      $region48: #{net_forward.9} parent=11 // pred_fallthru
        _
    $region12: #{net_forward.9} parent=5 // pred_fallthru
      _
    %p335 = scmp.lt.s32.totalorder %s26, 2
    // Predicated region
    $region49: #{net_forward.9} parent=5 // pred_check
      %p336 = pneg %p335
    $region50: #{net_forward.9} parent=5 // pred_check_branch
      %338 = sbr.rel (%p336) target = $region52
    $region51: #{net_forward.9} parent=5 // pred_region
      // Predicated region
      $region53: #{net_forward.9} parent=51 // pred_check
        %p339 = pneg %p46
      $region54: #{net_forward.9} parent=51 // pred_check_branch
        %341 = sbr.rel (%p339) target = $region56
      $region55: #{net_forward.9} parent=51 // pred_region
        %s342 = smul.u32 4, %s26
        %p343 = scmp.lt.s32.totalorder %s342, 7
        %s344 = scalar_select %p343, %s342, 7
        %s345 = smul.addr %s344, 4
        %s346 = scalar_lea.vmem %s1, %s345
        %s347 = smul.u32 4, %s26
      $region56: #{net_forward.9} parent=51 // pred_fallthru
        _
      // Predicated region
      $region57: #{net_forward.9} parent=51 // pred_check
        %p348 = pneg %p72
      $region58: #{net_forward.9} parent=51 // pred_check_branch
        %350 = sbr.rel (%p348) target = $region60
      $region59: #{net_forward.9} parent=51 // pred_region
        %s351 = smul.u32 4, %s26
        %p352 = scmp.lt.s32.totalorder %s351, 7
        %s353 = scalar_select %p352, %s351, 7
        %s354 = smul.addr %s353, 4
        %s355 = scalar_lea.vmem %s2, %s354
        %s356 = smul.u32 4, %s26
      $region60: #{net_forward.9} parent=51 // pred_fallthru
        _
    $region52: #{net_forward.9} parent=5 // pred_fallthru
      _
    %p357 = scmp.le.s32.totalorder 1, %s26
    %p358 = scmp.lt.s32.totalorder %s26, 3
    %p359 = pnand %p357, %p358
    %p360 = pneg %p359
    // Predicated region
    $region61: #{net_forward.9} parent=5 // pred_check
      _
    $region62: #{net_forward.9} parent=5 // pred_check_branch
      %362 = sbr.rel (%p359) target = $region64
    $region63: #{net_forward.9} parent=5 // pred_region
      %s363 = ssub.s32 %s26, 1
      %s364 = smul.u32 4, %s31
      %p365 = scmp.lt.s32.totalorder %s364, 7
      %s366 = scalar_select %p365, %s364, 7
      %s367 = smul.addr %s366, 4
      %s368 = scalar_lea.vmem %s1, %s367
      %p369 = pneg %p52
      %p370 = pneg %p49
      %s371 = smul.u32 4, %s31
      %p372 = scmp.lt.s32.totalorder %s371, 7
      %s373 = scalar_select %p372, %s371, 7
      %s374 = smul.addr %s373, 4
      %s375 = scalar_lea.vmem %s2, %s374
      %p376 = pneg %p78
      %p377 = pneg %p75
      %p378 = pneg %p99
      %p379 = pneg %p96
      %p380 = pneg %p120
      %p381 = pneg %p117
      %p382 = pneg %p141
      %p383 = pneg %p138
      %p384 = pneg %p162
      %p385 = pneg %p159
      %p386 = pneg %p183
      %p387 = pneg %p180
      %p388 = pneg %p204
      %p389 = pneg %p201
      %p390 = pneg %p225
      %p391 = pneg %p222
      %p392 = pneg %p246
      %p393 = pneg %p243
      %p394 = pneg %p267
      %p395 = pneg %p264
      %p396 = pneg %p293
      %p397 = pneg %p290
      %s398 = smul.u32 4, %s31
      %p399 = scmp.lt.s32.totalorder %s398, 7
      %s400 = scalar_select %p399, %s398, 7
      %s401 = smul.addr %s400, 8
      %s402 = scalar_lea.vmem %s12, %s401
      %s403 = smul.u32 4, %s31
      %p404 = scmp.lt.s32.totalorder %s403, 7
      %s405 = scalar_select %p404, %s403, 7
      %s406 = smul.addr %s405, 4
      %s407 = scalar_lea.vmem %s1, %s406
      %s408 = smul.u32 4, %s31
      %s409 = smul.u32 4, %s31
      %p410 = scmp.lt.s32.totalorder %s409, 7
      %s411 = scalar_select %p410, %s409, 7
      %s412 = smul.addr %s411, 4
      %s413 = scalar_lea.vmem %s2, %s412
      %s414 = smul.u32 4, %s31
      %s415 = smul.u32 4, %s31
      %p416 = scmp.lt.s32.totalorder %s415, 7
      %s417 = scalar_select %p416, %s415, 7
      %s418 = smul.addr %s417, 8
      %s419 = scalar_lea.vmem %s12, %s418
      %s420 = smul.u32 4, %s31
      %s422 = smul.u32 %s31, 640
      loop: start=0, step=1, limit=32
      $region65: #{net_forward.9} parent=63 // loop_pre_header
        _
      $region66: #{net_forward.9} parent=63 // loop_header
        %s424 = sphi 0, %s428
        %p425 = scmp.ge.s32.totalorder %s424, 32
      $region67: #{net_forward.9} parent=63 // loop_header_branch
        %427 = sbr.rel (%p425) target = $region71
      $region68: #{net_forward.9} parent=63 // loop_body
        %s429 = smul.u32 %s424, 20
        %s430 = sadd.s32 %s422, %s429
        %s431 = sld [smem:[#allocation4 + %s430]]
        %s432 = scalar_lea.vmem %s3, %s431
        %v433 = vld [vmem:[%s432] sm:$0x1]
        %s434 = sadd.s32 %s430, 1
        %s435 = sld [smem:[#allocation4 + %s434]]
        %s436 = scalar_lea.vmem %s3, %s435
        %v437 = vld [vmem:[%s436] sm:$0x1]
        %v438 = vmax.f32 %v433, %v437
        %s439 = sadd.s32 %s430, 2
        %s440 = sld [smem:[#allocation4 + %s439]]
        %s441 = scalar_lea.vmem %s3, %s440
        %v442 = vld [vmem:[%s441] sm:$0x1]
        %v443 = vmax.f32 %v438, %v442
        %s444 = sadd.s32 %s430, 3
        %s445 = sld [smem:[#allocation4 + %s444]]
        %s446 = scalar_lea.vmem %s3, %s445
        %v447 = vld [vmem:[%s446] sm:$0x1]
        %v448 = vmax.f32 %v443, %v447
        %s449 = sadd.s32 %s430, 4
        %s450 = sld [smem:[#allocation4 + %s449]]
        %s451 = scalar_lea.vmem %s3, %s450
        %v452 = vld [vmem:[%s451] sm:$0x1]
        %v453 = vmax.f32 %v448, %v452
        %s454 = sadd.s32 %s430, 5
        %s455 = sld [smem:[#allocation4 + %s454]]
        %s456 = scalar_lea.vmem %s3, %s455
        %v457 = vld [vmem:[%s456] sm:$0x1]
        %v458 = vmax.f32 %v453, %v457
        %s459 = sadd.s32 %s430, 6
        %s460 = sld [smem:[#allocation4 + %s459]]
        %s461 = scalar_lea.vmem %s3, %s460
        %v462 = vld [vmem:[%s461] sm:$0x1]
        %v463 = vmax.f32 %v458, %v462
        %s464 = sadd.s32 %s430, 7
        %s465 = sld [smem:[#allocation4 + %s464]]
        %s466 = scalar_lea.vmem %s3, %s465
        %v467 = vld [vmem:[%s466] sm:$0x1]
        %v468 = vmax.f32 %v463, %v467
        %s469 = sadd.s32 %s430, 8
        %s470 = sld [smem:[#allocation4 + %s469]]
        %s471 = scalar_lea.vmem %s3, %s470
        %v472 = vld [vmem:[%s471] sm:$0x1]
        %v473 = vmax.f32 %v468, %v472
        %s474 = sadd.s32 %s430, 9
        %s475 = sld [smem:[#allocation4 + %s474]]
        %s476 = scalar_lea.vmem %s3, %s475
        %v477 = vld [vmem:[%s476] sm:$0x1]
        %v478 = vmax.f32 %v473, %v477
        %s479 = sadd.s32 %s430, 10
        %s480 = sld [smem:[#allocation4 + %s479]]
        %s481 = scalar_lea.vmem %s3, %s480
        %v482 = vld [vmem:[%s481] sm:$0x1]
        %v483 = vmax.f32 %v478, %v482
        %s484 = sadd.s32 %s430, 11
        %s485 = sld [smem:[#allocation4 + %s484]]
        %s486 = scalar_lea.vmem %s3, %s485
        %v487 = vld [vmem:[%s486] sm:$0x1]
        %v488 = vmax.f32 %v483, %v487
        %s489 = sadd.s32 %s430, 12
        %s490 = sld [smem:[#allocation4 + %s489]]
        %s491 = scalar_lea.vmem %s3, %s490
        %v492 = vld [vmem:[%s491] sm:$0x1]
        %v493 = vmax.f32 %v488, %v492
        %s494 = sadd.s32 %s430, 13
        %s495 = sld [smem:[#allocation4 + %s494]]
        %s496 = scalar_lea.vmem %s3, %s495
        %v497 = vld [vmem:[%s496] sm:$0x1]
        %v498 = vmax.f32 %v493, %v497
        %s499 = sadd.s32 %s430, 14
        %s500 = sld [smem:[#allocation4 + %s499]]
        %s501 = scalar_lea.vmem %s3, %s500
        %v502 = vld [vmem:[%s501] sm:$0x1]
        %v503 = vmax.f32 %v498, %v502
        %s504 = sadd.s32 %s430, 15
        %s505 = sld [smem:[#allocation4 + %s504]]
        %s506 = scalar_lea.vmem %s3, %s505
        %v507 = vld [vmem:[%s506] sm:$0x1]
        %v508 = vmax.f32 %v503, %v507
        %s509 = sadd.s32 %s430, 16
        %s510 = sld [smem:[#allocation4 + %s509]]
        %s511 = scalar_lea.vmem %s3, %s510
        %v512 = vld [vmem:[%s511] sm:$0x1]
        %v513 = vmax.f32 %v508, %v512
        %s514 = sadd.s32 %s430, 17
        %s515 = sld [smem:[#allocation4 + %s514]]
        %s516 = scalar_lea.vmem %s3, %s515
        %v517 = vld [vmem:[%s516] sm:$0x1]
        %v518 = vmax.f32 %v513, %v517
        %s519 = sadd.s32 %s430, 18
        %s520 = sld [smem:[#allocation4 + %s519]]
        %s521 = scalar_lea.vmem %s3, %s520
        %v522 = vld [vmem:[%s521] sm:$0x1]
        %v523 = vmax.f32 %v518, %v522
        %s524 = sadd.s32 %s430, 19
        %s525 = sld [smem:[#allocation4 + %s524]]
        %s526 = scalar_lea.vmem %s3, %s525
        %v527 = vld [vmem:[%s526] sm:$0x1]
        %v528 = vmax.f32 %v523, %v527
        %s529 = scalar_lea.vmem [#allocation2], %s424
        %vm530 = vcmask 516096
        %531 = vst.msk [vmem:[%s529] sm:$0x1] %vm530, %v528
      $region69: #{net_forward.9} parent=63 // loop_footer
        %s428 = sadd.s32 1, %s424
      $region70: #{net_forward.9} parent=63 // loop_footer_branch
        %423 = sbr.rel target = $region66
      $region71: #{net_forward.9} parent=63 // loop_exit
        _
      %v532 = vld [vmem:[%s407] sm:$0xf]
      %v533 = vld [vmem:[%s407 + $0x4] sm:$0xf]
      %v534 = vld [vmem:[%s407 + $0x8] sm:$0xf]
      %v535 = vld [vmem:[%s407 + $0xc] sm:$0xf]
      %v536 = vunpack.c.l.bf16 %v532
      %v537 = vunpack.c.l.bf16 %v533
      %v538 = vunpack.c.l.bf16 %v534
      %v539 = vunpack.c.l.bf16 %v535
      %v540 = vld [vmem:[#allocation2] sm:$0xff]
      %v541 = vld [vmem:[#allocation2 + $0x8] sm:$0xff]
      %v542 = vld [vmem:[#allocation2 + $0x10] sm:$0xff]
      %v543 = vld [vmem:[#allocation2 + $0x18] sm:$0xff]
      %v544 = vadd.f32 %v536, %v540
      %v545 = vadd.f32 %v537, %v541
      %v546 = vadd.f32 %v538, %v542
      %v547 = vadd.f32 %v539, %v543
      %vm548 = vcmp.gt.f32.partialorder %v544, 0.0
      %vm549 = vcmp.gt.f32.partialorder %v545, 0.0
      %vm550 = vcmp.gt.f32.partialorder %v546, 0.0
      %vm551 = vcmp.gt.f32.partialorder %v547, 0.0
      %v552 = vmin.f32 %v544, 0.0
      %v553 = vmin.f32 %v545, 0.0
      %v554 = vmin.f32 %v546, 0.0
      %v555 = vmin.f32 %v547, 0.0
      %v556 = vmul.f32 %v552, 1.442695
      %v557 = vpow.pop %v556
      %v558 = vmul.f32 %v553, 1.442695
      %v559 = vpow.pop %v558
      %v560 = vmul.f32 %v554, 1.442695
      %v561 = vpow.pop %v560
      %v562 = vmul.f32 %v555, 1.442695
      %v563 = vpow.pop %v562
      %v564 = vsub.f32 %v557, 1.0
      %v565 = vsub.f32 %v559, 1.0
      %v566 = vsub.f32 %v561, 1.0
      %v567 = vsub.f32 %v563, 1.0
      %v568 = vsel %vm548, %v544, %v564
      %v569 = vsel %vm549, %v545, %v565
      %v570 = vsel %vm550, %v546, %v566
      %v571 = vsel %vm551, %v547, %v567
      %v572 = vld [vmem:[%s4] sm:$0x1]
      %v574 = vperm.slane %v572, 0
      %v576 = vmul.f32 %v568, %v574
      %v577 = vmul.f32 %v569, %v574
      %v578 = vmul.f32 %v570, %v574
      %v579 = vmul.f32 %v571, %v574
      %v580 = vld [vmem:[%s5] sm:$0x1]
      %v582 = vperm.slane %v580, 0
      %v584 = vadd.f32 %v576, %v582
      %v585 = vadd.f32 %v577, %v582
      %v586 = vadd.f32 %v578, %v582
      %v587 = vadd.f32 %v579, %v582
      %v588 = vld [vmem:[%s413] sm:$0xf]
      %v589 = vld [vmem:[%s413 + $0x4] sm:$0xf]
      %v590 = vld [vmem:[%s413 + $0x8] sm:$0xf]
      %v591 = vld [vmem:[%s413 + $0xc] sm:$0xf]
      %v592 = vunpack.c.l.bf16 %v588
      %v593 = vunpack.c.l.bf16 %v589
      %v594 = vunpack.c.l.bf16 %v590
      %v595 = vunpack.c.l.bf16 %v591
      %v596 = vadd.f32 %v584, %v592
      %v597 = vadd.f32 %v585, %v593
      %v598 = vadd.f32 %v586, %v594
      %v599 = vadd.f32 %v587, %v595
      %v600 = vpack.c.bf16 %v597, %v596
      %v601 = vpack.c.bf16 %v599, %v598
      %v602 = vld [vmem:[%s6] sm:$0xf]
      %v603 = vld [vmem:[%s6 + $0x4] sm:$0xf]
      %v604 = vld [vmem:[%s6 + $0x8] sm:$0xf]
      %v605 = vld [vmem:[%s6 + $0xc] sm:$0xf]
      %v606 = vld [vmem:[%s6 + $0x10] sm:$0xf]
      %v607 = vld [vmem:[%s6 + $0x14] sm:$0xf]
      %v608 = vld [vmem:[%s6 + $0x18] sm:$0xf]
      %v609 = vld [vmem:[%s6 + $0x1c] sm:$0xf]
      %v610 = vld [vmem:[%s7] sm:$0x1]
      %v612 = vperm.slane %v610, 0
      %v622 = vunpack.c.l.b16 %v602
      %v623 = vunpack.c.l.b16 %v603
      %v624 = vunpack.c.l.b16 %v604
      %v625 = vunpack.c.l.b16 %v605
      %v626 = vunpack.c.l.b16 %v606
      %v627 = vunpack.c.l.b16 %v607
      %v628 = vunpack.c.l.b16 %v608
      %v629 = vunpack.c.l.b16 %v609
      %v630 = vpack.c.b16 %v623, %v622
      %v631 = vpack.c.b16 %v625, %v624
      %v632 = vpack.c.b16 %v627, %v626
      %v633 = vpack.c.b16 %v629, %v628
      %vm638 = vcmask 523264
      %v640 = vsel %vm638, %v600, 0
      %v643 = vsel %vm638, %v601, 0
      %645 = vmatpush.bf16.msra.mxu0 0
      %646 = vmatpush.bf16.msra.mxu0 0
      %647 = vmatpush.bf16.msra.mxu0 0
      %648 = vmatpush.bf16.msra.mxu0 0
      %649 = vmatpush.bf16.msra.mxu0 %v633
      %650 = vmatpush.bf16.msra.mxu0 %v632
      %651 = vmatpush.bf16.msra.mxu0 %v631
      %652 = vmatpush.bf16.msra.mxu0 %v630
      %653 = vmatmul.bf16.gmra.mxu0 %v640
      %v654 = vpop.f32.mrf.mxu0
      %v655 = vadd.f32 %v612, %v654
      %v656 = vpop.f32.mrf.mxu0
      %v657 = vadd.f32 %v612, %v656
      %658 = vmatmul.bf16.gmra.mxu0 %v643
      %v659 = vpop.f32.mrf.mxu0
      %v660 = vadd.f32 %v612, %v659
      %v661 = vpop.f32.mrf.mxu0
      %v662 = vadd.f32 %v612, %v661
      %663 = vdwg.mxu0
      %vm664 = vcmp.gt.f32.partialorder %v655, 0.0
      %vm665 = vcmp.gt.f32.partialorder %v657, 0.0
      %vm666 = vcmp.gt.f32.partialorder %v660, 0.0
      %vm667 = vcmp.gt.f32.partialorder %v662, 0.0
      %v668 = vmin.f32 %v655, 0.0
      %v669 = vmin.f32 %v657, 0.0
      %v670 = vmin.f32 %v660, 0.0
      %v671 = vmin.f32 %v662, 0.0
      %v672 = vmul.f32 %v668, 1.442695
      %v673 = vpow.pop %v672
      %v674 = vmul.f32 %v669, 1.442695
      %v675 = vpow.pop %v674
      %v676 = vmul.f32 %v670, 1.442695
      %v677 = vpow.pop %v676
      %v678 = vmul.f32 %v671, 1.442695
      %v679 = vpow.pop %v678
      %v680 = vsub.f32 %v673, 1.0
      %v681 = vsub.f32 %v675, 1.0
      %v682 = vsub.f32 %v677, 1.0
      %v683 = vsub.f32 %v679, 1.0
      %v684 = vsel %vm664, %v655, %v680
      %v685 = vsel %vm665, %v657, %v681
      %v686 = vsel %vm666, %v660, %v682
      %v687 = vsel %vm667, %v662, %v683
      %v688 = vpack.c.bf16 %v685, %v684
      %v689 = vpack.c.bf16 %v687, %v686
      %v690 = vld [vmem:[%s8] sm:$0xf]
      %v691 = vld [vmem:[%s8 + $0x4] sm:$0xf]
      %v692 = vld [vmem:[%s8 + $0x8] sm:$0xf]
      %v693 = vld [vmem:[%s8 + $0xc] sm:$0xf]
      %v694 = vld [vmem:[%s8 + $0x10] sm:$0xf]
      %v695 = vld [vmem:[%s8 + $0x14] sm:$0xf]
      %v696 = vld [vmem:[%s8 + $0x18] sm:$0xf]
      %v697 = vld [vmem:[%s8 + $0x1c] sm:$0xf]
      %v698 = vld [vmem:[%s9] sm:$0x1]
      %v700 = vperm.slane %v698, 0
      %v710 = vunpack.c.l.b16 %v690
      %v711 = vunpack.c.l.b16 %v691
      %v712 = vunpack.c.l.b16 %v692
      %v713 = vunpack.c.l.b16 %v693
      %v714 = vunpack.c.l.b16 %v694
      %v715 = vunpack.c.l.b16 %v695
      %v716 = vunpack.c.l.b16 %v696
      %v717 = vunpack.c.l.b16 %v697
      %v718 = vpack.c.b16 %v711, %v710
      %v719 = vpack.c.b16 %v713, %v712
      %v720 = vpack.c.b16 %v715, %v714
      %v721 = vpack.c.b16 %v717, %v716
      %v727 = vsel %vm638, %v688, 0
      %v730 = vsel %vm638, %v689, 0
      %732 = vmatpush.bf16.msra.mxu0 0
      %733 = vmatpush.bf16.msra.mxu0 0
      %734 = vmatpush.bf16.msra.mxu0 0
      %735 = vmatpush.bf16.msra.mxu0 0
      %736 = vmatpush.bf16.msra.mxu0 %v721
      %737 = vmatpush.bf16.msra.mxu0 %v720
      %738 = vmatpush.bf16.msra.mxu0 %v719
      %739 = vmatpush.bf16.msra.mxu0 %v718
      %740 = vmatmul.bf16.gmra.mxu0 %v727
      %v741 = vpop.f32.mrf.mxu0
      %v742 = vadd.f32 %v700, %v741
      %v743 = vpop.f32.mrf.mxu0
      %v744 = vadd.f32 %v700, %v743
      %745 = vmatmul.bf16.gmra.mxu0 %v730
      %v746 = vpop.f32.mrf.mxu0
      %v747 = vadd.f32 %v700, %v746
      %v748 = vpop.f32.mrf.mxu0
      %v749 = vadd.f32 %v700, %v748
      %750 = vdwg.mxu0
      %vm751 = vcmp.gt.f32.partialorder %v742, 0.0
      %vm752 = vcmp.gt.f32.partialorder %v744, 0.0
      %vm753 = vcmp.gt.f32.partialorder %v747, 0.0
      %vm754 = vcmp.gt.f32.partialorder %v749, 0.0
      %v755 = vmin.f32 %v742, 0.0
      %v756 = vmin.f32 %v744, 0.0
      %v757 = vmin.f32 %v747, 0.0
      %v758 = vmin.f32 %v749, 0.0
      %v759 = vmul.f32 %v755, 1.442695
      %v760 = vpow.pop %v759
      %v761 = vmul.f32 %v756, 1.442695
      %v762 = vpow.pop %v761
      %v763 = vmul.f32 %v757, 1.442695
      %v764 = vpow.pop %v763
      %v765 = vmul.f32 %v758, 1.442695
      %v766 = vpow.pop %v765
      %v767 = vsub.f32 %v760, 1.0
      %v768 = vsub.f32 %v762, 1.0
      %v769 = vsub.f32 %v764, 1.0
      %v770 = vsub.f32 %v766, 1.0
      %v771 = vsel %vm751, %v742, %v767
      %v772 = vsel %vm752, %v744, %v768
      %v773 = vsel %vm753, %v747, %v769
      %v774 = vsel %vm754, %v749, %v770
      %v775 = vpack.c.bf16 %v772, %v771
      %v776 = vpack.c.bf16 %v774, %v773
      %v777 = vld [vmem:[%s10] sm:$0xf]
      %v778 = vld [vmem:[%s10 + $0x4] sm:$0xf]
      %v779 = vld [vmem:[%s10 + $0x8] sm:$0xf]
      %v780 = vld [vmem:[%s10 + $0xc] sm:$0xf]
      %v781 = vld [vmem:[%s11] sm:$0x1]
      %v783 = vperm.slane %v781, 0
      %v789 = vunpack.c.l.b16 %v777
      %v790 = vunpack.c.l.b16 %v778
      %v791 = vunpack.c.l.b16 %v779
      %v792 = vunpack.c.l.b16 %v780
      %v793 = vpack.c.b16 %v790, %v789
      %v794 = vpack.c.b16 %v792, %v791
      %vm797 = vcmask 261120
      %v799 = vsel %vm797, %v775, 0
      %v802 = vsel %vm797, %v776, 0
      %804 = vmatpush.bf16.msra.mxu0 0
      %805 = vmatpush.bf16.msra.mxu0 0
      %806 = vmatpush.bf16.msra.mxu0 0
      %807 = vmatpush.bf16.msra.mxu0 0
      %808 = vmatpush.bf16.msra.mxu0 0
      %809 = vmatpush.bf16.msra.mxu0 0
      %810 = vmatpush.bf16.msra.mxu0 %v794
      %811 = vmatpush.bf16.msra.mxu0 %v793
      %812 = vmatmul.bf16.gmra.mxu0 %v799
      %v813 = vpop.f32.mrf.mxu0
      %v814 = vadd.f32 %v783, %v813
      %v815 = vpop.f32.mrf.mxu0
      %v816 = vadd.f32 %v783, %v815
      %817 = vmatmul.bf16.gmra.mxu0 %v802
      %v818 = vpop.f32.mrf.mxu0
      %v819 = vadd.f32 %v783, %v818
      %v820 = vpop.f32.mrf.mxu0
      %v821 = vadd.f32 %v783, %v820
      %822 = vdwg.mxu0
      %823 = vst [vmem:[%s419] sm:$0xff] %v814
      %824 = vst [vmem:[%s419 + $0x8] sm:$0xff] %v816
      %825 = vst [vmem:[%s419 + $0x10] sm:$0xff] %v819
      %826 = vst [vmem:[%s419 + $0x18] sm:$0xff] %v821
      %s827 = smul.u32 4, %s31
      %p828 = scmp.lt.s32.totalorder %s827, 7
      %s829 = scalar_select %p828, %s827, 7
      %s830 = smul.addr %s829, 8
      %s831 = scalar_lea.vmem %s12, %s830
      // Predicated region
      $region72: #{net_forward.9} parent=63 // pred_check
        %p832 = pneg %p290
      $region73: #{net_forward.9} parent=63 // pred_check_branch
        %834 = sbr.rel (%p832) target = $region75
      $region74: #{net_forward.9} parent=63 // pred_region
        %s835 = smul.u32 4, %s31
      $region75: #{net_forward.9} parent=63 // pred_fallthru
        _
    $region64: #{net_forward.9} parent=5 // pred_fallthru
      _
    %p836 = scmp.le.s32.totalorder 2, %s26
    // Predicated region
    $region76: #{net_forward.9} parent=5 // pred_check
      %p837 = pneg %p836
    $region77: #{net_forward.9} parent=5 // pred_check_branch
      %839 = sbr.rel (%p837) target = $region79
    $region78: #{net_forward.9} parent=5 // pred_region
      %s840 = ssub.s32 %s26, 2
      // Predicated region
      $region80: #{net_forward.9} parent=78 // pred_check
        %p841 = pneg %p296
      $region81: #{net_forward.9} parent=78 // pred_check_branch
        %843 = sbr.rel (%p841) target = $region83
      $region82: #{net_forward.9} parent=78 // pred_region
        %s844 = smul.u32 4, %s32
        %p845 = scmp.lt.s32.totalorder %s844, 7
        %s846 = scalar_select %p845, %s844, 7
        %s847 = smul.addr %s846, 8
        %s848 = scalar_lea.vmem %s12, %s847
      $region83: #{net_forward.9} parent=78 // pred_fallthru
        _
    $region79: #{net_forward.9} parent=5 // pred_fallthru
      _
  $region6: #{net_forward.9} parent=0 // loop_footer
    %s30 = sadd.s32 1, %s26
  $region7: #{net_forward.9} parent=0 // loop_footer_branch
    %25 = sbr.rel target = $region3
  $region8: #{net_forward.9} parent=0 // loop_exit
    _

</llo_original>
